<compile_context>
chip_gen: v7x
topology: tpu7x:2x2x1
jax: 0.10.0
libtpu: 0.0.40
codegen_flags: <defaults>
</compile_context>

<pallas_src>
import functools
import math

import jax
import jax.numpy as jnp
from jax.experimental import pallas as pl
from jax.experimental.pallas import tpu as pltpu


# ----------------------------------------------------------------------------
# GraphNetConfig constants (the *_Node / Obj_Interaction / Space_Relationship enums are not
# part of the reference snippet; small deterministic class counts are used).
# ----------------------------------------------------------------------------
NODE_SIZE = 64
HG_MULTIPLIER = 2
HG_SIZE = NODE_SIZE * HG_MULTIPLIER          # 128
EDGE_SIZE = 8                                # num_edge_types (Space_Relationship.number)
NUM_INTERACTION = 10                         # Obj_Interaction.number
OUT_DIM = NUM_INTERACTION + 1                # f_interact output width
OUT_PAD = 128                                # lane-dense padded output width
ROUNDS = 3                                   # rounds_of_propagation_dict['ita']
MSG = 2 * NODE_SIZE                          # 128: message width / slab block stride


# ----------------------------------------------------------------------------
# Fused Pallas kernel: Propagator rounds + Aggregator + f_interact
# ----------------------------------------------------------------------------
def _interaction_kernel(nv_ref, ev_ref, suv_ref, ainout_ref,
                        w_node_ref, b_node_ref, w_edge_ref, b_edge_ref,
                        w_ih_ref, b_ih_ref, w_aggr_ref, b_aggr_ref,
                        w_int_ref, b_int_ref, o_ref, *, rounds):
    f32 = jnp.float32
    ns = NODE_SIZE
    M = MSG                                            # 128

    def mm(a, b):
        return jnp.dot(a, b, preferred_element_type=f32)

    nv = nv_ref[...]                                    # [N, ns]  node state (f32)
    suv = suv_ref[...]                                  # [E, 2N]  [one_hot(u) | one_hot(v)]
    ainout = ainout_ref[...]                            # [N, 2E]  [incoming | outgoing]

    # Hoisted round-invariant edge projection, with the message biases folded in:
    #   evp[:, r*2M:(r+1)*2M] = [ev@wef_e_r + bef_r | ev@wer_e_r + ber_r]
    evp = mm(ev_ref[...], w_edge_ref[...]) + b_edge_ref[...]          # [E, R*2M]

    # Propagator: statically unrolled rounds; per-round weight slabs indexed with static i.
    # node_vectors and _node_vectors are treated as the same (kept-in-sync) state.
    for i in range(rounds):
        # One projection of the node state against the fused slab
        #   [wef_u | wer_u | wef_v | wer_v | whr | whz | whn]   (gru-h blocks lane-padded)
        P = mm(nv, w_node_ref[i]) + b_node_ref[i]                     # [N, 7M]
        # Gather (node_vectors[u_indices] / [v_indices]) as ONE incidence matmul:
        #   [su|sv] @ [[P_u_fwd|P_u_rev] ; [P_v_fwd|P_v_rev]]
        Pg = jnp.concatenate([P[:, 0:2 * M], P[:, 2 * M:4 * M]], axis=0)   # [2N, 2M]
        mfr = mm(suv, Pg) + evp[:, i * 2 * M:(i + 1) * 2 * M]         # [E, 2M] = [mf | mr]
        # Scatter-add over nodes as ONE incidence matmul: [ain|aout] @ [mf ; mr]
        msg = jnp.concatenate([mfr[:, 0:M], mfr[:, M:2 * M]], axis=0)  # [2E, M]
        agg = mm(ainout, msg)                                          # [N, 2*ns]
        # GRUCell(agg, nv): input-side gates in one matmul, hidden-side gates come from P.
        gi = mm(agg, w_ih_ref[i]) + b_ih_ref[i]                        # [N, 3M] (padded)
        r = jax.nn.sigmoid(gi[:, 0:ns] + P[:, 4 * M:4 * M + ns])
        z = jax.nn.sigmoid(gi[:, M:M + ns] + P[:, 5 * M:5 * M + ns])
        c = jnp.tanh(gi[:, 2 * M:2 * M + ns] + r * P[:, 6 * M:6 * M + ns])
        nv = (1.0 - z) * c + z * nv

    # Aggregator (fused f_m | g_m): h_G = sum_n f_m(h_n) * sigmoid(g_m(h_n))      [1, hG]
    fg = mm(nv, w_aggr_ref[...]) + b_aggr_ref[...]                     # [N, 2*hG]
    h_g = jnp.sum(fg[:, 0:HG_SIZE] * jax.nn.sigmoid(fg[:, HG_SIZE:2 * HG_SIZE]),
                  axis=0, keepdims=True)                               # [1, hG]

    # f_interact: Linear(hG, num_interaction + 1), lane-padded to 128 columns.
    out = mm(h_g, w_int_ref[...]) + b_int_ref[...]                     # [1, OUT_PAD]
    o_ref[...] = jnp.broadcast_to(out, o_ref.shape)


def interaction_type_forward(node_vectors, edge_vectors, u_indices, v_indices, packed):
    """InteractionType.forward: [N,node_size] nodes, [E,edge_size] edges -> [1, OUT_DIM]."""
    n_nodes = node_vectors.shape[0]
    n_edges = edge_vectors.shape[0]
    # TODO(synk): the reference's empty-graph branches (len(nodes)==0 -> h_G = zeros;
    # len(edges)==0 -> skip propagation) are Python control flow on the graph object; shapes
    # here are static, so propagation is only statically disabled when there are no edges.
    rounds = ROUNDS if (n_nodes > 0 and n_edges > 0) else 0

    # Gathers / scatter-adds over edges expressed as 0/1 incidence matmuls, packed into just
    # two arrays: [su | sv] ([E,2N]) for the gather and [ain | aout] ([N,2E]) for the scatter.
    su = jax.nn.one_hot(u_indices, n_nodes, dtype=jnp.float32)     # [E, N]
    sv = jax.nn.one_hot(v_indices, n_nodes, dtype=jnp.float32)     # [E, N]
    suv = jnp.concatenate([su, sv], axis=1)                        # [E, 2N]
    ainout = jnp.concatenate([sv.T, su.T], axis=1)                 # [N, 2E] incoming|outgoing

    flat = [node_vectors, edge_vectors, suv, ainout,
            packed["w_node"], packed["b_node"], packed["w_edge"], packed["b_edge"],
            packed["w_ih"], packed["b_ih"], packed["w_aggr"], packed["b_aggr"],
            packed["w_int"], packed["b_int"]]

    out = pl.pallas_call(
        functools.partial(_interaction_kernel, rounds=rounds),
        out_shape=jax.ShapeDtypeStruct((8, OUT_PAD), jnp.float32),
        in_specs=[pl.BlockSpec(memory_space=pltpu.MemorySpace.VMEM) for _ in flat],
        out_specs=pl.BlockSpec(memory_space=pltpu.MemorySpace.VMEM),
    )(*flat)
    return out[0:1, :OUT_DIM]


# ----------------------------------------------------------------------------
# Deterministic synthetic parameters (PyTorch-style uniform init), raw + packed forms
# ----------------------------------------------------------------------------
def _linear_params(key, cin, cout):
    kw, kb = jax.random.split(key)
    bound = 1.0 / math.sqrt(cin)
    w = jax.random.uniform(kw, (cin, cout), jnp.float32, -bound, bound)
    b = jax.random.uniform(kb, (cout,), jnp.float32, -bound, bound)
    return w, b


def _gru_params(key, input_size, hidden):
    ks = jax.random.split(key, 4)
    bound = 1.0 / math.sqrt(hidden)
    wih = jax.random.uniform(ks[0], (input_size, 3 * hidden), jnp.float32, -bound, bound)
    whh = jax.random.uniform(ks[1], (hidden, 3 * hidden), jnp.float32, -bound, bound)
    bih = jax.random.uniform(ks[2], (3 * hidden,), jnp.float32, -bound, bound)
    bhh = jax.random.uniform(ks[3], (3 * hidden,), jnp.float32, -bound, bound)
    return wih, whh, bih, bhh                      # gate column order: [r | z | n]


def pack_params(raw):
    """Host-side weight concatenation for the fused kernel (see slab layouts in the kernel)."""
    ns, es = NODE_SIZE, EDGE_SIZE
    M = MSG                                         # 128
    R = len(raw["rounds"])
    w_node = jnp.zeros((R, ns, 7 * M), jnp.float32)
    b_node = jnp.zeros((R, 1, 7 * M), jnp.float32)
    w_ih = jnp.zeros((R, 2 * ns, 3 * M), jnp.float32)
    b_ih = jnp.zeros((R, 1, 3 * M), jnp.float32)
    w_edge = jnp.zeros((es, R * 2 * M), jnp.float32)
    b_edge = jnp.zeros((1, R * 2 * M), jnp.float32)
    for r, p in enumerate(raw["rounds"]):
        wef, wer, whh = p["wef"], p["wer"], p["whh"]
        # node-side slab: [wef_u | wer_u | wef_v | wer_v | whr | whz | whn] (h-blocks padded)
        w_node = w_node.at[r, :, 0 * M:1 * M].set(wef[0:ns])
        w_node = w_node.at[r, :, 1 * M:2 * M].set(wer[0:ns])
        w_node = w_node.at[r, :, 2 * M:3 * M].set(wef[ns:2 * ns])
        w_node = w_node.at[r, :, 3 * M:4 * M].set(wer[ns:2 * ns])
        w_node = w_node.at[r, :, 4 * M:4 * M + ns].set(whh[:, 0:ns])
        w_node = w_node.at[r, :, 5 * M:5 * M + ns].set(whh[:, ns:2 * ns])
        w_node = w_node.at[r, :, 6 * M:6 * M + ns].set(whh[:, 2 * ns:3 * ns])
        b_node = b_node.at[r, 0, 4 * M:4 * M + ns].set(p["bhh"][0:ns])
        b_node = b_node.at[r, 0, 5 * M:5 * M + ns].set(p["bhh"][ns:2 * ns])
        b_node = b_node.at[r, 0, 6 * M:6 * M + ns].set(p["bhh"][2 * ns:3 * ns])
        # GRU input-side slab: [wir | wiz | win] (each padded to 128 lanes)
        w_ih = w_ih.at[r, :, 0 * M:0 * M + ns].set(p["wih"][:, 0:ns])
        w_ih = w_ih.at[r, :, 1 * M:1 * M + ns].set(p["wih"][:, ns:2 * ns])
        w_ih = w_ih.at[r, :, 2 * M:2 * M + ns].set(p["wih"][:, 2 * ns:3 * ns])
        b_ih = b_ih.at[r, 0, 0 * M:0 * M + ns].set(p["bih"][0:ns])
        b_ih = b_ih.at[r, 0, 1 * M:1 * M + ns].set(p["bih"][ns:2 * ns])
        b_ih = b_ih.at[r, 0, 2 * M:2 * M + ns].set(p["bih"][2 * ns:3 * ns])
        # hoisted edge-projection slab per round: [wef_e | wer_e], biases folded alongside
        w_edge = w_edge.at[:, r * 2 * M:r * 2 * M + M].set(wef[2 * ns:])
        w_edge = w_edge.at[:, r * 2 * M + M:(r + 1) * 2 * M].set(wer[2 * ns:])
        b_edge = b_edge.at[0, r * 2 * M:r * 2 * M + M].set(p["bef"])
        b_edge = b_edge.at[0, r * 2 * M + M:(r + 1) * 2 * M].set(p["ber"])
    w_aggr = jnp.concatenate([raw["wfm"], raw["wgm"]], axis=1)            # [64, 256]
    b_aggr = jnp.concatenate([raw["bfm"], raw["bgm"]])[None, :]           # [1, 256]
    w_int = jnp.zeros((HG_SIZE, OUT_PAD), jnp.float32).at[:, :OUT_DIM].set(raw["wint"])
    b_int = jnp.zeros((1, OUT_PAD), jnp.float32).at[0, :OUT_DIM].set(raw["bint"])
    return dict(w_node=w_node, b_node=b_node, w_edge=w_edge, b_edge=b_edge,
                w_ih=w_ih, b_ih=b_ih, w_aggr=w_aggr, b_aggr=b_aggr,
                w_int=w_int, b_int=b_int)


def init_params(key):
    kp, ka, kd = jax.random.split(key, 3)
    ns, es = NODE_SIZE, EDGE_SIZE
    rounds = []
    for rk in jax.random.split(kp, ROUNDS):
        k_ef, k_er, k_gru = jax.random.split(rk, 3)
        wef, bef = _linear_params(k_ef, 2 * ns + es, 2 * ns)      # f_ef
        wer, ber = _linear_params(k_er, 2 * ns + es, 2 * ns)      # f_er
        wih, whh, bih, bhh = _gru_params(k_gru, 2 * ns, ns)       # GRUCell(2*ns, ns)
        rounds.append(dict(wef=wef, bef=bef, wer=wer, ber=ber,
                           wih=wih, whh=whh, bih=bih, bhh=bhh))
    k_fm, k_gm = jax.random.split(ka)
    wfm, bfm = _linear_params(k_fm, ns, HG_SIZE)
    wgm, bgm = _linear_params(k_gm, ns, HG_SIZE)
    wint, bint = _linear_params(kd, HG_SIZE, OUT_DIM)
    raw = dict(rounds=rounds, wfm=wfm, bfm=bfm, wgm=wgm, bgm=bgm, wint=wint, bint=bint)
    return raw, pack_params(raw)


# ----------------------------------------------------------------------------
# Pure-JAX f32 reference mirroring the original (unfused) PyTorch math
# ----------------------------------------------------------------------------
def reference_forward(node_vectors, edge_vectors, u_indices, v_indices, raw):
    ns = NODE_SIZE
    n_nodes = node_vectors.shape[0]
    nv = node_vectors
    for p in raw["rounds"]:
        msgs_raw = jnp.concatenate([nv[u_indices], nv[v_indices], edge_vectors], axis=1)
        mf = msgs_raw @ p["wef"] + p["bef"]
        mr = msgs_raw @ p["wer"] + p["ber"]
        agg = jnp.zeros((n_nodes, 2 * ns), jnp.float32)
        agg = agg.at[v_indices].add(mf)        # incoming edges (node is target v)
        agg = agg.at[u_indices].add(mr)        # outgoing edges (node is source u)
        gi = agg @ p["wih"] + p["bih"]
        gh = nv @ p["whh"] + p["bhh"]
        r = jax.nn.sigmoid(gi[:, 0:ns] + gh[:, 0:ns])
        z = jax.nn.sigmoid(gi[:, ns:2 * ns] + gh[:, ns:2 * ns])
        c = jnp.tanh(gi[:, 2 * ns:] + r * gh[:, 2 * ns:])
        nv = (1.0 - z) * c + z * nv
    h_g = jnp.sum((nv @ raw["wfm"] + raw["bfm"]) *
                  jax.nn.sigmoid(nv @ raw["wgm"] + raw["bgm"]), axis=0, keepdims=True)
    return h_g @ raw["wint"] + raw["bint"]


if __name__ == "__main__":
    key = jax.random.PRNGKey(0)
    k_params, k_nodes, k_edges, k_u, k_v = jax.random.split(key, 5)

    N_NODES, N_EDGES = 8, 16
    raw_params, packed_params = init_params(k_params)
    node_vectors = jax.random.normal(k_nodes, (N_NODES, NODE_SIZE), jnp.float32)
    edge_types = jax.random.randint(k_edges, (N_EDGES,), 0, EDGE_SIZE)
    edge_vectors = jax.nn.one_hot(edge_types, EDGE_SIZE, dtype=jnp.float32)  # [E, edge_size]
    u_indices = jax.random.randint(k_u, (N_EDGES,), 0, N_NODES)
    v_indices = jax.random.randint(k_v, (N_EDGES,), 0, N_NODES)

    fwd = jax.jit(interaction_type_forward)
    logits = fwd(node_vectors, edge_vectors, u_indices, v_indices, packed_params)
    jax.block_until_ready(logits)

    assert logits.shape == (1, OUT_DIM), logits.shape
    assert bool(jnp.all(jnp.isfinite(logits)))

    ref = reference_forward(node_vectors, edge_vectors, u_indices, v_indices, raw_params)
    assert bool(jnp.allclose(logits, ref, atol=1e-3, rtol=1e-3)), (logits, ref)

    print("KERNEL_OK")
</pallas_src>

<mosaic_0001>
module attributes {stable_mosaic.version = 11 : i64} {
  func.func @_interaction_kernel(%arg0: memref<8x64xf32, #tpu.memory_space<vmem>>, %arg1: memref<16x8xf32, #tpu.memory_space<vmem>>, %arg2: memref<16x16xf32, #tpu.memory_space<vmem>>, %arg3: memref<8x32xf32, #tpu.memory_space<vmem>>, %arg4: memref<3x64x896xf32, #tpu.memory_space<vmem>>, %arg5: memref<3x1x896xf32, #tpu.memory_space<vmem>>, %arg6: memref<8x768xf32, #tpu.memory_space<vmem>>, %arg7: memref<1x768xf32, #tpu.memory_space<vmem>>, %arg8: memref<3x128x384xf32, #tpu.memory_space<vmem>>, %arg9: memref<3x1x384xf32, #tpu.memory_space<vmem>>, %arg10: memref<64x256xf32, #tpu.memory_space<vmem>>, %arg11: memref<1x256xf32, #tpu.memory_space<vmem>>, %arg12: memref<128x128xf32, #tpu.memory_space<vmem>>, %arg13: memref<1x128xf32, #tpu.memory_space<vmem>>, %arg14: memref<8x128xf32, #tpu.memory_space<vmem>>) attributes {dimension_semantics = [], scalar_prefetch = 0 : i64, scratch_operands = 0 : i64, tpu.core_type = #tpu.core_type<tc>} {
    %c0 = arith.constant 0 : index
    %c0_0 = arith.constant 0 : index
    %0 = vector.load %arg0[%c0, %c0_0] : memref<8x64xf32, #tpu.memory_space<vmem>>, vector<8x64xf32>
    %c0_1 = arith.constant 0 : index
    %c0_2 = arith.constant 0 : index
    %1 = vector.load %arg2[%c0_1, %c0_2] : memref<16x16xf32, #tpu.memory_space<vmem>>, vector<16x16xf32>
    %c0_3 = arith.constant 0 : index
    %c0_4 = arith.constant 0 : index
    %2 = vector.load %arg3[%c0_3, %c0_4] : memref<8x32xf32, #tpu.memory_space<vmem>>, vector<8x32xf32>
    %c0_5 = arith.constant 0 : index
    %c0_6 = arith.constant 0 : index
    %3 = vector.load %arg1[%c0_5, %c0_6] : memref<16x8xf32, #tpu.memory_space<vmem>>, vector<16x8xf32>
    %c0_7 = arith.constant 0 : index
    %c0_8 = arith.constant 0 : index
    %4 = vector.load %arg6[%c0_7, %c0_8] : memref<8x768xf32, #tpu.memory_space<vmem>>, vector<8x768xf32>
    %cst = arith.constant dense<0.000000e+00> : vector<16x768xf32>
    %5 = tpu.matmul %3, %4, %cst {dimension_numbers = #tpu.dot_dimension_numbers<[1], [0], [0], [1], [0, 0, 1, 1], [], []>} : vector<16x8xf32>, vector<8x768xf32>, vector<16x768xf32> -> vector<16x768xf32>
    %c0_9 = arith.constant 0 : index
    %c0_10 = arith.constant 0 : index
    %6 = vector.load %arg7[%c0_9, %c0_10] : memref<1x768xf32, #tpu.memory_space<vmem>>, vector<1x768xf32>
    %7 = vector.broadcast %6 : vector<1x768xf32> to vector<16x768xf32>
    %8 = arith.addf %5, %7 : vector<16x768xf32>
    %c0_11 = arith.constant 0 : index
    %c0_12 = arith.constant 0 : index
    %c0_13 = arith.constant 0 : index
    %9 = vector.load %arg4[%c0_11, %c0_12, %c0_13] : memref<3x64x896xf32, #tpu.memory_space<vmem>>, vector<1x64x896xf32>
    %10 = vector.shape_cast %9 : vector<1x64x896xf32> to vector<64x896xf32>
    %cst_14 = arith.constant dense<0.000000e+00> : vector<8x896xf32>
    %11 = tpu.matmul %0, %10, %cst_14 {dimension_numbers = #tpu.dot_dimension_numbers<[1], [0], [0], [1], [0, 0, 1, 1], [], []>} : vector<8x64xf32>, vector<64x896xf32>, vector<8x896xf32> -> vector<8x896xf32>
    %c0_15 = arith.constant 0 : index
    %c0_16 = arith.constant 0 : index
    %c0_17 = arith.constant 0 : index
    %12 = vector.load %arg5[%c0_15, %c0_16, %c0_17] : memref<3x1x896xf32, #tpu.memory_space<vmem>>, vector<1x1x896xf32>
    %13 = vector.shape_cast %12 : vector<1x1x896xf32> to vector<1x896xf32>
    %14 = vector.broadcast %13 : vector<1x896xf32> to vector<8x896xf32>
    %15 = arith.addf %11, %14 : vector<8x896xf32>
    %16 = vector.extract_strided_slice %15 {offsets = [0, 0], sizes = [8, 256], strides = [1, 1]} : vector<8x896xf32> to vector<8x256xf32>
    %17 = vector.extract_strided_slice %15 {offsets = [0, 256], sizes = [8, 256], strides = [1, 1]} : vector<8x896xf32> to vector<8x256xf32>
    %18 = tpu.concatenate %16, %17 in 0 : vector<8x256xf32>, vector<8x256xf32> -> vector<16x256xf32>
    %cst_18 = arith.constant dense<0.000000e+00> : vector<16x256xf32>
    %19 = tpu.matmul %1, %18, %cst_18 {dimension_numbers = #tpu.dot_dimension_numbers<[1], [0], [0], [1], [0, 0, 1, 1], [], []>} : vector<16x16xf32>, vector<16x256xf32>, vector<16x256xf32> -> vector<16x256xf32>
    %20 = vector.extract_strided_slice %8 {offsets = [0, 0], sizes = [16, 256], strides = [1, 1]} : vector<16x768xf32> to vector<16x256xf32>
    %21 = arith.addf %19, %20 : vector<16x256xf32>
    %22 = vector.extract_strided_slice %21 {offsets = [0, 0], sizes = [16, 128], strides = [1, 1]} : vector<16x256xf32> to vector<16x128xf32>
    %23 = vector.extract_strided_slice %21 {offsets = [0, 128], sizes = [16, 128], strides = [1, 1]} : vector<16x256xf32> to vector<16x128xf32>
    %24 = tpu.concatenate %22, %23 in 0 : vector<16x128xf32>, vector<16x128xf32> -> vector<32x128xf32>
    %cst_19 = arith.constant dense<0.000000e+00> : vector<8x128xf32>
    %25 = tpu.matmul %2, %24, %cst_19 {dimension_numbers = #tpu.dot_dimension_numbers<[1], [0], [0], [1], [0, 0, 1, 1], [], []>} : vector<8x32xf32>, vector<32x128xf32>, vector<8x128xf32> -> vector<8x128xf32>
    %c0_20 = arith.constant 0 : index
    %c0_21 = arith.constant 0 : index
    %c0_22 = arith.constant 0 : index
    %26 = vector.load %arg8[%c0_20, %c0_21, %c0_22] : memref<3x128x384xf32, #tpu.memory_space<vmem>>, vector<1x128x384xf32>
    %27 = vector.shape_cast %26 : vector<1x128x384xf32> to vector<128x384xf32>
    %cst_23 = arith.constant dense<0.000000e+00> : vector<8x384xf32>
    %28 = tpu.matmul %25, %27, %cst_23 {dimension_numbers = #tpu.dot_dimension_numbers<[1], [0], [0], [1], [0, 0, 1, 1], [], []>} : vector<8x128xf32>, vector<128x384xf32>, vector<8x384xf32> -> vector<8x384xf32>
    %c0_24 = arith.constant 0 : index
    %c0_25 = arith.constant 0 : index
    %c0_26 = arith.constant 0 : index
    %29 = vector.load %arg9[%c0_24, %c0_25, %c0_26] : memref<3x1x384xf32, #tpu.memory_space<vmem>>, vector<1x1x384xf32>
    %30 = vector.shape_cast %29 : vector<1x1x384xf32> to vector<1x384xf32>
    %31 = vector.broadcast %30 : vector<1x384xf32> to vector<8x384xf32>
    %32 = arith.addf %28, %31 : vector<8x384xf32>
    %33 = vector.extract_strided_slice %32 {offsets = [0, 0], sizes = [8, 64], strides = [1, 1]} : vector<8x384xf32> to vector<8x64xf32>
    %34 = vector.extract_strided_slice %15 {offsets = [0, 512], sizes = [8, 64], strides = [1, 1]} : vector<8x896xf32> to vector<8x64xf32>
    %35 = arith.addf %33, %34 : vector<8x64xf32>
    %36 = arith.negf %35 : vector<8x64xf32>
    %37 = math.exp %36 : vector<8x64xf32>
    %cst_27 = arith.constant 1.000000e+00 : f32
    %38 = vector.broadcast %cst_27 : f32 to vector<8x64xf32>
    %39 = arith.addf %38, %37 : vector<8x64xf32>
    %40 = arith.divf %38, %39 : vector<8x64xf32>
    %41 = vector.extract_strided_slice %32 {offsets = [0, 128], sizes = [8, 64], strides = [1, 1]} : vector<8x384xf32> to vector<8x64xf32>
    %42 = vector.extract_strided_slice %15 {offsets = [0, 640], sizes = [8, 64], strides = [1, 1]} : vector<8x896xf32> to vector<8x64xf32>
    %43 = arith.addf %41, %42 : vector<8x64xf32>
    %44 = arith.negf %43 : vector<8x64xf32>
    %45 = math.exp %44 : vector<8x64xf32>
    %cst_28 = arith.constant 1.000000e+00 : f32
    %46 = vector.broadcast %cst_28 : f32 to vector<8x64xf32>
    %47 = arith.addf %46, %45 : vector<8x64xf32>
    %48 = arith.divf %46, %47 : vector<8x64xf32>
    %49 = vector.extract_strided_slice %32 {offsets = [0, 256], sizes = [8, 64], strides = [1, 1]} : vector<8x384xf32> to vector<8x64xf32>
    %50 = vector.extract_strided_slice %15 {offsets = [0, 768], sizes = [8, 64], strides = [1, 1]} : vector<8x896xf32> to vector<8x64xf32>
    %51 = arith.mulf %40, %50 : vector<8x64xf32>
    %52 = arith.addf %49, %51 : vector<8x64xf32>
    %53 = math.tanh %52 : vector<8x64xf32>
    %cst_29 = arith.constant 1.000000e+00 : f32
    %54 = vector.broadcast %cst_29 : f32 to vector<8x64xf32>
    %55 = arith.subf %54, %48 : vector<8x64xf32>
    %56 = arith.mulf %55, %53 : vector<8x64xf32>
    %57 = arith.mulf %48, %0 : vector<8x64xf32>
    %58 = arith.addf %56, %57 : vector<8x64xf32>
    %c1 = arith.constant 1 : index
    %c0_30 = arith.constant 0 : index
    %c0_31 = arith.constant 0 : index
    %59 = vector.load %arg4[%c1, %c0_30, %c0_31] : memref<3x64x896xf32, #tpu.memory_space<vmem>>, vector<1x64x896xf32>
    %60 = vector.shape_cast %59 : vector<1x64x896xf32> to vector<64x896xf32>
    %cst_32 = arith.constant dense<0.000000e+00> : vector<8x896xf32>
    %61 = tpu.matmul %58, %60, %cst_32 {dimension_numbers = #tpu.dot_dimension_numbers<[1], [0], [0], [1], [0, 0, 1, 1], [], []>} : vector<8x64xf32>, vector<64x896xf32>, vector<8x896xf32> -> vector<8x896xf32>
    %c1_33 = arith.constant 1 : index
    %c0_34 = arith.constant 0 : index
    %c0_35 = arith.constant 0 : index
    %62 = vector.load %arg5[%c1_33, %c0_34, %c0_35] : memref<3x1x896xf32, #tpu.memory_space<vmem>>, vector<1x1x896xf32>
    %63 = vector.shape_cast %62 : vector<1x1x896xf32> to vector<1x896xf32>
    %64 = vector.broadcast %63 : vector<1x896xf32> to vector<8x896xf32>
    %65 = arith.addf %61, %64 : vector<8x896xf32>
    %66 = vector.extract_strided_slice %65 {offsets = [0, 0], sizes = [8, 256], strides = [1, 1]} : vector<8x896xf32> to vector<8x256xf32>
    %67 = vector.extract_strided_slice %65 {offsets = [0, 256], sizes = [8, 256], strides = [1, 1]} : vector<8x896xf32> to vector<8x256xf32>
    %68 = tpu.concatenate %66, %67 in 0 : vector<8x256xf32>, vector<8x256xf32> -> vector<16x256xf32>
    %cst_36 = arith.constant dense<0.000000e+00> : vector<16x256xf32>
    %69 = tpu.matmul %1, %68, %cst_36 {dimension_numbers = #tpu.dot_dimension_numbers<[1], [0], [0], [1], [0, 0, 1, 1], [], []>} : vector<16x16xf32>, vector<16x256xf32>, vector<16x256xf32> -> vector<16x256xf32>
    %70 = vector.extract_strided_slice %8 {offsets = [0, 256], sizes = [16, 256], strides = [1, 1]} : vector<16x768xf32> to vector<16x256xf32>
    %71 = arith.addf %69, %70 : vector<16x256xf32>
    %72 = vector.extract_strided_slice %71 {offsets = [0, 0], sizes = [16, 128], strides = [1, 1]} : vector<16x256xf32> to vector<16x128xf32>
    %73 = vector.extract_strided_slice %71 {offsets = [0, 128], sizes = [16, 128], strides = [1, 1]} : vector<16x256xf32> to vector<16x128xf32>
    %74 = tpu.concatenate %72, %73 in 0 : vector<16x128xf32>, vector<16x128xf32> -> vector<32x128xf32>
    %cst_37 = arith.constant dense<0.000000e+00> : vector<8x128xf32>
    %75 = tpu.matmul %2, %74, %cst_37 {dimension_numbers = #tpu.dot_dimension_numbers<[1], [0], [0], [1], [0, 0, 1, 1], [], []>} : vector<8x32xf32>, vector<32x128xf32>, vector<8x128xf32> -> vector<8x128xf32>
    %c1_38 = arith.constant 1 : index
    %c0_39 = arith.constant 0 : index
    %c0_40 = arith.constant 0 : index
    %76 = vector.load %arg8[%c1_38, %c0_39, %c0_40] : memref<3x128x384xf32, #tpu.memory_space<vmem>>, vector<1x128x384xf32>
    %77 = vector.shape_cast %76 : vector<1x128x384xf32> to vector<128x384xf32>
    %cst_41 = arith.constant dense<0.000000e+00> : vector<8x384xf32>
    %78 = tpu.matmul %75, %77, %cst_41 {dimension_numbers = #tpu.dot_dimension_numbers<[1], [0], [0], [1], [0, 0, 1, 1], [], []>} : vector<8x128xf32>, vector<128x384xf32>, vector<8x384xf32> -> vector<8x384xf32>
    %c1_42 = arith.constant 1 : index
    %c0_43 = arith.constant 0 : index
    %c0_44 = arith.constant 0 : index
    %79 = vector.load %arg9[%c1_42, %c0_43, %c0_44] : memref<3x1x384xf32, #tpu.memory_space<vmem>>, vector<1x1x384xf32>
    %80 = vector.shape_cast %79 : vector<1x1x384xf32> to vector<1x384xf32>
    %81 = vector.broadcast %80 : vector<1x384xf32> to vector<8x384xf32>
    %82 = arith.addf %78, %81 : vector<8x384xf32>
    %83 = vector.extract_strided_slice %82 {offsets = [0, 0], sizes = [8, 64], strides = [1, 1]} : vector<8x384xf32> to vector<8x64xf32>
    %84 = vector.extract_strided_slice %65 {offsets = [0, 512], sizes = [8, 64], strides = [1, 1]} : vector<8x896xf32> to vector<8x64xf32>
    %85 = arith.addf %83, %84 : vector<8x64xf32>
    %86 = arith.negf %85 : vector<8x64xf32>
    %87 = math.exp %86 : vector<8x64xf32>
    %cst_45 = arith.constant 1.000000e+00 : f32
    %88 = vector.broadcast %cst_45 : f32 to vector<8x64xf32>
    %89 = arith.addf %88, %87 : vector<8x64xf32>
    %90 = arith.divf %88, %89 : vector<8x64xf32>
    %91 = vector.extract_strided_slice %82 {offsets = [0, 128], sizes = [8, 64], strides = [1, 1]} : vector<8x384xf32> to vector<8x64xf32>
    %92 = vector.extract_strided_slice %65 {offsets = [0, 640], sizes = [8, 64], strides = [1, 1]} : vector<8x896xf32> to vector<8x64xf32>
    %93 = arith.addf %91, %92 : vector<8x64xf32>
    %94 = arith.negf %93 : vector<8x64xf32>
    %95 = math.exp %94 : vector<8x64xf32>
    %cst_46 = arith.constant 1.000000e+00 : f32
    %96 = vector.broadcast %cst_46 : f32 to vector<8x64xf32>
    %97 = arith.addf %96, %95 : vector<8x64xf32>
    %98 = arith.divf %96, %97 : vector<8x64xf32>
    %99 = vector.extract_strided_slice %82 {offsets = [0, 256], sizes = [8, 64], strides = [1, 1]} : vector<8x384xf32> to vector<8x64xf32>
    %100 = vector.extract_strided_slice %65 {offsets = [0, 768], sizes = [8, 64], strides = [1, 1]} : vector<8x896xf32> to vector<8x64xf32>
    %101 = arith.mulf %90, %100 : vector<8x64xf32>
    %102 = arith.addf %99, %101 : vector<8x64xf32>
    %103 = math.tanh %102 : vector<8x64xf32>
    %cst_47 = arith.constant 1.000000e+00 : f32
    %104 = vector.broadcast %cst_47 : f32 to vector<8x64xf32>
    %105 = arith.subf %104, %98 : vector<8x64xf32>
    %106 = arith.mulf %105, %103 : vector<8x64xf32>
    %107 = arith.mulf %98, %58 : vector<8x64xf32>
    %108 = arith.addf %106, %107 : vector<8x64xf32>
    %c2 = arith.constant 2 : index
    %c0_48 = arith.constant 0 : index
    %c0_49 = arith.constant 0 : index
    %109 = vector.load %arg4[%c2, %c0_48, %c0_49] : memref<3x64x896xf32, #tpu.memory_space<vmem>>, vector<1x64x896xf32>
    %110 = vector.shape_cast %109 : vector<1x64x896xf32> to vector<64x896xf32>
    %cst_50 = arith.constant dense<0.000000e+00> : vector<8x896xf32>
    %111 = tpu.matmul %108, %110, %cst_50 {dimension_numbers = #tpu.dot_dimension_numbers<[1], [0], [0], [1], [0, 0, 1, 1], [], []>} : vector<8x64xf32>, vector<64x896xf32>, vector<8x896xf32> -> vector<8x896xf32>
    %c2_51 = arith.constant 2 : index
    %c0_52 = arith.constant 0 : index
    %c0_53 = arith.constant 0 : index
    %112 = vector.load %arg5[%c2_51, %c0_52, %c0_53] : memref<3x1x896xf32, #tpu.memory_space<vmem>>, vector<1x1x896xf32>
    %113 = vector.shape_cast %112 : vector<1x1x896xf32> to vector<1x896xf32>
    %114 = vector.broadcast %113 : vector<1x896xf32> to vector<8x896xf32>
    %115 = arith.addf %111, %114 : vector<8x896xf32>
    %116 = vector.extract_strided_slice %115 {offsets = [0, 0], sizes = [8, 256], strides = [1, 1]} : vector<8x896xf32> to vector<8x256xf32>
    %117 = vector.extract_strided_slice %115 {offsets = [0, 256], sizes = [8, 256], strides = [1, 1]} : vector<8x896xf32> to vector<8x256xf32>
    %118 = tpu.concatenate %116, %117 in 0 : vector<8x256xf32>, vector<8x256xf32> -> vector<16x256xf32>
    %cst_54 = arith.constant dense<0.000000e+00> : vector<16x256xf32>
    %119 = tpu.matmul %1, %118, %cst_54 {dimension_numbers = #tpu.dot_dimension_numbers<[1], [0], [0], [1], [0, 0, 1, 1], [], []>} : vector<16x16xf32>, vector<16x256xf32>, vector<16x256xf32> -> vector<16x256xf32>
    %120 = vector.extract_strided_slice %8 {offsets = [0, 512], sizes = [16, 256], strides = [1, 1]} : vector<16x768xf32> to vector<16x256xf32>
    %121 = arith.addf %119, %120 : vector<16x256xf32>
    %122 = vector.extract_strided_slice %121 {offsets = [0, 0], sizes = [16, 128], strides = [1, 1]} : vector<16x256xf32> to vector<16x128xf32>
    %123 = vector.extract_strided_slice %121 {offsets = [0, 128], sizes = [16, 128], strides = [1, 1]} : vector<16x256xf32> to vector<16x128xf32>
    %124 = tpu.concatenate %122, %123 in 0 : vector<16x128xf32>, vector<16x128xf32> -> vector<32x128xf32>
    %cst_55 = arith.constant dense<0.000000e+00> : vector<8x128xf32>
    %125 = tpu.matmul %2, %124, %cst_55 {dimension_numbers = #tpu.dot_dimension_numbers<[1], [0], [0], [1], [0, 0, 1, 1], [], []>} : vector<8x32xf32>, vector<32x128xf32>, vector<8x128xf32> -> vector<8x128xf32>
    %c2_56 = arith.constant 2 : index
    %c0_57 = arith.constant 0 : index
    %c0_58 = arith.constant 0 : index
    %126 = vector.load %arg8[%c2_56, %c0_57, %c0_58] : memref<3x128x384xf32, #tpu.memory_space<vmem>>, vector<1x128x384xf32>
    %127 = vector.shape_cast %126 : vector<1x128x384xf32> to vector<128x384xf32>
    %cst_59 = arith.constant dense<0.000000e+00> : vector<8x384xf32>
    %128 = tpu.matmul %125, %127, %cst_59 {dimension_numbers = #tpu.dot_dimension_numbers<[1], [0], [0], [1], [0, 0, 1, 1], [], []>} : vector<8x128xf32>, vector<128x384xf32>, vector<8x384xf32> -> vector<8x384xf32>
    %c2_60 = arith.constant 2 : index
    %c0_61 = arith.constant 0 : index
    %c0_62 = arith.constant 0 : index
    %129 = vector.load %arg9[%c2_60, %c0_61, %c0_62] : memref<3x1x384xf32, #tpu.memory_space<vmem>>, vector<1x1x384xf32>
    %130 = vector.shape_cast %129 : vector<1x1x384xf32> to vector<1x384xf32>
    %131 = vector.broadcast %130 : vector<1x384xf32> to vector<8x384xf32>
    %132 = arith.addf %128, %131 : vector<8x384xf32>
    %133 = vector.extract_strided_slice %132 {offsets = [0, 0], sizes = [8, 64], strides = [1, 1]} : vector<8x384xf32> to vector<8x64xf32>
    %134 = vector.extract_strided_slice %115 {offsets = [0, 512], sizes = [8, 64], strides = [1, 1]} : vector<8x896xf32> to vector<8x64xf32>
    %135 = arith.addf %133, %134 : vector<8x64xf32>
    %136 = arith.negf %135 : vector<8x64xf32>
    %137 = math.exp %136 : vector<8x64xf32>
    %cst_63 = arith.constant 1.000000e+00 : f32
    %138 = vector.broadcast %cst_63 : f32 to vector<8x64xf32>
    %139 = arith.addf %138, %137 : vector<8x64xf32>
    %140 = arith.divf %138, %139 : vector<8x64xf32>
    %141 = vector.extract_strided_slice %132 {offsets = [0, 128], sizes = [8, 64], strides = [1, 1]} : vector<8x384xf32> to vector<8x64xf32>
    %142 = vector.extract_strided_slice %115 {offsets = [0, 640], sizes = [8, 64], strides = [1, 1]} : vector<8x896xf32> to vector<8x64xf32>
    %143 = arith.addf %141, %142 : vector<8x64xf32>
    %144 = arith.negf %143 : vector<8x64xf32>
    %145 = math.exp %144 : vector<8x64xf32>
    %cst_64 = arith.constant 1.000000e+00 : f32
    %146 = vector.broadcast %cst_64 : f32 to vector<8x64xf32>
    %147 = arith.addf %146, %145 : vector<8x64xf32>
    %148 = arith.divf %146, %147 : vector<8x64xf32>
    %149 = vector.extract_strided_slice %132 {offsets = [0, 256], sizes = [8, 64], strides = [1, 1]} : vector<8x384xf32> to vector<8x64xf32>
    %150 = vector.extract_strided_slice %115 {offsets = [0, 768], sizes = [8, 64], strides = [1, 1]} : vector<8x896xf32> to vector<8x64xf32>
    %151 = arith.mulf %140, %150 : vector<8x64xf32>
    %152 = arith.addf %149, %151 : vector<8x64xf32>
    %153 = math.tanh %152 : vector<8x64xf32>
    %cst_65 = arith.constant 1.000000e+00 : f32
    %154 = vector.broadcast %cst_65 : f32 to vector<8x64xf32>
    %155 = arith.subf %154, %148 : vector<8x64xf32>
    %156 = arith.mulf %155, %153 : vector<8x64xf32>
    %157 = arith.mulf %148, %108 : vector<8x64xf32>
    %158 = arith.addf %156, %157 : vector<8x64xf32>
    %c0_66 = arith.constant 0 : index
    %c0_67 = arith.constant 0 : index
    %159 = vector.load %arg10[%c0_66, %c0_67] : memref<64x256xf32, #tpu.memory_space<vmem>>, vector<64x256xf32>
    %cst_68 = arith.constant dense<0.000000e+00> : vector<8x256xf32>
    %160 = tpu.matmul %158, %159, %cst_68 {dimension_numbers = #tpu.dot_dimension_numbers<[1], [0], [0], [1], [0, 0, 1, 1], [], []>} : vector<8x64xf32>, vector<64x256xf32>, vector<8x256xf32> -> vector<8x256xf32>
    %c0_69 = arith.constant 0 : index
    %c0_70 = arith.constant 0 : index
    %161 = vector.load %arg11[%c0_69, %c0_70] : memref<1x256xf32, #tpu.memory_space<vmem>>, vector<1x256xf32>
    %162 = vector.broadcast %161 : vector<1x256xf32> to vector<8x256xf32>
    %163 = arith.addf %160, %162 : vector<8x256xf32>
    %164 = vector.extract_strided_slice %163 {offsets = [0, 0], sizes = [8, 128], strides = [1, 1]} : vector<8x256xf32> to vector<8x128xf32>
    %165 = vector.extract_strided_slice %163 {offsets = [0, 128], sizes = [8, 128], strides = [1, 1]} : vector<8x256xf32> to vector<8x128xf32>
    %166 = arith.negf %165 : vector<8x128xf32>
    %167 = math.exp %166 : vector<8x128xf32>
    %cst_71 = arith.constant 1.000000e+00 : f32
    %168 = vector.broadcast %cst_71 : f32 to vector<8x128xf32>
    %169 = arith.addf %168, %167 : vector<8x128xf32>
    %170 = arith.divf %168, %169 : vector<8x128xf32>
    %171 = arith.mulf %164, %170 : vector<8x128xf32>
    %cst_72 = arith.constant dense<0.000000e+00> : vector<128xf32>
    %172 = vector.multi_reduction <add>, %171, %cst_72 [0] : vector<8x128xf32> to vector<128xf32>
    %173 = vector.shape_cast %172 : vector<128xf32> to vector<1x128xf32>
    %c0_73 = arith.constant 0 : index
    %c0_74 = arith.constant 0 : index
    %174 = vector.load %arg12[%c0_73, %c0_74] : memref<128x128xf32, #tpu.memory_space<vmem>>, vector<128x128xf32>
    %cst_75 = arith.constant dense<0.000000e+00> : vector<1x128xf32>
    %175 = tpu.matmul %173, %174, %cst_75 {dimension_numbers = #tpu.dot_dimension_numbers<[1], [0], [0], [1], [0, 0, 1, 1], [], []>} : vector<1x128xf32>, vector<128x128xf32>, vector<1x128xf32> -> vector<1x128xf32>
    %c0_76 = arith.constant 0 : index
    %c0_77 = arith.constant 0 : index
    %176 = vector.load %arg13[%c0_76, %c0_77] : memref<1x128xf32, #tpu.memory_space<vmem>>, vector<1x128xf32>
    %177 = arith.addf %175, %176 : vector<1x128xf32>
    %178 = vector.shape_cast %177 : vector<1x128xf32> to vector<1x128xf32>
    %179 = vector.broadcast %178 : vector<1x128xf32> to vector<8x128xf32>
    %c0_78 = arith.constant 0 : index
    %c0_79 = arith.constant 0 : index
    %180 = vector.load %arg14[%c0_78, %c0_79] : memref<8x128xf32, #tpu.memory_space<vmem>>, vector<8x128xf32>
    tpu.vector_store %arg14[%c0_78, %c0_79], %179 {strides = array<i32>} : memref<8x128xf32, #tpu.memory_space<vmem>>, vector<8x128xf32>,
    return
  }
}

</mosaic_0001>

<llo_original>
// kernel: interaction_type_forward.1
$region0: #{interaction_type_forward.1}
  #allocation0 [shape = 'u32[]', space=smem, size = 0x4, offset = 0x4, fixed_abs, tag = 'smem constant byte address 0x4 - core index']
  #allocation1 [shape = 'u32[144,128]{1,0:T(1,128)}', space=vmem, size = 0x12000, scoped, tag = 'internal scratch']
  %s0 = inlined_call_operand.hbm [shape: f32[8,64], index: 0, kind: input, shape index: {}]
  %s1 = inlined_call_operand.vmem [shape: f32[16,8], index: 1, kind: input, shape index: {}]
  %s2 = inlined_call_operand.vmem [shape: f32[16,16], index: 2, kind: input, shape index: {}]
  %s3 = inlined_call_operand.vmem [shape: f32[8,32], index: 3, kind: input, shape index: {}]
  %s4 = inlined_call_operand.hbm [shape: f32[3,64,896], index: 4, kind: input, shape index: {}]
  %s5 = inlined_call_operand.hbm [shape: f32[3,1,896], index: 5, kind: input, shape index: {}]
  %s6 = inlined_call_operand.hbm [shape: f32[8,768], index: 6, kind: input, shape index: {}]
  %s7 = inlined_call_operand.hbm [shape: f32[1,768], index: 7, kind: input, shape index: {}]
  %s8 = inlined_call_operand.hbm [shape: f32[3,128,384], index: 8, kind: input, shape index: {}]
  %s9 = inlined_call_operand.hbm [shape: f32[3,1,384], index: 9, kind: input, shape index: {}]
  %s10 = inlined_call_operand.hbm [shape: f32[64,256], index: 10, kind: input, shape index: {}]
  %s11 = inlined_call_operand.hbm [shape: f32[1,256], index: 11, kind: input, shape index: {}]
  %s12 = inlined_call_operand.vmem [shape: f32[128,128], index: 12, kind: input, shape index: {}]
  %s13 = inlined_call_operand.hbm [shape: f32[1,128], index: 13, kind: input, shape index: {}]
  %s14 = inlined_call_operand.vmem [shape: f32[8,128], index: 14, kind: output, shape index: {}]
  %s15 = sld [smem:[#allocation0]]
  $region106: #{interaction_type_forward.1} parent=0
    _
  %s17 = ssub.s32 1, %s15
  %s18 = scalar_select 0, %s17, %s15
  $region1: #{interaction_type_forward.1} parent=0
    #allocation2 [shape = 'u8[4096]{0}', space=vmem, size = 0x1000, scoped, tag = 'input window, operand 0, single buffered']
    #allocation3 [shape = 's32[1]{0}', space=sflag, size = 0x4, scoped, tag = 'scoped memory for interaction_type_forward.1']
    #allocation4 [shape = 'u8[688128]{0}', space=vmem, size = 0xa8000, scoped, tag = 'input window, operand 4, single buffered']
    #allocation5 [shape = 's32[1]{0}', space=sflag, size = 0x4, scoped, tag = 'scoped memory for interaction_type_forward.1']
    #allocation6 [shape = 'u8[10752]{0}', space=vmem, size = 0x2c00, scoped, tag = 'input window, operand 5, single buffered']
    #allocation7 [shape = 'u8[24576]{0}', space=vmem, size = 0x6000, scoped, tag = 'input window, operand 6, single buffered']
    #allocation8 [shape = 's32[1]{0}', space=sflag, size = 0x4, scoped, tag = 'scoped memory for interaction_type_forward.1']
    #allocation9 [shape = 'u8[3072]{0}', space=vmem, size = 0xc00, scoped, tag = 'input window, operand 7, single buffered']
    #allocation10 [shape = 'u8[589824]{0}', space=vmem, size = 0x90000, scoped, tag = 'input window, operand 8, single buffered']
    #allocation11 [shape = 's32[1]{0}', space=sflag, size = 0x4, scoped, tag = 'scoped memory for interaction_type_forward.1']
    #allocation12 [shape = 'u8[4608]{0}', space=vmem, size = 0x1400, scoped, tag = 'input window, operand 9, single buffered']
    #allocation13 [shape = 'u8[65536]{0}', space=vmem, size = 0x10000, scoped, tag = 'input window, operand 10, single buffered']
    #allocation14 [shape = 's32[1]{0}', space=sflag, size = 0x4, scoped, tag = 'scoped memory for interaction_type_forward.1']
    #allocation15 [shape = 'u8[1024]{0}', space=vmem, size = 0x400, scoped, tag = 'input window, operand 11, single buffered']
    #allocation16 [shape = 'u8[512]{0}', space=vmem, size = 0x400, scoped, tag = 'input window, operand 13, single buffered']
    #allocation17 [shape = 's32[1]{0}', space=sflag, size = 0x4, scoped, tag = 'scoped memory for interaction_type_forward.1']
    %19 = vsyncpa [#allocation3], 0
    %20 = vsyncpa [#allocation5], 0
    %21 = vsyncpa [#allocation8], 0
    %22 = vsyncpa [#allocation11], 0
    %23 = vsyncpa [#allocation14], 0
    %24 = vsyncpa [#allocation17], 0
    // Predicated region
    $region2: #{interaction_type_forward.1} parent=1 // pred_check
      _
    $region3: #{interaction_type_forward.1} parent=1 // pred_check_branch
      %26 = sbr.rel (0) target = $region5
    $region4: #{interaction_type_forward.1} parent=1 // pred_region
      %s28 = ssub.s32 128, 128
      %29 = vsyncadd [#allocation3], %s28
      %s31 = sshll.u32 [#allocation2], 4
      %s32 = int_to_ptr.vmem [resolvable:$true] %s31
      %34 = dma.hbm_to_vmem [thread:$0]  %s0, 128, %s32, [#allocation3]
    $region5: #{interaction_type_forward.1} parent=1 // pred_fallthru
      _
    // Predicated region
    $region6: #{interaction_type_forward.1} parent=1 // pred_check
      _
    $region7: #{interaction_type_forward.1} parent=1 // pred_check_branch
      %36 = sbr.rel (0) target = $region9
    $region8: #{interaction_type_forward.1} parent=1 // pred_region
      _
    $region9: #{interaction_type_forward.1} parent=1 // pred_fallthru
      _
    // Predicated region
    $region10: #{interaction_type_forward.1} parent=1 // pred_check
      _
    $region11: #{interaction_type_forward.1} parent=1 // pred_check_branch
      %38 = sbr.rel (0) target = $region13
    $region12: #{interaction_type_forward.1} parent=1 // pred_region
      _
    $region13: #{interaction_type_forward.1} parent=1 // pred_fallthru
      _
    // Predicated region
    $region14: #{interaction_type_forward.1} parent=1 // pred_check
      _
    $region15: #{interaction_type_forward.1} parent=1 // pred_check_branch
      %40 = sbr.rel (0) target = $region17
    $region16: #{interaction_type_forward.1} parent=1 // pred_region
      _
    $region17: #{interaction_type_forward.1} parent=1 // pred_fallthru
      _
    // Predicated region
    $region18: #{interaction_type_forward.1} parent=1 // pred_check
      _
    $region19: #{interaction_type_forward.1} parent=1 // pred_check_branch
      %42 = sbr.rel (0) target = $region21
    $region20: #{interaction_type_forward.1} parent=1 // pred_region
      %s44 = ssub.s32 21504, 21504
      %45 = vsyncadd [#allocation5], %s44
      %s46 = sshll.u32 [#allocation4], 4
      %s47 = int_to_ptr.vmem [resolvable:$true] %s46
      %52 = dma.hbm_to_vmem [thread:$0]  %s4, 21504, %s47, [#allocation5], 896, 896, 56
    $region21: #{interaction_type_forward.1} parent=1 // pred_fallthru
      _
    // Predicated region
    $region22: #{interaction_type_forward.1} parent=1 // pred_check
      _
    $region23: #{interaction_type_forward.1} parent=1 // pred_check_branch
      %54 = sbr.rel (0) target = $region25
    $region24: #{interaction_type_forward.1} parent=1 // pred_region
      %s56 = ssub.s32 336, 336
      %57 = vsyncadd [#allocation5], %s56
      %s58 = sshll.u32 [#allocation6], 4
      %s59 = int_to_ptr.vmem [resolvable:$true] %s58
      %64 = dma.hbm_to_vmem [thread:$0]  %s5, 336, %s59, [#allocation5], 112, 112, 7
    $region25: #{interaction_type_forward.1} parent=1 // pred_fallthru
      _
    // Predicated region
    $region26: #{interaction_type_forward.1} parent=1 // pred_check
      _
    $region27: #{interaction_type_forward.1} parent=1 // pred_check_branch
      %66 = sbr.rel (0) target = $region29
    $region28: #{interaction_type_forward.1} parent=1 // pred_region
      %s68 = ssub.s32 768, 768
      %69 = vsyncadd [#allocation8], %s68
      %s71 = sshll.u32 [#allocation7], 4
      %s72 = int_to_ptr.vmem [resolvable:$true] %s71
      %74 = dma.hbm_to_vmem [thread:$0]  %s6, 768, %s72, [#allocation8]
    $region29: #{interaction_type_forward.1} parent=1 // pred_fallthru
      _
    // Predicated region
    $region30: #{interaction_type_forward.1} parent=1 // pred_check
      _
    $region31: #{interaction_type_forward.1} parent=1 // pred_check_branch
      %76 = sbr.rel (0) target = $region33
    $region32: #{interaction_type_forward.1} parent=1 // pred_region
      %s78 = ssub.s32 96, 96
      %79 = vsyncadd [#allocation8], %s78
      %s81 = sshll.u32 [#allocation9], 4
      %s82 = int_to_ptr.vmem [resolvable:$true] %s81
      %84 = dma.hbm_to_vmem [thread:$0]  %s7, 96, %s82, [#allocation8]
    $region33: #{interaction_type_forward.1} parent=1 // pred_fallthru
      _
    // Predicated region
    $region34: #{interaction_type_forward.1} parent=1 // pred_check
      _
    $region35: #{interaction_type_forward.1} parent=1 // pred_check_branch
      %86 = sbr.rel (0) target = $region37
    $region36: #{interaction_type_forward.1} parent=1 // pred_region
      %s88 = ssub.s32 18432, 18432
      %89 = vsyncadd [#allocation11], %s88
      %s90 = sshll.u32 [#allocation10], 4
      %s91 = int_to_ptr.vmem [resolvable:$true] %s90
      %96 = dma.hbm_to_vmem [thread:$0]  %s8, 18432, %s91, [#allocation11], 384, 384, 24
    $region37: #{interaction_type_forward.1} parent=1 // pred_fallthru
      _
    // Predicated region
    $region38: #{interaction_type_forward.1} parent=1 // pred_check
      _
    $region39: #{interaction_type_forward.1} parent=1 // pred_check_branch
      %98 = sbr.rel (0) target = $region41
    $region40: #{interaction_type_forward.1} parent=1 // pred_region
      %s100 = ssub.s32 144, 144
      %101 = vsyncadd [#allocation11], %s100
      %s102 = sshll.u32 [#allocation12], 4
      %s103 = int_to_ptr.vmem [resolvable:$true] %s102
      %108 = dma.hbm_to_vmem [thread:$0]  %s9, 144, %s103, [#allocation11], 48, 48, 3
    $region41: #{interaction_type_forward.1} parent=1 // pred_fallthru
      _
    // Predicated region
    $region42: #{interaction_type_forward.1} parent=1 // pred_check
      _
    $region43: #{interaction_type_forward.1} parent=1 // pred_check_branch
      %110 = sbr.rel (0) target = $region45
    $region44: #{interaction_type_forward.1} parent=1 // pred_region
      %s112 = ssub.s32 2048, 2048
      %113 = vsyncadd [#allocation14], %s112
      %s114 = sshll.u32 [#allocation13], 4
      %s115 = int_to_ptr.vmem [resolvable:$true] %s114
      %120 = dma.hbm_to_vmem [thread:$0]  %s10, 2048, %s115, [#allocation14], 256, 256, 16
    $region45: #{interaction_type_forward.1} parent=1 // pred_fallthru
      _
    // Predicated region
    $region46: #{interaction_type_forward.1} parent=1 // pred_check
      _
    $region47: #{interaction_type_forward.1} parent=1 // pred_check_branch
      %122 = sbr.rel (0) target = $region49
    $region48: #{interaction_type_forward.1} parent=1 // pred_region
      %s124 = ssub.s32 32, 32
      %125 = vsyncadd [#allocation14], %s124
      %s127 = sshll.u32 [#allocation15], 4
      %s128 = int_to_ptr.vmem [resolvable:$true] %s127
      %130 = dma.hbm_to_vmem [thread:$0]  %s11, 32, %s128, [#allocation14]
    $region49: #{interaction_type_forward.1} parent=1 // pred_fallthru
      _
    // Predicated region
    $region50: #{interaction_type_forward.1} parent=1 // pred_check
      _
    $region51: #{interaction_type_forward.1} parent=1 // pred_check_branch
      %132 = sbr.rel (0) target = $region53
    $region52: #{interaction_type_forward.1} parent=1 // pred_region
      _
    $region53: #{interaction_type_forward.1} parent=1 // pred_fallthru
      _
    // Predicated region
    $region54: #{interaction_type_forward.1} parent=1 // pred_check
      _
    $region55: #{interaction_type_forward.1} parent=1 // pred_check_branch
      %134 = sbr.rel (0) target = $region57
    $region56: #{interaction_type_forward.1} parent=1 // pred_region
      %s136 = ssub.s32 16, 16
      %137 = vsyncadd [#allocation17], %s136
      %s139 = sshll.u32 [#allocation16], 4
      %s140 = int_to_ptr.vmem [resolvable:$true] %s139
      %142 = dma.hbm_to_vmem [thread:$0]  %s13, 16, %s140, [#allocation17]
    $region57: #{interaction_type_forward.1} parent=1 // pred_fallthru
      _
    // Predicated region
    $region58: #{interaction_type_forward.1} parent=1 // pred_check
      _
    $region59: #{interaction_type_forward.1} parent=1 // pred_check_branch
      %144 = sbr.rel (0) target = $region61
    $region60: #{interaction_type_forward.1} parent=1 // pred_region
      %145 = dma.done [#allocation3], 128
    $region61: #{interaction_type_forward.1} parent=1 // pred_fallthru
      _
    // Predicated region
    $region62: #{interaction_type_forward.1} parent=1 // pred_check
      _
    $region63: #{interaction_type_forward.1} parent=1 // pred_check_branch
      %147 = sbr.rel (0) target = $region65
    $region64: #{interaction_type_forward.1} parent=1 // pred_region
      %148 = dma.done [#allocation5], 21504
    $region65: #{interaction_type_forward.1} parent=1 // pred_fallthru
      _
    // Predicated region
    $region66: #{interaction_type_forward.1} parent=1 // pred_check
      _
    $region67: #{interaction_type_forward.1} parent=1 // pred_check_branch
      %150 = sbr.rel (0) target = $region69
    $region68: #{interaction_type_forward.1} parent=1 // pred_region
      %151 = dma.done [#allocation5], 336
    $region69: #{interaction_type_forward.1} parent=1 // pred_fallthru
      _
    // Predicated region
    $region70: #{interaction_type_forward.1} parent=1 // pred_check
      _
    $region71: #{interaction_type_forward.1} parent=1 // pred_check_branch
      %153 = sbr.rel (0) target = $region73
    $region72: #{interaction_type_forward.1} parent=1 // pred_region
      %154 = dma.done [#allocation8], 768
    $region73: #{interaction_type_forward.1} parent=1 // pred_fallthru
      _
    // Predicated region
    $region74: #{interaction_type_forward.1} parent=1 // pred_check
      _
    $region75: #{interaction_type_forward.1} parent=1 // pred_check_branch
      %156 = sbr.rel (0) target = $region77
    $region76: #{interaction_type_forward.1} parent=1 // pred_region
      %157 = dma.done [#allocation8], 96
    $region77: #{interaction_type_forward.1} parent=1 // pred_fallthru
      _
    // Predicated region
    $region78: #{interaction_type_forward.1} parent=1 // pred_check
      _
    $region79: #{interaction_type_forward.1} parent=1 // pred_check_branch
      %159 = sbr.rel (0) target = $region81
    $region80: #{interaction_type_forward.1} parent=1 // pred_region
      %160 = dma.done [#allocation11], 18432
    $region81: #{interaction_type_forward.1} parent=1 // pred_fallthru
      _
    // Predicated region
    $region82: #{interaction_type_forward.1} parent=1 // pred_check
      _
    $region83: #{interaction_type_forward.1} parent=1 // pred_check_branch
      %162 = sbr.rel (0) target = $region85
    $region84: #{interaction_type_forward.1} parent=1 // pred_region
      %163 = dma.done [#allocation11], 144
    $region85: #{interaction_type_forward.1} parent=1 // pred_fallthru
      _
    // Predicated region
    $region86: #{interaction_type_forward.1} parent=1 // pred_check
      _
    $region87: #{interaction_type_forward.1} parent=1 // pred_check_branch
      %165 = sbr.rel (0) target = $region89
    $region88: #{interaction_type_forward.1} parent=1 // pred_region
      %166 = dma.done [#allocation14], 2048
    $region89: #{interaction_type_forward.1} parent=1 // pred_fallthru
      _
    // Predicated region
    $region90: #{interaction_type_forward.1} parent=1 // pred_check
      _
    $region91: #{interaction_type_forward.1} parent=1 // pred_check_branch
      %168 = sbr.rel (0) target = $region93
    $region92: #{interaction_type_forward.1} parent=1 // pred_region
      %169 = dma.done [#allocation14], 32
    $region93: #{interaction_type_forward.1} parent=1 // pred_fallthru
      _
    // Predicated region
    $region94: #{interaction_type_forward.1} parent=1 // pred_check
      _
    $region95: #{interaction_type_forward.1} parent=1 // pred_check_branch
      %171 = sbr.rel (0) target = $region97
    $region96: #{interaction_type_forward.1} parent=1 // pred_region
      %172 = dma.done [#allocation17], 16
    $region97: #{interaction_type_forward.1} parent=1 // pred_fallthru
      _
    %v173 = vld [vmem:[#allocation2] sm:$0xff]
    %v174 = vld [vmem:[%s2] sm:$0xff]
    %v175 = vld [vmem:[%s2 + $0x8] sm:$0xff]
    %v176 = vld [vmem:[%s3] sm:$0xff]
    %v177 = vld [vmem:[%s1] sm:$0xff]
    %v178 = vld [vmem:[%s1 + $0x8] sm:$0xff]
    %v179 = vld [vmem:[#allocation7] sm:$0xff]
    %v180 = vld [vmem:[#allocation7 + $0x8] sm:$0xff]
    %v181 = vld [vmem:[#allocation7 + $0x10] sm:$0xff]
    %v182 = vld [vmem:[#allocation7 + $0x18] sm:$0xff]
    %v183 = vld [vmem:[#allocation7 + $0x20] sm:$0xff]
    %v184 = vld [vmem:[#allocation7 + $0x28] sm:$0xff]
    %v185 = vld [vmem:[#allocation9] sm:$0x3f]
    %v187 = vlaneseq
    %v188 = vshrl.u32 %v187, 7
    %v189 = vsub.s32 0, %v188
    %v190 = vrot.slane %v185, %v189
    %v191 = vlaneseq
    %v192 = vshrl.u32 %v191, 7
    %v193 = vsub.s32 1, %v192
    %v194 = vrot.slane %v185, %v193
    %v195 = vlaneseq
    %v196 = vshrl.u32 %v195, 7
    %v197 = vsub.s32 2, %v196
    %v198 = vrot.slane %v185, %v197
    %v199 = vlaneseq
    %v200 = vshrl.u32 %v199, 7
    %v201 = vsub.s32 3, %v200
    %v202 = vrot.slane %v185, %v201
    %v203 = vlaneseq
    %v204 = vshrl.u32 %v203, 7
    %v205 = vsub.s32 4, %v204
    %v206 = vrot.slane %v185, %v205
    %v207 = vlaneseq
    %v208 = vshrl.u32 %v207, 7
    %v209 = vsub.s32 5, %v208
    %v210 = vrot.slane %v185, %v209
    %vm217 = vcmask 64512
    %v219 = vsel %vm217, %v177, 0
    %v222 = vsel %vm217, %v178, 0
    %224 = vmatprep.subr.mxu0 %v180
    %225 = vmatpush1.msra.mxu0 %v179
    %226 = vmatprep.subr.mxu0 0.0
    %227 = vmatpush1.msra.mxu0 0.0
    %228 = vmatprep.subr.mxu0 0.0
    %229 = vmatpush1.msra.mxu0 0.0
    %230 = vmatprep.subr.mxu0 0.0
    %231 = vmatpush1.msra.mxu0 0.0
    %232 = vmatprep.subr.mxu0 0.0
    %233 = vmatpush1.msra.mxu0 0.0
    %234 = vmatprep.subr.mxu0 0.0
    %235 = vmatpush1.msra.mxu0 0.0
    %236 = vmatprep.subr.mxu0 0.0
    %237 = vmatpush1.msra.mxu0 0.0
    %238 = vmatprep.subr.mxu0 0.0
    %239 = vmatpush1.msra.mxu0 0.0
    %240 = vmatprep.subr.mxu0 0.0
    %241 = vmatpush1.msra.mxu0 0.0
    %242 = vmatprep.subr.mxu0 0.0
    %243 = vmatpush1.msra.mxu0 0.0
    %244 = vmatprep.subr.mxu0 0.0
    %245 = vmatpush1.msra.mxu0 0.0
    %246 = vmatprep.subr.mxu0 0.0
    %247 = vmatpush1.msra.mxu0 0.0
    %248 = vmatprep.subr.mxu0 0.0
    %249 = vmatpush1.msra.mxu0 0.0
    %250 = vmatprep.subr.mxu0 0.0
    %251 = vmatpush1.msra.mxu0 0.0
    %252 = vmatprep.subr.mxu0 0.0
    %253 = vmatpush1.msra.mxu0 0.0
    %254 = vmatprep.subr.mxu0 0.0
    %255 = vmatpush1.msra.mxu0 0.0
    %256 = vmatprep.subr.mxu0 0.0
    %257 = vmatpush1.msra.mxu0 0.0
    %258 = vmatprep.subr.mxu0 0.0
    %259 = vmatpush1.msra.mxu0 0.0
    %260 = vmatprep.subr.mxu0 0.0
    %261 = vmatpush1.msra.mxu0 0.0
    %262 = vmatprep.subr.mxu0 0.0
    %263 = vmatpush1.msra.mxu0 0.0
    %264 = vmatprep.subr.mxu0 0.0
    %265 = vmatpush1.msra.mxu0 0.0
    %266 = vmatprep.subr.mxu0 0.0
    %267 = vmatpush1.msra.mxu0 0.0
    %268 = vmatprep.subr.mxu0 0.0
    %269 = vmatpush1.msra.mxu0 0.0
    %270 = vmatprep.subr.mxu0 0.0
    %271 = vmatpush1.msra.mxu0 0.0
    %272 = vmatprep.subr.mxu0 0.0
    %273 = vmatpush1.msra.mxu0 0.0
    %274 = vmatprep.subr.mxu0 0.0
    %275 = vmatpush1.msra.mxu0 0.0
    %276 = vmatprep.subr.mxu0 0.0
    %277 = vmatpush1.msra.mxu0 0.0
    %278 = vmatprep.subr.mxu0 0.0
    %279 = vmatpush1.msra.mxu0 0.0
    %280 = vmatprep.subr.mxu0 0.0
    %281 = vmatpush1.msra.mxu0 0.0
    %282 = vmatprep.subr.mxu0 0.0
    %283 = vmatpush1.msra.mxu0 0.0
    %284 = vmatprep.subr.mxu0 0.0
    %285 = vmatpush1.msra.mxu0 0.0
    %286 = vmatprep.subr.mxu0 0.0
    %287 = vmatpush1.msra.mxu0 0.0
    %288 = vmatprep.mubr.f32.mxu0 0.0
    %289 = vmatmul.mubr.f32.gmra.mrb[0].mxu0 %v219
    %v290 = vpop.f32.mrb[0].mxu0
    %v291 = vadd.f32 %v190, %v290
    %v292 = vpop.f32.mrb[0].mxu0
    %v293 = vadd.f32 %v194, %v292
    %294 = vmatprep.mubr.f32.mxu0 0.0
    %295 = vmatmul.mubr.f32.gmra.mrb[0].mxu0 %v222
    %v296 = vpop.f32.mrb[0].mxu0
    %v297 = vadd.f32 %v190, %v296
    %v298 = vpop.f32.mrb[0].mxu0
    %v299 = vadd.f32 %v194, %v298
    %300 = vdwg.mxu0
    %301 = vmatprep.subr.mxu0 %v182
    %302 = vmatpush1.msra.mxu0 %v181
    %303 = vmatprep.subr.mxu0 0.0
    %304 = vmatpush1.msra.mxu0 0.0
    %305 = vmatprep.subr.mxu0 0.0
    %306 = vmatpush1.msra.mxu0 0.0
    %307 = vmatprep.subr.mxu0 0.0
    %308 = vmatpush1.msra.mxu0 0.0
    %309 = vmatprep.subr.mxu0 0.0
    %310 = vmatpush1.msra.mxu0 0.0
    %311 = vmatprep.subr.mxu0 0.0
    %312 = vmatpush1.msra.mxu0 0.0
    %313 = vmatprep.subr.mxu0 0.0
    %314 = vmatpush1.msra.mxu0 0.0
    %315 = vmatprep.subr.mxu0 0.0
    %316 = vmatpush1.msra.mxu0 0.0
    %317 = vmatprep.subr.mxu0 0.0
    %318 = vmatpush1.msra.mxu0 0.0
    %319 = vmatprep.subr.mxu0 0.0
    %320 = vmatpush1.msra.mxu0 0.0
    %321 = vmatprep.subr.mxu0 0.0
    %322 = vmatpush1.msra.mxu0 0.0
    %323 = vmatprep.subr.mxu0 0.0
    %324 = vmatpush1.msra.mxu0 0.0
    %325 = vmatprep.subr.mxu0 0.0
    %326 = vmatpush1.msra.mxu0 0.0
    %327 = vmatprep.subr.mxu0 0.0
    %328 = vmatpush1.msra.mxu0 0.0
    %329 = vmatprep.subr.mxu0 0.0
    %330 = vmatpush1.msra.mxu0 0.0
    %331 = vmatprep.subr.mxu0 0.0
    %332 = vmatpush1.msra.mxu0 0.0
    %333 = vmatprep.subr.mxu0 0.0
    %334 = vmatpush1.msra.mxu0 0.0
    %335 = vmatprep.subr.mxu0 0.0
    %336 = vmatpush1.msra.mxu0 0.0
    %337 = vmatprep.subr.mxu0 0.0
    %338 = vmatpush1.msra.mxu0 0.0
    %339 = vmatprep.subr.mxu0 0.0
    %340 = vmatpush1.msra.mxu0 0.0
    %341 = vmatprep.subr.mxu0 0.0
    %342 = vmatpush1.msra.mxu0 0.0
    %343 = vmatprep.subr.mxu0 0.0
    %344 = vmatpush1.msra.mxu0 0.0
    %345 = vmatprep.subr.mxu0 0.0
    %346 = vmatpush1.msra.mxu0 0.0
    %347 = vmatprep.subr.mxu0 0.0
    %348 = vmatpush1.msra.mxu0 0.0
    %349 = vmatprep.subr.mxu0 0.0
    %350 = vmatpush1.msra.mxu0 0.0
    %351 = vmatprep.subr.mxu0 0.0
    %352 = vmatpush1.msra.mxu0 0.0
    %353 = vmatprep.subr.mxu0 0.0
    %354 = vmatpush1.msra.mxu0 0.0
    %355 = vmatprep.subr.mxu0 0.0
    %356 = vmatpush1.msra.mxu0 0.0
    %357 = vmatprep.subr.mxu0 0.0
    %358 = vmatpush1.msra.mxu0 0.0
    %359 = vmatprep.subr.mxu0 0.0
    %360 = vmatpush1.msra.mxu0 0.0
    %361 = vmatprep.subr.mxu0 0.0
    %362 = vmatpush1.msra.mxu0 0.0
    %363 = vmatprep.subr.mxu0 0.0
    %364 = vmatpush1.msra.mxu0 0.0
    %365 = vmatprep.mubr.f32.mxu0 0.0
    %366 = vmatmul.mubr.f32.gmra.mrb[0].mxu0 %v219
    %v367 = vpop.f32.mrb[0].mxu0
    %v368 = vadd.f32 %v198, %v367
    %v369 = vpop.f32.mrb[0].mxu0
    %v370 = vadd.f32 %v202, %v369
    %371 = vmatprep.mubr.f32.mxu0 0.0
    %372 = vmatmul.mubr.f32.gmra.mrb[0].mxu0 %v222
    %v373 = vpop.f32.mrb[0].mxu0
    %v374 = vadd.f32 %v198, %v373
    %v375 = vpop.f32.mrb[0].mxu0
    %v376 = vadd.f32 %v202, %v375
    %377 = vdwg.mxu0
    %378 = vmatprep.subr.mxu0 %v184
    %379 = vmatpush1.msra.mxu0 %v183
    %380 = vmatprep.subr.mxu0 0.0
    %381 = vmatpush1.msra.mxu0 0.0
    %382 = vmatprep.subr.mxu0 0.0
    %383 = vmatpush1.msra.mxu0 0.0
    %384 = vmatprep.subr.mxu0 0.0
    %385 = vmatpush1.msra.mxu0 0.0
    %386 = vmatprep.subr.mxu0 0.0
    %387 = vmatpush1.msra.mxu0 0.0
    %388 = vmatprep.subr.mxu0 0.0
    %389 = vmatpush1.msra.mxu0 0.0
    %390 = vmatprep.subr.mxu0 0.0
    %391 = vmatpush1.msra.mxu0 0.0
    %392 = vmatprep.subr.mxu0 0.0
    %393 = vmatpush1.msra.mxu0 0.0
    %394 = vmatprep.subr.mxu0 0.0
    %395 = vmatpush1.msra.mxu0 0.0
    %396 = vmatprep.subr.mxu0 0.0
    %397 = vmatpush1.msra.mxu0 0.0
    %398 = vmatprep.subr.mxu0 0.0
    %399 = vmatpush1.msra.mxu0 0.0
    %400 = vmatprep.subr.mxu0 0.0
    %401 = vmatpush1.msra.mxu0 0.0
    %402 = vmatprep.subr.mxu0 0.0
    %403 = vmatpush1.msra.mxu0 0.0
    %404 = vmatprep.subr.mxu0 0.0
    %405 = vmatpush1.msra.mxu0 0.0
    %406 = vmatprep.subr.mxu0 0.0
    %407 = vmatpush1.msra.mxu0 0.0
    %408 = vmatprep.subr.mxu0 0.0
    %409 = vmatpush1.msra.mxu0 0.0
    %410 = vmatprep.subr.mxu0 0.0
    %411 = vmatpush1.msra.mxu0 0.0
    %412 = vmatprep.subr.mxu0 0.0
    %413 = vmatpush1.msra.mxu0 0.0
    %414 = vmatprep.subr.mxu0 0.0
    %415 = vmatpush1.msra.mxu0 0.0
    %416 = vmatprep.subr.mxu0 0.0
    %417 = vmatpush1.msra.mxu0 0.0
    %418 = vmatprep.subr.mxu0 0.0
    %419 = vmatpush1.msra.mxu0 0.0
    %420 = vmatprep.subr.mxu0 0.0
    %421 = vmatpush1.msra.mxu0 0.0
    %422 = vmatprep.subr.mxu0 0.0
    %423 = vmatpush1.msra.mxu0 0.0
    %424 = vmatprep.subr.mxu0 0.0
    %425 = vmatpush1.msra.mxu0 0.0
    %426 = vmatprep.subr.mxu0 0.0
    %427 = vmatpush1.msra.mxu0 0.0
    %428 = vmatprep.subr.mxu0 0.0
    %429 = vmatpush1.msra.mxu0 0.0
    %430 = vmatprep.subr.mxu0 0.0
    %431 = vmatpush1.msra.mxu0 0.0
    %432 = vmatprep.subr.mxu0 0.0
    %433 = vmatpush1.msra.mxu0 0.0
    %434 = vmatprep.subr.mxu0 0.0
    %435 = vmatpush1.msra.mxu0 0.0
    %436 = vmatprep.subr.mxu0 0.0
    %437 = vmatpush1.msra.mxu0 0.0
    %438 = vmatprep.subr.mxu0 0.0
    %439 = vmatpush1.msra.mxu0 0.0
    %440 = vmatprep.subr.mxu0 0.0
    %441 = vmatpush1.msra.mxu0 0.0
    %442 = vmatprep.mubr.f32.mxu0 0.0
    %443 = vmatmul.mubr.f32.gmra.mrb[0].mxu0 %v219
    %v444 = vpop.f32.mrb[0].mxu0
    %v445 = vadd.f32 %v206, %v444
    %v446 = vpop.f32.mrb[0].mxu0
    %v447 = vadd.f32 %v210, %v446
    %448 = vmatprep.mubr.f32.mxu0 0.0
    %449 = vmatmul.mubr.f32.gmra.mrb[0].mxu0 %v222
    %v450 = vpop.f32.mrb[0].mxu0
    %v451 = vadd.f32 %v206, %v450
    %v452 = vpop.f32.mrb[0].mxu0
    %v453 = vadd.f32 %v210, %v452
    %454 = vdwg.mxu0
    %v455 = vld [vmem:[#allocation4] sm:$0xff]
    %v456 = vld [vmem:[#allocation4 + $0x8] sm:$0xff]
    %v457 = vld [vmem:[#allocation4 + $0x10] sm:$0xff]
    %v458 = vld [vmem:[#allocation4 + $0x18] sm:$0xff]
    %v459 = vld [vmem:[#allocation4 + $0x20] sm:$0xff]
    %v460 = vld [vmem:[#allocation4 + $0x28] sm:$0xff]
    %v461 = vld [vmem:[#allocation4 + $0x30] sm:$0xff]
    %v462 = vld [vmem:[#allocation4 + $0x38] sm:$0xff]
    %v463 = vld [vmem:[#allocation4 + $0x40] sm:$0xff]
    %v464 = vld [vmem:[#allocation4 + $0x48] sm:$0xff]
    %v465 = vld [vmem:[#allocation4 + $0x50] sm:$0xff]
    %v466 = vld [vmem:[#allocation4 + $0x58] sm:$0xff]
    %v467 = vld [vmem:[#allocation4 + $0x60] sm:$0xff]
    %v468 = vld [vmem:[#allocation4 + $0x68] sm:$0xff]
    %v469 = vld [vmem:[#allocation4 + $0x70] sm:$0xff]
    %v470 = vld [vmem:[#allocation4 + $0x78] sm:$0xff]
    %v471 = vld [vmem:[#allocation4 + $0x80] sm:$0xff]
    %v472 = vld [vmem:[#allocation4 + $0x88] sm:$0xff]
    %v473 = vld [vmem:[#allocation4 + $0x90] sm:$0xff]
    %v474 = vld [vmem:[#allocation4 + $0x98] sm:$0xff]
    %v475 = vld [vmem:[#allocation4 + $0xa0] sm:$0xff]
    %v476 = vld [vmem:[#allocation4 + $0xa8] sm:$0xff]
    %v477 = vld [vmem:[#allocation4 + $0xb0] sm:$0xff]
    %v478 = vld [vmem:[#allocation4 + $0xb8] sm:$0xff]
    %v479 = vld [vmem:[#allocation4 + $0xc0] sm:$0xff]
    %v480 = vld [vmem:[#allocation4 + $0xc8] sm:$0xff]
    %v481 = vld [vmem:[#allocation4 + $0xd0] sm:$0xff]
    %v482 = vld [vmem:[#allocation4 + $0xd8] sm:$0xff]
    %v483 = vld [vmem:[#allocation4 + $0xe0] sm:$0xff]
    %v484 = vld [vmem:[#allocation4 + $0xe8] sm:$0xff]
    %v485 = vld [vmem:[#allocation4 + $0xf0] sm:$0xff]
    %v486 = vld [vmem:[#allocation4 + $0xf8] sm:$0xff]
    %v487 = vld [vmem:[#allocation4 + $0x100] sm:$0xff]
    %v488 = vld [vmem:[#allocation4 + $0x108] sm:$0xff]
    %v489 = vld [vmem:[#allocation4 + $0x110] sm:$0xff]
    %v490 = vld [vmem:[#allocation4 + $0x118] sm:$0xff]
    %v491 = vld [vmem:[#allocation4 + $0x120] sm:$0xff]
    %v492 = vld [vmem:[#allocation4 + $0x128] sm:$0xff]
    %v493 = vld [vmem:[#allocation4 + $0x130] sm:$0xff]
    %v494 = vld [vmem:[#allocation4 + $0x138] sm:$0xff]
    %v495 = vld [vmem:[#allocation4 + $0x140] sm:$0xff]
    %v496 = vld [vmem:[#allocation4 + $0x148] sm:$0xff]
    %v497 = vld [vmem:[#allocation4 + $0x150] sm:$0xff]
    %v498 = vld [vmem:[#allocation4 + $0x158] sm:$0xff]
    %v499 = vld [vmem:[#allocation4 + $0x160] sm:$0xff]
    %v500 = vld [vmem:[#allocation4 + $0x168] sm:$0xff]
    %v501 = vld [vmem:[#allocation4 + $0x170] sm:$0xff]
    %v502 = vld [vmem:[#allocation4 + $0x178] sm:$0xff]
    %v503 = vld [vmem:[#allocation4 + $0x180] sm:$0xff]
    %v504 = vld [vmem:[#allocation4 + $0x188] sm:$0xff]
    %v505 = vld [vmem:[#allocation4 + $0x190] sm:$0xff]
    %v506 = vld [vmem:[#allocation4 + $0x198] sm:$0xff]
    %v507 = vld [vmem:[#allocation4 + $0x1a0] sm:$0xff]
    %v508 = vld [vmem:[#allocation4 + $0x1a8] sm:$0xff]
    %v509 = vld [vmem:[#allocation4 + $0x1b0] sm:$0xff]
    %v510 = vld [vmem:[#allocation4 + $0x1b8] sm:$0xff]
    %v511 = vld [vmem:[#allocation6] sm:$0xff]
    %v513 = vlaneseq
    %v514 = vshrl.u32 %v513, 7
    %v515 = vsub.s32 0, %v514
    %v516 = vrot.slane %v511, %v515
    %v517 = vlaneseq
    %v518 = vshrl.u32 %v517, 7
    %v519 = vsub.s32 1, %v518
    %v520 = vrot.slane %v511, %v519
    %v521 = vlaneseq
    %v522 = vshrl.u32 %v521, 7
    %v523 = vsub.s32 2, %v522
    %v524 = vrot.slane %v511, %v523
    %v525 = vlaneseq
    %v526 = vshrl.u32 %v525, 7
    %v527 = vsub.s32 3, %v526
    %v528 = vrot.slane %v511, %v527
    %v529 = vlaneseq
    %v530 = vshrl.u32 %v529, 7
    %v531 = vsub.s32 4, %v530
    %v532 = vrot.slane %v511, %v531
    %v533 = vlaneseq
    %v534 = vshrl.u32 %v533, 7
    %v535 = vsub.s32 5, %v534
    %v536 = vrot.slane %v511, %v535
    %v537 = vlaneseq
    %v538 = vshrl.u32 %v537, 7
    %v539 = vsub.s32 6, %v538
    %v540 = vrot.slane %v511, %v539
    %vm548 = vcmask 523264
    %v550 = vsel %vm548, %v173, 0
    %552 = vmatprep.subr.mxu0 %v456
    %553 = vmatpush1.msra.mxu0 %v455
    %554 = vmatprep.subr.mxu0 %v463
    %555 = vmatpush1.msra.mxu0 %v462
    %556 = vmatprep.subr.mxu0 %v470
    %557 = vmatpush1.msra.mxu0 %v469
    %558 = vmatprep.subr.mxu0 %v477
    %559 = vmatpush1.msra.mxu0 %v476
    %560 = vmatprep.subr.mxu0 %v484
    %561 = vmatpush1.msra.mxu0 %v483
    %562 = vmatprep.subr.mxu0 %v491
    %563 = vmatpush1.msra.mxu0 %v490
    %564 = vmatprep.subr.mxu0 %v498
    %565 = vmatpush1.msra.mxu0 %v497
    %566 = vmatprep.subr.mxu0 %v505
    %567 = vmatpush1.msra.mxu0 %v504
    %568 = vmatprep.subr.mxu0 0.0
    %569 = vmatpush1.msra.mxu0 0.0
    %570 = vmatprep.subr.mxu0 0.0
    %571 = vmatpush1.msra.mxu0 0.0
    %572 = vmatprep.subr.mxu0 0.0
    %573 = vmatpush1.msra.mxu0 0.0
    %574 = vmatprep.subr.mxu0 0.0
    %575 = vmatpush1.msra.mxu0 0.0
    %576 = vmatprep.subr.mxu0 0.0
    %577 = vmatpush1.msra.mxu0 0.0
    %578 = vmatprep.subr.mxu0 0.0
    %579 = vmatpush1.msra.mxu0 0.0
    %580 = vmatprep.subr.mxu0 0.0
    %581 = vmatpush1.msra.mxu0 0.0
    %582 = vmatprep.subr.mxu0 0.0
    %583 = vmatpush1.msra.mxu0 0.0
    %584 = vmatprep.subr.mxu0 0.0
    %585 = vmatpush1.msra.mxu0 0.0
    %586 = vmatprep.subr.mxu0 0.0
    %587 = vmatpush1.msra.mxu0 0.0
    %588 = vmatprep.subr.mxu0 0.0
    %589 = vmatpush1.msra.mxu0 0.0
    %590 = vmatprep.subr.mxu0 0.0
    %591 = vmatpush1.msra.mxu0 0.0
    %592 = vmatprep.subr.mxu0 0.0
    %593 = vmatpush1.msra.mxu0 0.0
    %594 = vmatprep.subr.mxu0 0.0
    %595 = vmatpush1.msra.mxu0 0.0
    %596 = vmatprep.subr.mxu0 0.0
    %597 = vmatpush1.msra.mxu0 0.0
    %598 = vmatprep.subr.mxu0 0.0
    %599 = vmatpush1.msra.mxu0 0.0
    %600 = vmatprep.subr.mxu0 0.0
    %601 = vmatpush1.msra.mxu0 0.0
    %602 = vmatprep.subr.mxu0 0.0
    %603 = vmatpush1.msra.mxu0 0.0
    %604 = vmatprep.subr.mxu0 0.0
    %605 = vmatpush1.msra.mxu0 0.0
    %606 = vmatprep.subr.mxu0 0.0
    %607 = vmatpush1.msra.mxu0 0.0
    %608 = vmatprep.subr.mxu0 0.0
    %609 = vmatpush1.msra.mxu0 0.0
    %610 = vmatprep.subr.mxu0 0.0
    %611 = vmatpush1.msra.mxu0 0.0
    %612 = vmatprep.subr.mxu0 0.0
    %613 = vmatpush1.msra.mxu0 0.0
    %614 = vmatprep.subr.mxu0 0.0
    %615 = vmatpush1.msra.mxu0 0.0
    %616 = vmatprep.mubr.f32.mxu0 0.0
    %617 = vmatmul.mubr.f32.gmra.mrb[0].mxu0 %v550
    %v618 = vpop.f32.mrb[0].mxu0
    %v619 = vadd.f32 %v516, %v618
    %v620 = vpop.f32.mrb[0].mxu0
    %v621 = vadd.f32 %v520, %v620
    %622 = vdwg.mxu0
    %623 = vmatprep.subr.mxu0 %v458
    %624 = vmatpush1.msra.mxu0 %v457
    %625 = vmatprep.subr.mxu0 %v465
    %626 = vmatpush1.msra.mxu0 %v464
    %627 = vmatprep.subr.mxu0 %v472
    %628 = vmatpush1.msra.mxu0 %v471
    %629 = vmatprep.subr.mxu0 %v479
    %630 = vmatpush1.msra.mxu0 %v478
    %631 = vmatprep.subr.mxu0 %v486
    %632 = vmatpush1.msra.mxu0 %v485
    %633 = vmatprep.subr.mxu0 %v493
    %634 = vmatpush1.msra.mxu0 %v492
    %635 = vmatprep.subr.mxu0 %v500
    %636 = vmatpush1.msra.mxu0 %v499
    %637 = vmatprep.subr.mxu0 %v507
    %638 = vmatpush1.msra.mxu0 %v506
    %639 = vmatprep.subr.mxu0 0.0
    %640 = vmatpush1.msra.mxu0 0.0
    %641 = vmatprep.subr.mxu0 0.0
    %642 = vmatpush1.msra.mxu0 0.0
    %643 = vmatprep.subr.mxu0 0.0
    %644 = vmatpush1.msra.mxu0 0.0
    %645 = vmatprep.subr.mxu0 0.0
    %646 = vmatpush1.msra.mxu0 0.0
    %647 = vmatprep.subr.mxu0 0.0
    %648 = vmatpush1.msra.mxu0 0.0
    %649 = vmatprep.subr.mxu0 0.0
    %650 = vmatpush1.msra.mxu0 0.0
    %651 = vmatprep.subr.mxu0 0.0
    %652 = vmatpush1.msra.mxu0 0.0
    %653 = vmatprep.subr.mxu0 0.0
    %654 = vmatpush1.msra.mxu0 0.0
    %655 = vmatprep.subr.mxu0 0.0
    %656 = vmatpush1.msra.mxu0 0.0
    %657 = vmatprep.subr.mxu0 0.0
    %658 = vmatpush1.msra.mxu0 0.0
    %659 = vmatprep.subr.mxu0 0.0
    %660 = vmatpush1.msra.mxu0 0.0
    %661 = vmatprep.subr.mxu0 0.0
    %662 = vmatpush1.msra.mxu0 0.0
    %663 = vmatprep.subr.mxu0 0.0
    %664 = vmatpush1.msra.mxu0 0.0
    %665 = vmatprep.subr.mxu0 0.0
    %666 = vmatpush1.msra.mxu0 0.0
    %667 = vmatprep.subr.mxu0 0.0
    %668 = vmatpush1.msra.mxu0 0.0
    %669 = vmatprep.subr.mxu0 0.0
    %670 = vmatpush1.msra.mxu0 0.0
    %671 = vmatprep.subr.mxu0 0.0
    %672 = vmatpush1.msra.mxu0 0.0
    %673 = vmatprep.subr.mxu0 0.0
    %674 = vmatpush1.msra.mxu0 0.0
    %675 = vmatprep.subr.mxu0 0.0
    %676 = vmatpush1.msra.mxu0 0.0
    %677 = vmatprep.subr.mxu0 0.0
    %678 = vmatpush1.msra.mxu0 0.0
    %679 = vmatprep.subr.mxu0 0.0
    %680 = vmatpush1.msra.mxu0 0.0
    %681 = vmatprep.subr.mxu0 0.0
    %682 = vmatpush1.msra.mxu0 0.0
    %683 = vmatprep.subr.mxu0 0.0
    %684 = vmatpush1.msra.mxu0 0.0
    %685 = vmatprep.subr.mxu0 0.0
    %686 = vmatpush1.msra.mxu0 0.0
    %687 = vmatprep.mubr.f32.mxu0 0.0
    %688 = vmatmul.mubr.f32.gmra.mrb[0].mxu0 %v550
    %v689 = vpop.f32.mrb[0].mxu0
    %v690 = vadd.f32 %v524, %v689
    %v691 = vpop.f32.mrb[0].mxu0
    %v692 = vadd.f32 %v528, %v691
    %693 = vdwg.mxu0
    %694 = vmatprep.subr.mxu0 %v460
    %695 = vmatpush1.msra.mxu0 %v459
    %696 = vmatprep.subr.mxu0 %v467
    %697 = vmatpush1.msra.mxu0 %v466
    %698 = vmatprep.subr.mxu0 %v474
    %699 = vmatpush1.msra.mxu0 %v473
    %700 = vmatprep.subr.mxu0 %v481
    %701 = vmatpush1.msra.mxu0 %v480
    %702 = vmatprep.subr.mxu0 %v488
    %703 = vmatpush1.msra.mxu0 %v487
    %704 = vmatprep.subr.mxu0 %v495
    %705 = vmatpush1.msra.mxu0 %v494
    %706 = vmatprep.subr.mxu0 %v502
    %707 = vmatpush1.msra.mxu0 %v501
    %708 = vmatprep.subr.mxu0 %v509
    %709 = vmatpush1.msra.mxu0 %v508
    %710 = vmatprep.subr.mxu0 0.0
    %711 = vmatpush1.msra.mxu0 0.0
    %712 = vmatprep.subr.mxu0 0.0
    %713 = vmatpush1.msra.mxu0 0.0
    %714 = vmatprep.subr.mxu0 0.0
    %715 = vmatpush1.msra.mxu0 0.0
    %716 = vmatprep.subr.mxu0 0.0
    %717 = vmatpush1.msra.mxu0 0.0
    %718 = vmatprep.subr.mxu0 0.0
    %719 = vmatpush1.msra.mxu0 0.0
    %720 = vmatprep.subr.mxu0 0.0
    %721 = vmatpush1.msra.mxu0 0.0
    %722 = vmatprep.subr.mxu0 0.0
    %723 = vmatpush1.msra.mxu0 0.0
    %724 = vmatprep.subr.mxu0 0.0
    %725 = vmatpush1.msra.mxu0 0.0
    %726 = vmatprep.subr.mxu0 0.0
    %727 = vmatpush1.msra.mxu0 0.0
    %728 = vmatprep.subr.mxu0 0.0
    %729 = vmatpush1.msra.mxu0 0.0
    %730 = vmatprep.subr.mxu0 0.0
    %731 = vmatpush1.msra.mxu0 0.0
    %732 = vmatprep.subr.mxu0 0.0
    %733 = vmatpush1.msra.mxu0 0.0
    %734 = vmatprep.subr.mxu0 0.0
    %735 = vmatpush1.msra.mxu0 0.0
    %736 = vmatprep.subr.mxu0 0.0
    %737 = vmatpush1.msra.mxu0 0.0
    %738 = vmatprep.subr.mxu0 0.0
    %739 = vmatpush1.msra.mxu0 0.0
    %740 = vmatprep.subr.mxu0 0.0
    %741 = vmatpush1.msra.mxu0 0.0
    %742 = vmatprep.subr.mxu0 0.0
    %743 = vmatpush1.msra.mxu0 0.0
    %744 = vmatprep.subr.mxu0 0.0
    %745 = vmatpush1.msra.mxu0 0.0
    %746 = vmatprep.subr.mxu0 0.0
    %747 = vmatpush1.msra.mxu0 0.0
    %748 = vmatprep.subr.mxu0 0.0
    %749 = vmatpush1.msra.mxu0 0.0
    %750 = vmatprep.subr.mxu0 0.0
    %751 = vmatpush1.msra.mxu0 0.0
    %752 = vmatprep.subr.mxu0 0.0
    %753 = vmatpush1.msra.mxu0 0.0
    %754 = vmatprep.subr.mxu0 0.0
    %755 = vmatpush1.msra.mxu0 0.0
    %756 = vmatprep.subr.mxu0 0.0
    %757 = vmatpush1.msra.mxu0 0.0
    %758 = vmatprep.mubr.f32.mxu0 0.0
    %759 = vmatmul.mubr.f32.gmra.mrb[0].mxu0 %v550
    %v760 = vpop.f32.mrb[0].mxu0
    %v761 = vadd.f32 %v532, %v760
    %v762 = vpop.f32.mrb[0].mxu0
    %v763 = vadd.f32 %v536, %v762
    %764 = vdwg.mxu0
    %765 = vmatprep.subr.mxu0 0.0
    %766 = vmatpush1.msra.mxu0 %v461
    %767 = vmatprep.subr.mxu0 0.0
    %768 = vmatpush1.msra.mxu0 %v468
    %769 = vmatprep.subr.mxu0 0.0
    %770 = vmatpush1.msra.mxu0 %v475
    %771 = vmatprep.subr.mxu0 0.0
    %772 = vmatpush1.msra.mxu0 %v482
    %773 = vmatprep.subr.mxu0 0.0
    %774 = vmatpush1.msra.mxu0 %v489
    %775 = vmatprep.subr.mxu0 0.0
    %776 = vmatpush1.msra.mxu0 %v496
    %777 = vmatprep.subr.mxu0 0.0
    %778 = vmatpush1.msra.mxu0 %v503
    %779 = vmatprep.subr.mxu0 0.0
    %780 = vmatpush1.msra.mxu0 %v510
    %781 = vmatprep.subr.mxu0 0.0
    %782 = vmatpush1.msra.mxu0 0.0
    %783 = vmatprep.subr.mxu0 0.0
    %784 = vmatpush1.msra.mxu0 0.0
    %785 = vmatprep.subr.mxu0 0.0
    %786 = vmatpush1.msra.mxu0 0.0
    %787 = vmatprep.subr.mxu0 0.0
    %788 = vmatpush1.msra.mxu0 0.0
    %789 = vmatprep.subr.mxu0 0.0
    %790 = vmatpush1.msra.mxu0 0.0
    %791 = vmatprep.subr.mxu0 0.0
    %792 = vmatpush1.msra.mxu0 0.0
    %793 = vmatprep.subr.mxu0 0.0
    %794 = vmatpush1.msra.mxu0 0.0
    %795 = vmatprep.subr.mxu0 0.0
    %796 = vmatpush1.msra.mxu0 0.0
    %797 = vmatprep.subr.mxu0 0.0
    %798 = vmatpush1.msra.mxu0 0.0
    %799 = vmatprep.subr.mxu0 0.0
    %800 = vmatpush1.msra.mxu0 0.0
    %801 = vmatprep.subr.mxu0 0.0
    %802 = vmatpush1.msra.mxu0 0.0
    %803 = vmatprep.subr.mxu0 0.0
    %804 = vmatpush1.msra.mxu0 0.0
    %805 = vmatprep.subr.mxu0 0.0
    %806 = vmatpush1.msra.mxu0 0.0
    %807 = vmatprep.subr.mxu0 0.0
    %808 = vmatpush1.msra.mxu0 0.0
    %809 = vmatprep.subr.mxu0 0.0
    %810 = vmatpush1.msra.mxu0 0.0
    %811 = vmatprep.subr.mxu0 0.0
    %812 = vmatpush1.msra.mxu0 0.0
    %813 = vmatprep.subr.mxu0 0.0
    %814 = vmatpush1.msra.mxu0 0.0
    %815 = vmatprep.subr.mxu0 0.0
    %816 = vmatpush1.msra.mxu0 0.0
    %817 = vmatprep.subr.mxu0 0.0
    %818 = vmatpush1.msra.mxu0 0.0
    %819 = vmatprep.subr.mxu0 0.0
    %820 = vmatpush1.msra.mxu0 0.0
    %821 = vmatprep.subr.mxu0 0.0
    %822 = vmatpush1.msra.mxu0 0.0
    %823 = vmatprep.subr.mxu0 0.0
    %824 = vmatpush1.msra.mxu0 0.0
    %825 = vmatprep.subr.mxu0 0.0
    %826 = vmatpush1.msra.mxu0 0.0
    %827 = vmatprep.subr.mxu0 0.0
    %828 = vmatpush1.msra.mxu0 0.0
    %829 = vmatprep.mubr.f32.mxu0 0.0
    %830 = vmatmul.mubr.f32.gmra.mrb[0].mxu0 %v550
    %v831 = vpop.f32.mrb[0].mxu0
    %v832 = vadd.f32 %v540, %v831
    %v833 = vpop.f32.mrb[0].mxu0
    %834 = vdwg.mxu0
    %vm835 = vcmask 130048
    %v837 = vsel %vm835, %v174, 0
    %v840 = vsel %vm835, %v175, 0
    %842 = vmatprep.subr.mxu0 %v621
    %843 = vmatpush1.msra.mxu0 %v619
    %844 = vmatprep.subr.mxu0 %v692
    %845 = vmatpush1.msra.mxu0 %v690
    %846 = vmatprep.subr.mxu0 0.0
    %847 = vmatpush1.msra.mxu0 0.0
    %848 = vmatprep.subr.mxu0 0.0
    %849 = vmatpush1.msra.mxu0 0.0
    %850 = vmatprep.subr.mxu0 0.0
    %851 = vmatpush1.msra.mxu0 0.0
    %852 = vmatprep.subr.mxu0 0.0
    %853 = vmatpush1.msra.mxu0 0.0
    %854 = vmatprep.subr.mxu0 0.0
    %855 = vmatpush1.msra.mxu0 0.0
    %856 = vmatprep.subr.mxu0 0.0
    %857 = vmatpush1.msra.mxu0 0.0
    %858 = vmatprep.subr.mxu0 0.0
    %859 = vmatpush1.msra.mxu0 0.0
    %860 = vmatprep.subr.mxu0 0.0
    %861 = vmatpush1.msra.mxu0 0.0
    %862 = vmatprep.subr.mxu0 0.0
    %863 = vmatpush1.msra.mxu0 0.0
    %864 = vmatprep.subr.mxu0 0.0
    %865 = vmatpush1.msra.mxu0 0.0
    %866 = vmatprep.subr.mxu0 0.0
    %867 = vmatpush1.msra.mxu0 0.0
    %868 = vmatprep.subr.mxu0 0.0
    %869 = vmatpush1.msra.mxu0 0.0
    %870 = vmatprep.subr.mxu0 0.0
    %871 = vmatpush1.msra.mxu0 0.0
    %872 = vmatprep.subr.mxu0 0.0
    %873 = vmatpush1.msra.mxu0 0.0
    %874 = vmatprep.subr.mxu0 0.0
    %875 = vmatpush1.msra.mxu0 0.0
    %876 = vmatprep.subr.mxu0 0.0
    %877 = vmatpush1.msra.mxu0 0.0
    %878 = vmatprep.subr.mxu0 0.0
    %879 = vmatpush1.msra.mxu0 0.0
    %880 = vmatprep.subr.mxu0 0.0
    %881 = vmatpush1.msra.mxu0 0.0
    %882 = vmatprep.subr.mxu0 0.0
    %883 = vmatpush1.msra.mxu0 0.0
    %884 = vmatprep.subr.mxu0 0.0
    %885 = vmatpush1.msra.mxu0 0.0
    %886 = vmatprep.subr.mxu0 0.0
    %887 = vmatpush1.msra.mxu0 0.0
    %888 = vmatprep.subr.mxu0 0.0
    %889 = vmatpush1.msra.mxu0 0.0
    %890 = vmatprep.subr.mxu0 0.0
    %891 = vmatpush1.msra.mxu0 0.0
    %892 = vmatprep.subr.mxu0 0.0
    %893 = vmatpush1.msra.mxu0 0.0
    %894 = vmatprep.subr.mxu0 0.0
    %895 = vmatpush1.msra.mxu0 0.0
    %896 = vmatprep.subr.mxu0 0.0
    %897 = vmatpush1.msra.mxu0 0.0
    %898 = vmatprep.subr.mxu0 0.0
    %899 = vmatpush1.msra.mxu0 0.0
    %900 = vmatprep.subr.mxu0 0.0
    %901 = vmatpush1.msra.mxu0 0.0
    %902 = vmatprep.subr.mxu0 0.0
    %903 = vmatpush1.msra.mxu0 0.0
    %904 = vmatprep.subr.mxu0 0.0
    %905 = vmatpush1.msra.mxu0 0.0
    %906 = vmatprep.mubr.f32.mxu0 0.0
    %907 = vmatmul.mubr.f32.gmra.mrb[0].mxu0 %v837
    %v908 = vpop.f32.mrb[0].mxu0
    %v909 = vadd.f32 %v291, %v908
    %v910 = vpop.f32.mrb[0].mxu0
    %v911 = vadd.f32 %v293, %v910
    %912 = vmatprep.mubr.f32.mxu0 0.0
    %913 = vmatmul.mubr.f32.gmra.mrb[0].mxu0 %v840
    %v914 = vpop.f32.mrb[0].mxu0
    %v915 = vadd.f32 %v297, %v914
    %v916 = vpop.f32.mrb[0].mxu0
    %v917 = vadd.f32 %v299, %v916
    %918 = vdwg.mxu0
    %vm919 = vcmask 261120
    %v921 = vsel %vm919, %v176, 0
    %923 = vmatprep.subr.mxu0 0.0
    %924 = vmatpush1.msra.mxu0 %v909
    %925 = vmatprep.subr.mxu0 0.0
    %926 = vmatpush1.msra.mxu0 %v915
    %927 = vmatprep.subr.mxu0 0.0
    %928 = vmatpush1.msra.mxu0 %v911
    %929 = vmatprep.subr.mxu0 0.0
    %930 = vmatpush1.msra.mxu0 %v917
    %931 = vmatprep.subr.mxu0 0.0
    %932 = vmatpush1.msra.mxu0 0.0
    %933 = vmatprep.subr.mxu0 0.0
    %934 = vmatpush1.msra.mxu0 0.0
    %935 = vmatprep.subr.mxu0 0.0
    %936 = vmatpush1.msra.mxu0 0.0
    %937 = vmatprep.subr.mxu0 0.0
    %938 = vmatpush1.msra.mxu0 0.0
    %939 = vmatprep.subr.mxu0 0.0
    %940 = vmatpush1.msra.mxu0 0.0
    %941 = vmatprep.subr.mxu0 0.0
    %942 = vmatpush1.msra.mxu0 0.0
    %943 = vmatprep.subr.mxu0 0.0
    %944 = vmatpush1.msra.mxu0 0.0
    %945 = vmatprep.subr.mxu0 0.0
    %946 = vmatpush1.msra.mxu0 0.0
    %947 = vmatprep.subr.mxu0 0.0
    %948 = vmatpush1.msra.mxu0 0.0
    %949 = vmatprep.subr.mxu0 0.0
    %950 = vmatpush1.msra.mxu0 0.0
    %951 = vmatprep.subr.mxu0 0.0
    %952 = vmatpush1.msra.mxu0 0.0
    %953 = vmatprep.subr.mxu0 0.0
    %954 = vmatpush1.msra.mxu0 0.0
    %955 = vmatprep.subr.mxu0 0.0
    %956 = vmatpush1.msra.mxu0 0.0
    %957 = vmatprep.subr.mxu0 0.0
    %958 = vmatpush1.msra.mxu0 0.0
    %959 = vmatprep.subr.mxu0 0.0
    %960 = vmatpush1.msra.mxu0 0.0
    %961 = vmatprep.subr.mxu0 0.0
    %962 = vmatpush1.msra.mxu0 0.0
    %963 = vmatprep.subr.mxu0 0.0
    %964 = vmatpush1.msra.mxu0 0.0
    %965 = vmatprep.subr.mxu0 0.0
    %966 = vmatpush1.msra.mxu0 0.0
    %967 = vmatprep.subr.mxu0 0.0
    %968 = vmatpush1.msra.mxu0 0.0
    %969 = vmatprep.subr.mxu0 0.0
    %970 = vmatpush1.msra.mxu0 0.0
    %971 = vmatprep.subr.mxu0 0.0
    %972 = vmatpush1.msra.mxu0 0.0
    %973 = vmatprep.subr.mxu0 0.0
    %974 = vmatpush1.msra.mxu0 0.0
    %975 = vmatprep.subr.mxu0 0.0
    %976 = vmatpush1.msra.mxu0 0.0
    %977 = vmatprep.subr.mxu0 0.0
    %978 = vmatpush1.msra.mxu0 0.0
    %979 = vmatprep.subr.mxu0 0.0
    %980 = vmatpush1.msra.mxu0 0.0
    %981 = vmatprep.subr.mxu0 0.0
    %982 = vmatpush1.msra.mxu0 0.0
    %983 = vmatprep.subr.mxu0 0.0
    %984 = vmatpush1.msra.mxu0 0.0
    %985 = vmatprep.subr.mxu0 0.0
    %986 = vmatpush1.msra.mxu0 0.0
    %987 = vmatprep.mubr.f32.mxu0 0.0
    %988 = vmatmul.mubr.f32.gmra.mrb[0].mxu0 %v921
    %v989 = vpop.f32.mrb[0].mxu0
    %v990 = vadd.f32 0.0, %v989
    %v991 = vpop.f32.mrb[0].mxu0
    %992 = vdwg.mxu0
    %v993 = vld [vmem:[#allocation10] sm:$0xff]
    %v994 = vld [vmem:[#allocation10 + $0x8] sm:$0xff]
    %v995 = vld [vmem:[#allocation10 + $0x10] sm:$0xff]
    %v996 = vld [vmem:[#allocation10 + $0x18] sm:$0xff]
    %v997 = vld [vmem:[#allocation10 + $0x20] sm:$0xff]
    %v998 = vld [vmem:[#allocation10 + $0x28] sm:$0xff]
    %v999 = vld [vmem:[#allocation10 + $0x30] sm:$0xff]
    %v1000 = vld [vmem:[#allocation10 + $0x38] sm:$0xff]
    %v1001 = vld [vmem:[#allocation10 + $0x40] sm:$0xff]
    %v1002 = vld [vmem:[#allocation10 + $0x48] sm:$0xff]
    %v1003 = vld [vmem:[#allocation10 + $0x50] sm:$0xff]
    %v1004 = vld [vmem:[#allocation10 + $0x58] sm:$0xff]
    %v1005 = vld [vmem:[#allocation10 + $0x60] sm:$0xff]
    %v1006 = vld [vmem:[#allocation10 + $0x68] sm:$0xff]
    %v1007 = vld [vmem:[#allocation10 + $0x70] sm:$0xff]
    %v1008 = vld [vmem:[#allocation10 + $0x78] sm:$0xff]
    %v1009 = vld [vmem:[#allocation10 + $0x80] sm:$0xff]
    %v1010 = vld [vmem:[#allocation10 + $0x88] sm:$0xff]
    %v1011 = vld [vmem:[#allocation10 + $0x90] sm:$0xff]
    %v1012 = vld [vmem:[#allocation10 + $0x98] sm:$0xff]
    %v1013 = vld [vmem:[#allocation10 + $0xa0] sm:$0xff]
    %v1014 = vld [vmem:[#allocation10 + $0xa8] sm:$0xff]
    %v1015 = vld [vmem:[#allocation10 + $0xb0] sm:$0xff]
    %v1016 = vld [vmem:[#allocation10 + $0xb8] sm:$0xff]
    %v1017 = vld [vmem:[#allocation10 + $0xc0] sm:$0xff]
    %v1018 = vld [vmem:[#allocation10 + $0xc8] sm:$0xff]
    %v1019 = vld [vmem:[#allocation10 + $0xd0] sm:$0xff]
    %v1020 = vld [vmem:[#allocation10 + $0xd8] sm:$0xff]
    %v1021 = vld [vmem:[#allocation10 + $0xe0] sm:$0xff]
    %v1022 = vld [vmem:[#allocation10 + $0xe8] sm:$0xff]
    %v1023 = vld [vmem:[#allocation10 + $0xf0] sm:$0xff]
    %v1024 = vld [vmem:[#allocation10 + $0xf8] sm:$0xff]
    %v1025 = vld [vmem:[#allocation10 + $0x100] sm:$0xff]
    %v1026 = vld [vmem:[#allocation10 + $0x108] sm:$0xff]
    %v1027 = vld [vmem:[#allocation10 + $0x110] sm:$0xff]
    %v1028 = vld [vmem:[#allocation10 + $0x118] sm:$0xff]
    %v1029 = vld [vmem:[#allocation10 + $0x120] sm:$0xff]
    %v1030 = vld [vmem:[#allocation10 + $0x128] sm:$0xff]
    %v1031 = vld [vmem:[#allocation10 + $0x130] sm:$0xff]
    %v1032 = vld [vmem:[#allocation10 + $0x138] sm:$0xff]
    %v1033 = vld [vmem:[#allocation10 + $0x140] sm:$0xff]
    %v1034 = vld [vmem:[#allocation10 + $0x148] sm:$0xff]
    %v1035 = vld [vmem:[#allocation10 + $0x150] sm:$0xff]
    %v1036 = vld [vmem:[#allocation10 + $0x158] sm:$0xff]
    %v1037 = vld [vmem:[#allocation10 + $0x160] sm:$0xff]
    %v1038 = vld [vmem:[#allocation10 + $0x168] sm:$0xff]
    %v1039 = vld [vmem:[#allocation10 + $0x170] sm:$0xff]
    %v1040 = vld [vmem:[#allocation10 + $0x178] sm:$0xff]
    %v1041 = vld [vmem:[#allocation12] sm:$0x7]
    %v1043 = vlaneseq
    %v1044 = vshrl.u32 %v1043, 7
    %v1045 = vsub.s32 0, %v1044
    %v1046 = vrot.slane %v1041, %v1045
    %v1047 = vlaneseq
    %v1048 = vshrl.u32 %v1047, 7
    %v1049 = vsub.s32 1, %v1048
    %v1050 = vrot.slane %v1041, %v1049
    %v1051 = vlaneseq
    %v1052 = vshrl.u32 %v1051, 7
    %v1053 = vsub.s32 2, %v1052
    %v1054 = vrot.slane %v1041, %v1053
    %1058 = vmatprep.subr.mxu0 %v994
    %1059 = vmatpush1.msra.mxu0 %v993
    %1060 = vmatprep.subr.mxu0 %v997
    %1061 = vmatpush1.msra.mxu0 %v996
    %1062 = vmatprep.subr.mxu0 %v1000
    %1063 = vmatpush1.msra.mxu0 %v999
    %1064 = vmatprep.subr.mxu0 %v1003
    %1065 = vmatpush1.msra.mxu0 %v1002
    %1066 = vmatprep.subr.mxu0 %v1006
    %1067 = vmatpush1.msra.mxu0 %v1005
    %1068 = vmatprep.subr.mxu0 %v1009
    %1069 = vmatpush1.msra.mxu0 %v1008
    %1070 = vmatprep.subr.mxu0 %v1012
    %1071 = vmatpush1.msra.mxu0 %v1011
    %1072 = vmatprep.subr.mxu0 %v1015
    %1073 = vmatpush1.msra.mxu0 %v1014
    %1074 = vmatprep.subr.mxu0 %v1018
    %1075 = vmatpush1.msra.mxu0 %v1017
    %1076 = vmatprep.subr.mxu0 %v1021
    %1077 = vmatpush1.msra.mxu0 %v1020
    %1078 = vmatprep.subr.mxu0 %v1024
    %1079 = vmatpush1.msra.mxu0 %v1023
    %1080 = vmatprep.subr.mxu0 %v1027
    %1081 = vmatpush1.msra.mxu0 %v1026
    %1082 = vmatprep.subr.mxu0 %v1030
    %1083 = vmatpush1.msra.mxu0 %v1029
    %1084 = vmatprep.subr.mxu0 %v1033
    %1085 = vmatpush1.msra.mxu0 %v1032
    %1086 = vmatprep.subr.mxu0 %v1036
    %1087 = vmatpush1.msra.mxu0 %v1035
    %1088 = vmatprep.subr.mxu0 %v1039
    %1089 = vmatpush1.msra.mxu0 %v1038
    %1090 = vmatprep.subr.mxu0 0.0
    %1091 = vmatpush1.msra.mxu0 0.0
    %1092 = vmatprep.subr.mxu0 0.0
    %1093 = vmatpush1.msra.mxu0 0.0
    %1094 = vmatprep.subr.mxu0 0.0
    %1095 = vmatpush1.msra.mxu0 0.0
    %1096 = vmatprep.subr.mxu0 0.0
    %1097 = vmatpush1.msra.mxu0 0.0
    %1098 = vmatprep.subr.mxu0 0.0
    %1099 = vmatpush1.msra.mxu0 0.0
    %1100 = vmatprep.subr.mxu0 0.0
    %1101 = vmatpush1.msra.mxu0 0.0
    %1102 = vmatprep.subr.mxu0 0.0
    %1103 = vmatpush1.msra.mxu0 0.0
    %1104 = vmatprep.subr.mxu0 0.0
    %1105 = vmatpush1.msra.mxu0 0.0
    %1106 = vmatprep.subr.mxu0 0.0
    %1107 = vmatpush1.msra.mxu0 0.0
    %1108 = vmatprep.subr.mxu0 0.0
    %1109 = vmatpush1.msra.mxu0 0.0
    %1110 = vmatprep.subr.mxu0 0.0
    %1111 = vmatpush1.msra.mxu0 0.0
    %1112 = vmatprep.subr.mxu0 0.0
    %1113 = vmatpush1.msra.mxu0 0.0
    %1114 = vmatprep.subr.mxu0 0.0
    %1115 = vmatpush1.msra.mxu0 0.0
    %1116 = vmatprep.subr.mxu0 0.0
    %1117 = vmatpush1.msra.mxu0 0.0
    %1118 = vmatprep.subr.mxu0 0.0
    %1119 = vmatpush1.msra.mxu0 0.0
    %1120 = vmatprep.subr.mxu0 0.0
    %1121 = vmatpush1.msra.mxu0 0.0
    %1122 = vmatprep.mubr.f32.mxu0 0.0
    %1123 = vmatmul.mubr.f32.gmra.mrb[0].mxu0 %v990
    %v1124 = vpop.f32.mrb[0].mxu0
    %v1125 = vadd.f32 %v1046, %v1124
    %v1126 = vpop.f32.mrb[0].mxu0
    %v1127 = vadd.f32 %v1050, %v1126
    %1128 = vdwg.mxu0
    %1129 = vmatprep.subr.mxu0 0.0
    %1130 = vmatpush1.msra.mxu0 %v995
    %1131 = vmatprep.subr.mxu0 0.0
    %1132 = vmatpush1.msra.mxu0 %v998
    %1133 = vmatprep.subr.mxu0 0.0
    %1134 = vmatpush1.msra.mxu0 %v1001
    %1135 = vmatprep.subr.mxu0 0.0
    %1136 = vmatpush1.msra.mxu0 %v1004
    %1137 = vmatprep.subr.mxu0 0.0
    %1138 = vmatpush1.msra.mxu0 %v1007
    %1139 = vmatprep.subr.mxu0 0.0
    %1140 = vmatpush1.msra.mxu0 %v1010
    %1141 = vmatprep.subr.mxu0 0.0
    %1142 = vmatpush1.msra.mxu0 %v1013
    %1143 = vmatprep.subr.mxu0 0.0
    %1144 = vmatpush1.msra.mxu0 %v1016
    %1145 = vmatprep.subr.mxu0 0.0
    %1146 = vmatpush1.msra.mxu0 %v1019
    %1147 = vmatprep.subr.mxu0 0.0
    %1148 = vmatpush1.msra.mxu0 %v1022
    %1149 = vmatprep.subr.mxu0 0.0
    %1150 = vmatpush1.msra.mxu0 %v1025
    %1151 = vmatprep.subr.mxu0 0.0
    %1152 = vmatpush1.msra.mxu0 %v1028
    %1153 = vmatprep.subr.mxu0 0.0
    %1154 = vmatpush1.msra.mxu0 %v1031
    %1155 = vmatprep.subr.mxu0 0.0
    %1156 = vmatpush1.msra.mxu0 %v1034
    %1157 = vmatprep.subr.mxu0 0.0
    %1158 = vmatpush1.msra.mxu0 %v1037
    %1159 = vmatprep.subr.mxu0 0.0
    %1160 = vmatpush1.msra.mxu0 %v1040
    %1161 = vmatprep.subr.mxu0 0.0
    %1162 = vmatpush1.msra.mxu0 0.0
    %1163 = vmatprep.subr.mxu0 0.0
    %1164 = vmatpush1.msra.mxu0 0.0
    %1165 = vmatprep.subr.mxu0 0.0
    %1166 = vmatpush1.msra.mxu0 0.0
    %1167 = vmatprep.subr.mxu0 0.0
    %1168 = vmatpush1.msra.mxu0 0.0
    %1169 = vmatprep.subr.mxu0 0.0
    %1170 = vmatpush1.msra.mxu0 0.0
    %1171 = vmatprep.subr.mxu0 0.0
    %1172 = vmatpush1.msra.mxu0 0.0
    %1173 = vmatprep.subr.mxu0 0.0
    %1174 = vmatpush1.msra.mxu0 0.0
    %1175 = vmatprep.subr.mxu0 0.0
    %1176 = vmatpush1.msra.mxu0 0.0
    %1177 = vmatprep.subr.mxu0 0.0
    %1178 = vmatpush1.msra.mxu0 0.0
    %1179 = vmatprep.subr.mxu0 0.0
    %1180 = vmatpush1.msra.mxu0 0.0
    %1181 = vmatprep.subr.mxu0 0.0
    %1182 = vmatpush1.msra.mxu0 0.0
    %1183 = vmatprep.subr.mxu0 0.0
    %1184 = vmatpush1.msra.mxu0 0.0
    %1185 = vmatprep.subr.mxu0 0.0
    %1186 = vmatpush1.msra.mxu0 0.0
    %1187 = vmatprep.subr.mxu0 0.0
    %1188 = vmatpush1.msra.mxu0 0.0
    %1189 = vmatprep.subr.mxu0 0.0
    %1190 = vmatpush1.msra.mxu0 0.0
    %1191 = vmatprep.subr.mxu0 0.0
    %1192 = vmatpush1.msra.mxu0 0.0
    %1193 = vmatprep.mubr.f32.mxu0 0.0
    %1194 = vmatmul.mubr.f32.gmra.mrb[0].mxu0 %v990
    %v1195 = vpop.f32.mrb[0].mxu0
    %v1196 = vadd.f32 %v1054, %v1195
    %v1197 = vpop.f32.mrb[0].mxu0
    %1198 = vdwg.mxu0
    %v1199 = vadd.f32 %v1125, %v761
    %v1200 = vxor.u32 %v1199, 2147483648
    %v1201 = vmul.f32 %v1200, 1.442695
    %v1202 = vpow.pop %v1201
    %v1203 = vadd.f32 %v1202, 1.0
    %v1204 = vrcp.pop %v1203
    %v1205 = vmul.f32 1.0, %v1204
    %v1206 = vadd.f32 %v1127, %v763
    %v1207 = vxor.u32 %v1206, 2147483648
    %v1208 = vmul.f32 %v1207, 1.442695
    %v1209 = vpow.pop %v1208
    %v1210 = vadd.f32 %v1209, 1.0
    %v1211 = vrcp.pop %v1210
    %v1212 = vmul.f32 1.0, %v1211
    %v1213 = vmul.f32 %v1205, %v832
    %v1214 = vadd.f32 %v1196, %v1213
    %v1215 = vtanh.pop %v1214
    %v1216 = vsub.f32 1.0, %v1212
    %v1217 = vmul.f32 %v1216, %v1215
    %v1218 = vmul.f32 %v1212, %v173
    %v1219 = vadd.f32 %v1217, %v1218
    %s1220 = scalar_lea.vmem [#allocation4], 448
    %v1221 = vld [vmem:[%s1220] sm:$0xff]
    %v1222 = vld [vmem:[%s1220 + $0x8] sm:$0xff]
    %v1223 = vld [vmem:[%s1220 + $0x10] sm:$0xff]
    %v1224 = vld [vmem:[%s1220 + $0x18] sm:$0xff]
    %v1225 = vld [vmem:[%s1220 + $0x20] sm:$0xff]
    %v1226 = vld [vmem:[%s1220 + $0x28] sm:$0xff]
    %v1227 = vld [vmem:[%s1220 + $0x30] sm:$0xff]
    %v1228 = vld [vmem:[%s1220 + $0x38] sm:$0xff]
    %v1229 = vld [vmem:[%s1220 + $0x40] sm:$0xff]
    %v1230 = vld [vmem:[%s1220 + $0x48] sm:$0xff]
    %v1231 = vld [vmem:[%s1220 + $0x50] sm:$0xff]
    %v1232 = vld [vmem:[%s1220 + $0x58] sm:$0xff]
    %v1233 = vld [vmem:[%s1220 + $0x60] sm:$0xff]
    %v1234 = vld [vmem:[%s1220 + $0x68] sm:$0xff]
    %v1235 = vld [vmem:[%s1220 + $0x70] sm:$0xff]
    %v1236 = vld [vmem:[%s1220 + $0x78] sm:$0xff]
    %v1237 = vld [vmem:[%s1220 + $0x80] sm:$0xff]
    %v1238 = vld [vmem:[%s1220 + $0x88] sm:$0xff]
    %v1239 = vld [vmem:[%s1220 + $0x90] sm:$0xff]
    %v1240 = vld [vmem:[%s1220 + $0x98] sm:$0xff]
    %v1241 = vld [vmem:[%s1220 + $0xa0] sm:$0xff]
    %v1242 = vld [vmem:[%s1220 + $0xa8] sm:$0xff]
    %v1243 = vld [vmem:[%s1220 + $0xb0] sm:$0xff]
    %v1244 = vld [vmem:[%s1220 + $0xb8] sm:$0xff]
    %v1245 = vld [vmem:[%s1220 + $0xc0] sm:$0xff]
    %v1246 = vld [vmem:[%s1220 + $0xc8] sm:$0xff]
    %v1247 = vld [vmem:[%s1220 + $0xd0] sm:$0xff]
    %v1248 = vld [vmem:[%s1220 + $0xd8] sm:$0xff]
    %v1249 = vld [vmem:[%s1220 + $0xe0] sm:$0xff]
    %v1250 = vld [vmem:[%s1220 + $0xe8] sm:$0xff]
    %v1251 = vld [vmem:[%s1220 + $0xf0] sm:$0xff]
    %v1252 = vld [vmem:[%s1220 + $0xf8] sm:$0xff]
    %v1253 = vld [vmem:[%s1220 + $0x100] sm:$0xff]
    %v1254 = vld [vmem:[%s1220 + $0x108] sm:$0xff]
    %v1255 = vld [vmem:[%s1220 + $0x110] sm:$0xff]
    %v1256 = vld [vmem:[%s1220 + $0x118] sm:$0xff]
    %v1257 = vld [vmem:[%s1220 + $0x120] sm:$0xff]
    %v1258 = vld [vmem:[%s1220 + $0x128] sm:$0xff]
    %v1259 = vld [vmem:[%s1220 + $0x130] sm:$0xff]
    %v1260 = vld [vmem:[%s1220 + $0x138] sm:$0xff]
    %v1261 = vld [vmem:[%s1220 + $0x140] sm:$0xff]
    %v1262 = vld [vmem:[%s1220 + $0x148] sm:$0xff]
    %v1263 = vld [vmem:[%s1220 + $0x150] sm:$0xff]
    %v1264 = vld [vmem:[%s1220 + $0x158] sm:$0xff]
    %v1265 = vld [vmem:[%s1220 + $0x160] sm:$0xff]
    %v1266 = vld [vmem:[%s1220 + $0x168] sm:$0xff]
    %v1267 = vld [vmem:[%s1220 + $0x170] sm:$0xff]
    %v1268 = vld [vmem:[%s1220 + $0x178] sm:$0xff]
    %v1269 = vld [vmem:[%s1220 + $0x180] sm:$0xff]
    %v1270 = vld [vmem:[%s1220 + $0x188] sm:$0xff]
    %v1271 = vld [vmem:[%s1220 + $0x190] sm:$0xff]
    %v1272 = vld [vmem:[%s1220 + $0x198] sm:$0xff]
    %v1273 = vld [vmem:[%s1220 + $0x1a0] sm:$0xff]
    %v1274 = vld [vmem:[%s1220 + $0x1a8] sm:$0xff]
    %v1275 = vld [vmem:[%s1220 + $0x1b0] sm:$0xff]
    %v1276 = vld [vmem:[%s1220 + $0x1b8] sm:$0xff]
    %s1277 = scalar_lea.vmem [#allocation6], 7
    %v1278 = vld [vmem:[%s1277] sm:$0xff]
    %v1280 = vlaneseq
    %v1281 = vshrl.u32 %v1280, 7
    %v1282 = vsub.s32 0, %v1281
    %v1283 = vrot.slane %v1278, %v1282
    %v1284 = vlaneseq
    %v1285 = vshrl.u32 %v1284, 7
    %v1286 = vsub.s32 1, %v1285
    %v1287 = vrot.slane %v1278, %v1286
    %v1288 = vlaneseq
    %v1289 = vshrl.u32 %v1288, 7
    %v1290 = vsub.s32 2, %v1289
    %v1291 = vrot.slane %v1278, %v1290
    %v1292 = vlaneseq
    %v1293 = vshrl.u32 %v1292, 7
    %v1294 = vsub.s32 3, %v1293
    %v1295 = vrot.slane %v1278, %v1294
    %v1296 = vlaneseq
    %v1297 = vshrl.u32 %v1296, 7
    %v1298 = vsub.s32 4, %v1297
    %v1299 = vrot.slane %v1278, %v1298
    %v1300 = vlaneseq
    %v1301 = vshrl.u32 %v1300, 7
    %v1302 = vsub.s32 5, %v1301
    %v1303 = vrot.slane %v1278, %v1302
    %v1304 = vlaneseq
    %v1305 = vshrl.u32 %v1304, 7
    %v1306 = vsub.s32 6, %v1305
    %v1307 = vrot.slane %v1278, %v1306
    %v1316 = vsel %vm548, %v1219, 0
    %1318 = vmatprep.subr.mxu0 %v1222
    %1319 = vmatpush1.msra.mxu0 %v1221
    %1320 = vmatprep.subr.mxu0 %v1229
    %1321 = vmatpush1.msra.mxu0 %v1228
    %1322 = vmatprep.subr.mxu0 %v1236
    %1323 = vmatpush1.msra.mxu0 %v1235
    %1324 = vmatprep.subr.mxu0 %v1243
    %1325 = vmatpush1.msra.mxu0 %v1242
    %1326 = vmatprep.subr.mxu0 %v1250
    %1327 = vmatpush1.msra.mxu0 %v1249
    %1328 = vmatprep.subr.mxu0 %v1257
    %1329 = vmatpush1.msra.mxu0 %v1256
    %1330 = vmatprep.subr.mxu0 %v1264
    %1331 = vmatpush1.msra.mxu0 %v1263
    %1332 = vmatprep.subr.mxu0 %v1271
    %1333 = vmatpush1.msra.mxu0 %v1270
    %1334 = vmatprep.subr.mxu0 0.0
    %1335 = vmatpush1.msra.mxu0 0.0
    %1336 = vmatprep.subr.mxu0 0.0
    %1337 = vmatpush1.msra.mxu0 0.0
    %1338 = vmatprep.subr.mxu0 0.0
    %1339 = vmatpush1.msra.mxu0 0.0
    %1340 = vmatprep.subr.mxu0 0.0
    %1341 = vmatpush1.msra.mxu0 0.0
    %1342 = vmatprep.subr.mxu0 0.0
    %1343 = vmatpush1.msra.mxu0 0.0
    %1344 = vmatprep.subr.mxu0 0.0
    %1345 = vmatpush1.msra.mxu0 0.0
    %1346 = vmatprep.subr.mxu0 0.0
    %1347 = vmatpush1.msra.mxu0 0.0
    %1348 = vmatprep.subr.mxu0 0.0
    %1349 = vmatpush1.msra.mxu0 0.0
    %1350 = vmatprep.subr.mxu0 0.0
    %1351 = vmatpush1.msra.mxu0 0.0
    %1352 = vmatprep.subr.mxu0 0.0
    %1353 = vmatpush1.msra.mxu0 0.0
    %1354 = vmatprep.subr.mxu0 0.0
    %1355 = vmatpush1.msra.mxu0 0.0
    %1356 = vmatprep.subr.mxu0 0.0
    %1357 = vmatpush1.msra.mxu0 0.0
    %1358 = vmatprep.subr.mxu0 0.0
    %1359 = vmatpush1.msra.mxu0 0.0
    %1360 = vmatprep.subr.mxu0 0.0
    %1361 = vmatpush1.msra.mxu0 0.0
    %1362 = vmatprep.subr.mxu0 0.0
    %1363 = vmatpush1.msra.mxu0 0.0
    %1364 = vmatprep.subr.mxu0 0.0
    %1365 = vmatpush1.msra.mxu0 0.0
    %1366 = vmatprep.subr.mxu0 0.0
    %1367 = vmatpush1.msra.mxu0 0.0
    %1368 = vmatprep.subr.mxu0 0.0
    %1369 = vmatpush1.msra.mxu0 0.0
    %1370 = vmatprep.subr.mxu0 0.0
    %1371 = vmatpush1.msra.mxu0 0.0
    %1372 = vmatprep.subr.mxu0 0.0
    %1373 = vmatpush1.msra.mxu0 0.0
    %1374 = vmatprep.subr.mxu0 0.0
    %1375 = vmatpush1.msra.mxu0 0.0
    %1376 = vmatprep.subr.mxu0 0.0
    %1377 = vmatpush1.msra.mxu0 0.0
    %1378 = vmatprep.subr.mxu0 0.0
    %1379 = vmatpush1.msra.mxu0 0.0
    %1380 = vmatprep.subr.mxu0 0.0
    %1381 = vmatpush1.msra.mxu0 0.0
    %1382 = vmatprep.mubr.f32.mxu0 0.0
    %1383 = vmatmul.mubr.f32.gmra.mrb[0].mxu0 %v1316
    %v1384 = vpop.f32.mrb[0].mxu0
    %v1385 = vadd.f32 %v1283, %v1384
    %v1386 = vpop.f32.mrb[0].mxu0
    %v1387 = vadd.f32 %v1287, %v1386
    %1388 = vdwg.mxu0
    %1389 = vmatprep.subr.mxu0 %v1224
    %1390 = vmatpush1.msra.mxu0 %v1223
    %1391 = vmatprep.subr.mxu0 %v1231
    %1392 = vmatpush1.msra.mxu0 %v1230
    %1393 = vmatprep.subr.mxu0 %v1238
    %1394 = vmatpush1.msra.mxu0 %v1237
    %1395 = vmatprep.subr.mxu0 %v1245
    %1396 = vmatpush1.msra.mxu0 %v1244
    %1397 = vmatprep.subr.mxu0 %v1252
    %1398 = vmatpush1.msra.mxu0 %v1251
    %1399 = vmatprep.subr.mxu0 %v1259
    %1400 = vmatpush1.msra.mxu0 %v1258
    %1401 = vmatprep.subr.mxu0 %v1266
    %1402 = vmatpush1.msra.mxu0 %v1265
    %1403 = vmatprep.subr.mxu0 %v1273
    %1404 = vmatpush1.msra.mxu0 %v1272
    %1405 = vmatprep.subr.mxu0 0.0
    %1406 = vmatpush1.msra.mxu0 0.0
    %1407 = vmatprep.subr.mxu0 0.0
    %1408 = vmatpush1.msra.mxu0 0.0
    %1409 = vmatprep.subr.mxu0 0.0
    %1410 = vmatpush1.msra.mxu0 0.0
    %1411 = vmatprep.subr.mxu0 0.0
    %1412 = vmatpush1.msra.mxu0 0.0
    %1413 = vmatprep.subr.mxu0 0.0
    %1414 = vmatpush1.msra.mxu0 0.0
    %1415 = vmatprep.subr.mxu0 0.0
    %1416 = vmatpush1.msra.mxu0 0.0
    %1417 = vmatprep.subr.mxu0 0.0
    %1418 = vmatpush1.msra.mxu0 0.0
    %1419 = vmatprep.subr.mxu0 0.0
    %1420 = vmatpush1.msra.mxu0 0.0
    %1421 = vmatprep.subr.mxu0 0.0
    %1422 = vmatpush1.msra.mxu0 0.0
    %1423 = vmatprep.subr.mxu0 0.0
    %1424 = vmatpush1.msra.mxu0 0.0
    %1425 = vmatprep.subr.mxu0 0.0
    %1426 = vmatpush1.msra.mxu0 0.0
    %1427 = vmatprep.subr.mxu0 0.0
    %1428 = vmatpush1.msra.mxu0 0.0
    %1429 = vmatprep.subr.mxu0 0.0
    %1430 = vmatpush1.msra.mxu0 0.0
    %1431 = vmatprep.subr.mxu0 0.0
    %1432 = vmatpush1.msra.mxu0 0.0
    %1433 = vmatprep.subr.mxu0 0.0
    %1434 = vmatpush1.msra.mxu0 0.0
    %1435 = vmatprep.subr.mxu0 0.0
    %1436 = vmatpush1.msra.mxu0 0.0
    %1437 = vmatprep.subr.mxu0 0.0
    %1438 = vmatpush1.msra.mxu0 0.0
    %1439 = vmatprep.subr.mxu0 0.0
    %1440 = vmatpush1.msra.mxu0 0.0
    %1441 = vmatprep.subr.mxu0 0.0
    %1442 = vmatpush1.msra.mxu0 0.0
    %1443 = vmatprep.subr.mxu0 0.0
    %1444 = vmatpush1.msra.mxu0 0.0
    %1445 = vmatprep.subr.mxu0 0.0
    %1446 = vmatpush1.msra.mxu0 0.0
    %1447 = vmatprep.subr.mxu0 0.0
    %1448 = vmatpush1.msra.mxu0 0.0
    %1449 = vmatprep.subr.mxu0 0.0
    %1450 = vmatpush1.msra.mxu0 0.0
    %1451 = vmatprep.subr.mxu0 0.0
    %1452 = vmatpush1.msra.mxu0 0.0
    %1453 = vmatprep.mubr.f32.mxu0 0.0
    %1454 = vmatmul.mubr.f32.gmra.mrb[0].mxu0 %v1316
    %v1455 = vpop.f32.mrb[0].mxu0
    %v1456 = vadd.f32 %v1291, %v1455
    %v1457 = vpop.f32.mrb[0].mxu0
    %v1458 = vadd.f32 %v1295, %v1457
    %1459 = vdwg.mxu0
    %1460 = vmatprep.subr.mxu0 %v1226
    %1461 = vmatpush1.msra.mxu0 %v1225
    %1462 = vmatprep.subr.mxu0 %v1233
    %1463 = vmatpush1.msra.mxu0 %v1232
    %1464 = vmatprep.subr.mxu0 %v1240
    %1465 = vmatpush1.msra.mxu0 %v1239
    %1466 = vmatprep.subr.mxu0 %v1247
    %1467 = vmatpush1.msra.mxu0 %v1246
    %1468 = vmatprep.subr.mxu0 %v1254
    %1469 = vmatpush1.msra.mxu0 %v1253
    %1470 = vmatprep.subr.mxu0 %v1261
    %1471 = vmatpush1.msra.mxu0 %v1260
    %1472 = vmatprep.subr.mxu0 %v1268
    %1473 = vmatpush1.msra.mxu0 %v1267
    %1474 = vmatprep.subr.mxu0 %v1275
    %1475 = vmatpush1.msra.mxu0 %v1274
    %1476 = vmatprep.subr.mxu0 0.0
    %1477 = vmatpush1.msra.mxu0 0.0
    %1478 = vmatprep.subr.mxu0 0.0
    %1479 = vmatpush1.msra.mxu0 0.0
    %1480 = vmatprep.subr.mxu0 0.0
    %1481 = vmatpush1.msra.mxu0 0.0
    %1482 = vmatprep.subr.mxu0 0.0
    %1483 = vmatpush1.msra.mxu0 0.0
    %1484 = vmatprep.subr.mxu0 0.0
    %1485 = vmatpush1.msra.mxu0 0.0
    %1486 = vmatprep.subr.mxu0 0.0
    %1487 = vmatpush1.msra.mxu0 0.0
    %1488 = vmatprep.subr.mxu0 0.0
    %1489 = vmatpush1.msra.mxu0 0.0
    %1490 = vmatprep.subr.mxu0 0.0
    %1491 = vmatpush1.msra.mxu0 0.0
    %1492 = vmatprep.subr.mxu0 0.0
    %1493 = vmatpush1.msra.mxu0 0.0
    %1494 = vmatprep.subr.mxu0 0.0
    %1495 = vmatpush1.msra.mxu0 0.0
    %1496 = vmatprep.subr.mxu0 0.0
    %1497 = vmatpush1.msra.mxu0 0.0
    %1498 = vmatprep.subr.mxu0 0.0
    %1499 = vmatpush1.msra.mxu0 0.0
    %1500 = vmatprep.subr.mxu0 0.0
    %1501 = vmatpush1.msra.mxu0 0.0
    %1502 = vmatprep.subr.mxu0 0.0
    %1503 = vmatpush1.msra.mxu0 0.0
    %1504 = vmatprep.subr.mxu0 0.0
    %1505 = vmatpush1.msra.mxu0 0.0
    %1506 = vmatprep.subr.mxu0 0.0
    %1507 = vmatpush1.msra.mxu0 0.0
    %1508 = vmatprep.subr.mxu0 0.0
    %1509 = vmatpush1.msra.mxu0 0.0
    %1510 = vmatprep.subr.mxu0 0.0
    %1511 = vmatpush1.msra.mxu0 0.0
    %1512 = vmatprep.subr.mxu0 0.0
    %1513 = vmatpush1.msra.mxu0 0.0
    %1514 = vmatprep.subr.mxu0 0.0
    %1515 = vmatpush1.msra.mxu0 0.0
    %1516 = vmatprep.subr.mxu0 0.0
    %1517 = vmatpush1.msra.mxu0 0.0
    %1518 = vmatprep.subr.mxu0 0.0
    %1519 = vmatpush1.msra.mxu0 0.0
    %1520 = vmatprep.subr.mxu0 0.0
    %1521 = vmatpush1.msra.mxu0 0.0
    %1522 = vmatprep.subr.mxu0 0.0
    %1523 = vmatpush1.msra.mxu0 0.0
    %1524 = vmatprep.mubr.f32.mxu0 0.0
    %1525 = vmatmul.mubr.f32.gmra.mrb[0].mxu0 %v1316
    %v1526 = vpop.f32.mrb[0].mxu0
    %v1527 = vadd.f32 %v1299, %v1526
    %v1528 = vpop.f32.mrb[0].mxu0
    %v1529 = vadd.f32 %v1303, %v1528
    %1530 = vdwg.mxu0
    %1531 = vmatprep.subr.mxu0 0.0
    %1532 = vmatpush1.msra.mxu0 %v1227
    %1533 = vmatprep.subr.mxu0 0.0
    %1534 = vmatpush1.msra.mxu0 %v1234
    %1535 = vmatprep.subr.mxu0 0.0
    %1536 = vmatpush1.msra.mxu0 %v1241
    %1537 = vmatprep.subr.mxu0 0.0
    %1538 = vmatpush1.msra.mxu0 %v1248
    %1539 = vmatprep.subr.mxu0 0.0
    %1540 = vmatpush1.msra.mxu0 %v1255
    %1541 = vmatprep.subr.mxu0 0.0
    %1542 = vmatpush1.msra.mxu0 %v1262
    %1543 = vmatprep.subr.mxu0 0.0
    %1544 = vmatpush1.msra.mxu0 %v1269
    %1545 = vmatprep.subr.mxu0 0.0
    %1546 = vmatpush1.msra.mxu0 %v1276
    %1547 = vmatprep.subr.mxu0 0.0
    %1548 = vmatpush1.msra.mxu0 0.0
    %1549 = vmatprep.subr.mxu0 0.0
    %1550 = vmatpush1.msra.mxu0 0.0
    %1551 = vmatprep.subr.mxu0 0.0
    %1552 = vmatpush1.msra.mxu0 0.0
    %1553 = vmatprep.subr.mxu0 0.0
    %1554 = vmatpush1.msra.mxu0 0.0
    %1555 = vmatprep.subr.mxu0 0.0
    %1556 = vmatpush1.msra.mxu0 0.0
    %1557 = vmatprep.subr.mxu0 0.0
    %1558 = vmatpush1.msra.mxu0 0.0
    %1559 = vmatprep.subr.mxu0 0.0
    %1560 = vmatpush1.msra.mxu0 0.0
    %1561 = vmatprep.subr.mxu0 0.0
    %1562 = vmatpush1.msra.mxu0 0.0
    %1563 = vmatprep.subr.mxu0 0.0
    %1564 = vmatpush1.msra.mxu0 0.0
    %1565 = vmatprep.subr.mxu0 0.0
    %1566 = vmatpush1.msra.mxu0 0.0
    %1567 = vmatprep.subr.mxu0 0.0
    %1568 = vmatpush1.msra.mxu0 0.0
    %1569 = vmatprep.subr.mxu0 0.0
    %1570 = vmatpush1.msra.mxu0 0.0
    %1571 = vmatprep.subr.mxu0 0.0
    %1572 = vmatpush1.msra.mxu0 0.0
    %1573 = vmatprep.subr.mxu0 0.0
    %1574 = vmatpush1.msra.mxu0 0.0
    %1575 = vmatprep.subr.mxu0 0.0
    %1576 = vmatpush1.msra.mxu0 0.0
    %1577 = vmatprep.subr.mxu0 0.0
    %1578 = vmatpush1.msra.mxu0 0.0
    %1579 = vmatprep.subr.mxu0 0.0
    %1580 = vmatpush1.msra.mxu0 0.0
    %1581 = vmatprep.subr.mxu0 0.0
    %1582 = vmatpush1.msra.mxu0 0.0
    %1583 = vmatprep.subr.mxu0 0.0
    %1584 = vmatpush1.msra.mxu0 0.0
    %1585 = vmatprep.subr.mxu0 0.0
    %1586 = vmatpush1.msra.mxu0 0.0
    %1587 = vmatprep.subr.mxu0 0.0
    %1588 = vmatpush1.msra.mxu0 0.0
    %1589 = vmatprep.subr.mxu0 0.0
    %1590 = vmatpush1.msra.mxu0 0.0
    %1591 = vmatprep.subr.mxu0 0.0
    %1592 = vmatpush1.msra.mxu0 0.0
    %1593 = vmatprep.subr.mxu0 0.0
    %1594 = vmatpush1.msra.mxu0 0.0
    %1595 = vmatprep.mubr.f32.mxu0 0.0
    %1596 = vmatmul.mubr.f32.gmra.mrb[0].mxu0 %v1316
    %v1597 = vpop.f32.mrb[0].mxu0
    %v1598 = vadd.f32 %v1307, %v1597
    %v1599 = vpop.f32.mrb[0].mxu0
    %1600 = vdwg.mxu0
    %1601 = vmatprep.subr.mxu0 %v1387
    %1602 = vmatpush1.msra.mxu0 %v1385
    %1603 = vmatprep.subr.mxu0 %v1458
    %1604 = vmatpush1.msra.mxu0 %v1456
    %1605 = vmatprep.subr.mxu0 0.0
    %1606 = vmatpush1.msra.mxu0 0.0
    %1607 = vmatprep.subr.mxu0 0.0
    %1608 = vmatpush1.msra.mxu0 0.0
    %1609 = vmatprep.subr.mxu0 0.0
    %1610 = vmatpush1.msra.mxu0 0.0
    %1611 = vmatprep.subr.mxu0 0.0
    %1612 = vmatpush1.msra.mxu0 0.0
    %1613 = vmatprep.subr.mxu0 0.0
    %1614 = vmatpush1.msra.mxu0 0.0
    %1615 = vmatprep.subr.mxu0 0.0
    %1616 = vmatpush1.msra.mxu0 0.0
    %1617 = vmatprep.subr.mxu0 0.0
    %1618 = vmatpush1.msra.mxu0 0.0
    %1619 = vmatprep.subr.mxu0 0.0
    %1620 = vmatpush1.msra.mxu0 0.0
    %1621 = vmatprep.subr.mxu0 0.0
    %1622 = vmatpush1.msra.mxu0 0.0
    %1623 = vmatprep.subr.mxu0 0.0
    %1624 = vmatpush1.msra.mxu0 0.0
    %1625 = vmatprep.subr.mxu0 0.0
    %1626 = vmatpush1.msra.mxu0 0.0
    %1627 = vmatprep.subr.mxu0 0.0
    %1628 = vmatpush1.msra.mxu0 0.0
    %1629 = vmatprep.subr.mxu0 0.0
    %1630 = vmatpush1.msra.mxu0 0.0
    %1631 = vmatprep.subr.mxu0 0.0
    %1632 = vmatpush1.msra.mxu0 0.0
    %1633 = vmatprep.subr.mxu0 0.0
    %1634 = vmatpush1.msra.mxu0 0.0
    %1635 = vmatprep.subr.mxu0 0.0
    %1636 = vmatpush1.msra.mxu0 0.0
    %1637 = vmatprep.subr.mxu0 0.0
    %1638 = vmatpush1.msra.mxu0 0.0
    %1639 = vmatprep.subr.mxu0 0.0
    %1640 = vmatpush1.msra.mxu0 0.0
    %1641 = vmatprep.subr.mxu0 0.0
    %1642 = vmatpush1.msra.mxu0 0.0
    %1643 = vmatprep.subr.mxu0 0.0
    %1644 = vmatpush1.msra.mxu0 0.0
    %1645 = vmatprep.subr.mxu0 0.0
    %1646 = vmatpush1.msra.mxu0 0.0
    %1647 = vmatprep.subr.mxu0 0.0
    %1648 = vmatpush1.msra.mxu0 0.0
    %1649 = vmatprep.subr.mxu0 0.0
    %1650 = vmatpush1.msra.mxu0 0.0
    %1651 = vmatprep.subr.mxu0 0.0
    %1652 = vmatpush1.msra.mxu0 0.0
    %1653 = vmatprep.subr.mxu0 0.0
    %1654 = vmatpush1.msra.mxu0 0.0
    %1655 = vmatprep.subr.mxu0 0.0
    %1656 = vmatpush1.msra.mxu0 0.0
    %1657 = vmatprep.subr.mxu0 0.0
    %1658 = vmatpush1.msra.mxu0 0.0
    %1659 = vmatprep.subr.mxu0 0.0
    %1660 = vmatpush1.msra.mxu0 0.0
    %1661 = vmatprep.subr.mxu0 0.0
    %1662 = vmatpush1.msra.mxu0 0.0
    %1663 = vmatprep.subr.mxu0 0.0
    %1664 = vmatpush1.msra.mxu0 0.0
    %1665 = vmatprep.mubr.f32.mxu0 0.0
    %1666 = vmatmul.mubr.f32.gmra.mrb[0].mxu0 %v837
    %v1667 = vpop.f32.mrb[0].mxu0
    %v1668 = vadd.f32 %v368, %v1667
    %v1669 = vpop.f32.mrb[0].mxu0
    %v1670 = vadd.f32 %v370, %v1669
    %1671 = vmatprep.mubr.f32.mxu0 0.0
    %1672 = vmatmul.mubr.f32.gmra.mrb[0].mxu0 %v840
    %v1673 = vpop.f32.mrb[0].mxu0
    %v1674 = vadd.f32 %v374, %v1673
    %v1675 = vpop.f32.mrb[0].mxu0
    %v1676 = vadd.f32 %v376, %v1675
    %1677 = vdwg.mxu0
    %1678 = vmatprep.subr.mxu0 0.0
    %1679 = vmatpush1.msra.mxu0 %v1668
    %1680 = vmatprep.subr.mxu0 0.0
    %1681 = vmatpush1.msra.mxu0 %v1674
    %1682 = vmatprep.subr.mxu0 0.0
    %1683 = vmatpush1.msra.mxu0 %v1670
    %1684 = vmatprep.subr.mxu0 0.0
    %1685 = vmatpush1.msra.mxu0 %v1676
    %1686 = vmatprep.subr.mxu0 0.0
    %1687 = vmatpush1.msra.mxu0 0.0
    %1688 = vmatprep.subr.mxu0 0.0
    %1689 = vmatpush1.msra.mxu0 0.0
    %1690 = vmatprep.subr.mxu0 0.0
    %1691 = vmatpush1.msra.mxu0 0.0
    %1692 = vmatprep.subr.mxu0 0.0
    %1693 = vmatpush1.msra.mxu0 0.0
    %1694 = vmatprep.subr.mxu0 0.0
    %1695 = vmatpush1.msra.mxu0 0.0
    %1696 = vmatprep.subr.mxu0 0.0
    %1697 = vmatpush1.msra.mxu0 0.0
    %1698 = vmatprep.subr.mxu0 0.0
    %1699 = vmatpush1.msra.mxu0 0.0
    %1700 = vmatprep.subr.mxu0 0.0
    %1701 = vmatpush1.msra.mxu0 0.0
    %1702 = vmatprep.subr.mxu0 0.0
    %1703 = vmatpush1.msra.mxu0 0.0
    %1704 = vmatprep.subr.mxu0 0.0
    %1705 = vmatpush1.msra.mxu0 0.0
    %1706 = vmatprep.subr.mxu0 0.0
    %1707 = vmatpush1.msra.mxu0 0.0
    %1708 = vmatprep.subr.mxu0 0.0
    %1709 = vmatpush1.msra.mxu0 0.0
    %1710 = vmatprep.subr.mxu0 0.0
    %1711 = vmatpush1.msra.mxu0 0.0
    %1712 = vmatprep.subr.mxu0 0.0
    %1713 = vmatpush1.msra.mxu0 0.0
    %1714 = vmatprep.subr.mxu0 0.0
    %1715 = vmatpush1.msra.mxu0 0.0
    %1716 = vmatprep.subr.mxu0 0.0
    %1717 = vmatpush1.msra.mxu0 0.0
    %1718 = vmatprep.subr.mxu0 0.0
    %1719 = vmatpush1.msra.mxu0 0.0
    %1720 = vmatprep.subr.mxu0 0.0
    %1721 = vmatpush1.msra.mxu0 0.0
    %1722 = vmatprep.subr.mxu0 0.0
    %1723 = vmatpush1.msra.mxu0 0.0
    %1724 = vmatprep.subr.mxu0 0.0
    %1725 = vmatpush1.msra.mxu0 0.0
    %1726 = vmatprep.subr.mxu0 0.0
    %1727 = vmatpush1.msra.mxu0 0.0
    %1728 = vmatprep.subr.mxu0 0.0
    %1729 = vmatpush1.msra.mxu0 0.0
    %1730 = vmatprep.subr.mxu0 0.0
    %1731 = vmatpush1.msra.mxu0 0.0
    %1732 = vmatprep.subr.mxu0 0.0
    %1733 = vmatpush1.msra.mxu0 0.0
    %1734 = vmatprep.subr.mxu0 0.0
    %1735 = vmatpush1.msra.mxu0 0.0
    %1736 = vmatprep.subr.mxu0 0.0
    %1737 = vmatpush1.msra.mxu0 0.0
    %1738 = vmatprep.subr.mxu0 0.0
    %1739 = vmatpush1.msra.mxu0 0.0
    %1740 = vmatprep.subr.mxu0 0.0
    %1741 = vmatpush1.msra.mxu0 0.0
    %1742 = vmatprep.mubr.f32.mxu0 0.0
    %1743 = vmatmul.mubr.f32.gmra.mrb[0].mxu0 %v921
    %v1744 = vpop.f32.mrb[0].mxu0
    %v1745 = vadd.f32 0.0, %v1744
    %v1746 = vpop.f32.mrb[0].mxu0
    %1747 = vdwg.mxu0
    %s1748 = scalar_lea.vmem [#allocation10], 384
    %v1749 = vld [vmem:[%s1748] sm:$0xff]
    %v1750 = vld [vmem:[%s1748 + $0x8] sm:$0xff]
    %v1751 = vld [vmem:[%s1748 + $0x10] sm:$0xff]
    %v1752 = vld [vmem:[%s1748 + $0x18] sm:$0xff]
    %v1753 = vld [vmem:[%s1748 + $0x20] sm:$0xff]
    %v1754 = vld [vmem:[%s1748 + $0x28] sm:$0xff]
    %v1755 = vld [vmem:[%s1748 + $0x30] sm:$0xff]
    %v1756 = vld [vmem:[%s1748 + $0x38] sm:$0xff]
    %v1757 = vld [vmem:[%s1748 + $0x40] sm:$0xff]
    %v1758 = vld [vmem:[%s1748 + $0x48] sm:$0xff]
    %v1759 = vld [vmem:[%s1748 + $0x50] sm:$0xff]
    %v1760 = vld [vmem:[%s1748 + $0x58] sm:$0xff]
    %v1761 = vld [vmem:[%s1748 + $0x60] sm:$0xff]
    %v1762 = vld [vmem:[%s1748 + $0x68] sm:$0xff]
    %v1763 = vld [vmem:[%s1748 + $0x70] sm:$0xff]
    %v1764 = vld [vmem:[%s1748 + $0x78] sm:$0xff]
    %v1765 = vld [vmem:[%s1748 + $0x80] sm:$0xff]
    %v1766 = vld [vmem:[%s1748 + $0x88] sm:$0xff]
    %v1767 = vld [vmem:[%s1748 + $0x90] sm:$0xff]
    %v1768 = vld [vmem:[%s1748 + $0x98] sm:$0xff]
    %v1769 = vld [vmem:[%s1748 + $0xa0] sm:$0xff]
    %v1770 = vld [vmem:[%s1748 + $0xa8] sm:$0xff]
    %v1771 = vld [vmem:[%s1748 + $0xb0] sm:$0xff]
    %v1772 = vld [vmem:[%s1748 + $0xb8] sm:$0xff]
    %v1773 = vld [vmem:[%s1748 + $0xc0] sm:$0xff]
    %v1774 = vld [vmem:[%s1748 + $0xc8] sm:$0xff]
    %v1775 = vld [vmem:[%s1748 + $0xd0] sm:$0xff]
    %v1776 = vld [vmem:[%s1748 + $0xd8] sm:$0xff]
    %v1777 = vld [vmem:[%s1748 + $0xe0] sm:$0xff]
    %v1778 = vld [vmem:[%s1748 + $0xe8] sm:$0xff]
    %v1779 = vld [vmem:[%s1748 + $0xf0] sm:$0xff]
    %v1780 = vld [vmem:[%s1748 + $0xf8] sm:$0xff]
    %v1781 = vld [vmem:[%s1748 + $0x100] sm:$0xff]
    %v1782 = vld [vmem:[%s1748 + $0x108] sm:$0xff]
    %v1783 = vld [vmem:[%s1748 + $0x110] sm:$0xff]
    %v1784 = vld [vmem:[%s1748 + $0x118] sm:$0xff]
    %v1785 = vld [vmem:[%s1748 + $0x120] sm:$0xff]
    %v1786 = vld [vmem:[%s1748 + $0x128] sm:$0xff]
    %v1787 = vld [vmem:[%s1748 + $0x130] sm:$0xff]
    %v1788 = vld [vmem:[%s1748 + $0x138] sm:$0xff]
    %v1789 = vld [vmem:[%s1748 + $0x140] sm:$0xff]
    %v1790 = vld [vmem:[%s1748 + $0x148] sm:$0xff]
    %v1791 = vld [vmem:[%s1748 + $0x150] sm:$0xff]
    %v1792 = vld [vmem:[%s1748 + $0x158] sm:$0xff]
    %v1793 = vld [vmem:[%s1748 + $0x160] sm:$0xff]
    %v1794 = vld [vmem:[%s1748 + $0x168] sm:$0xff]
    %v1795 = vld [vmem:[%s1748 + $0x170] sm:$0xff]
    %v1796 = vld [vmem:[%s1748 + $0x178] sm:$0xff]
    %s1797 = scalar_lea.vmem [#allocation12], 3
    %v1798 = vld [vmem:[%s1797] sm:$0x7]
    %v1800 = vlaneseq
    %v1801 = vshrl.u32 %v1800, 7
    %v1802 = vsub.s32 0, %v1801
    %v1803 = vrot.slane %v1798, %v1802
    %v1804 = vlaneseq
    %v1805 = vshrl.u32 %v1804, 7
    %v1806 = vsub.s32 1, %v1805
    %v1807 = vrot.slane %v1798, %v1806
    %v1808 = vlaneseq
    %v1809 = vshrl.u32 %v1808, 7
    %v1810 = vsub.s32 2, %v1809
    %v1811 = vrot.slane %v1798, %v1810
    %1815 = vmatprep.subr.mxu0 %v1750
    %1816 = vmatpush1.msra.mxu0 %v1749
    %1817 = vmatprep.subr.mxu0 %v1753
    %1818 = vmatpush1.msra.mxu0 %v1752
    %1819 = vmatprep.subr.mxu0 %v1756
    %1820 = vmatpush1.msra.mxu0 %v1755
    %1821 = vmatprep.subr.mxu0 %v1759
    %1822 = vmatpush1.msra.mxu0 %v1758
    %1823 = vmatprep.subr.mxu0 %v1762
    %1824 = vmatpush1.msra.mxu0 %v1761
    %1825 = vmatprep.subr.mxu0 %v1765
    %1826 = vmatpush1.msra.mxu0 %v1764
    %1827 = vmatprep.subr.mxu0 %v1768
    %1828 = vmatpush1.msra.mxu0 %v1767
    %1829 = vmatprep.subr.mxu0 %v1771
    %1830 = vmatpush1.msra.mxu0 %v1770
    %1831 = vmatprep.subr.mxu0 %v1774
    %1832 = vmatpush1.msra.mxu0 %v1773
    %1833 = vmatprep.subr.mxu0 %v1777
    %1834 = vmatpush1.msra.mxu0 %v1776
    %1835 = vmatprep.subr.mxu0 %v1780
    %1836 = vmatpush1.msra.mxu0 %v1779
    %1837 = vmatprep.subr.mxu0 %v1783
    %1838 = vmatpush1.msra.mxu0 %v1782
    %1839 = vmatprep.subr.mxu0 %v1786
    %1840 = vmatpush1.msra.mxu0 %v1785
    %1841 = vmatprep.subr.mxu0 %v1789
    %1842 = vmatpush1.msra.mxu0 %v1788
    %1843 = vmatprep.subr.mxu0 %v1792
    %1844 = vmatpush1.msra.mxu0 %v1791
    %1845 = vmatprep.subr.mxu0 %v1795
    %1846 = vmatpush1.msra.mxu0 %v1794
    %1847 = vmatprep.subr.mxu0 0.0
    %1848 = vmatpush1.msra.mxu0 0.0
    %1849 = vmatprep.subr.mxu0 0.0
    %1850 = vmatpush1.msra.mxu0 0.0
    %1851 = vmatprep.subr.mxu0 0.0
    %1852 = vmatpush1.msra.mxu0 0.0
    %1853 = vmatprep.subr.mxu0 0.0
    %1854 = vmatpush1.msra.mxu0 0.0
    %1855 = vmatprep.subr.mxu0 0.0
    %1856 = vmatpush1.msra.mxu0 0.0
    %1857 = vmatprep.subr.mxu0 0.0
    %1858 = vmatpush1.msra.mxu0 0.0
    %1859 = vmatprep.subr.mxu0 0.0
    %1860 = vmatpush1.msra.mxu0 0.0
    %1861 = vmatprep.subr.mxu0 0.0
    %1862 = vmatpush1.msra.mxu0 0.0
    %1863 = vmatprep.subr.mxu0 0.0
    %1864 = vmatpush1.msra.mxu0 0.0
    %1865 = vmatprep.subr.mxu0 0.0
    %1866 = vmatpush1.msra.mxu0 0.0
    %1867 = vmatprep.subr.mxu0 0.0
    %1868 = vmatpush1.msra.mxu0 0.0
    %1869 = vmatprep.subr.mxu0 0.0
    %1870 = vmatpush1.msra.mxu0 0.0
    %1871 = vmatprep.subr.mxu0 0.0
    %1872 = vmatpush1.msra.mxu0 0.0
    %1873 = vmatprep.subr.mxu0 0.0
    %1874 = vmatpush1.msra.mxu0 0.0
    %1875 = vmatprep.subr.mxu0 0.0
    %1876 = vmatpush1.msra.mxu0 0.0
    %1877 = vmatprep.subr.mxu0 0.0
    %1878 = vmatpush1.msra.mxu0 0.0
    %1879 = vmatprep.mubr.f32.mxu0 0.0
    %1880 = vmatmul.mubr.f32.gmra.mrb[0].mxu0 %v1745
    %v1881 = vpop.f32.mrb[0].mxu0
    %v1882 = vadd.f32 %v1803, %v1881
    %v1883 = vpop.f32.mrb[0].mxu0
    %v1884 = vadd.f32 %v1807, %v1883
    %1885 = vdwg.mxu0
    %1886 = vmatprep.subr.mxu0 0.0
    %1887 = vmatpush1.msra.mxu0 %v1751
    %1888 = vmatprep.subr.mxu0 0.0
    %1889 = vmatpush1.msra.mxu0 %v1754
    %1890 = vmatprep.subr.mxu0 0.0
    %1891 = vmatpush1.msra.mxu0 %v1757
    %1892 = vmatprep.subr.mxu0 0.0
    %1893 = vmatpush1.msra.mxu0 %v1760
    %1894 = vmatprep.subr.mxu0 0.0
    %1895 = vmatpush1.msra.mxu0 %v1763
    %1896 = vmatprep.subr.mxu0 0.0
    %1897 = vmatpush1.msra.mxu0 %v1766
    %1898 = vmatprep.subr.mxu0 0.0
    %1899 = vmatpush1.msra.mxu0 %v1769
    %1900 = vmatprep.subr.mxu0 0.0
    %1901 = vmatpush1.msra.mxu0 %v1772
    %1902 = vmatprep.subr.mxu0 0.0
    %1903 = vmatpush1.msra.mxu0 %v1775
    %1904 = vmatprep.subr.mxu0 0.0
    %1905 = vmatpush1.msra.mxu0 %v1778
    %1906 = vmatprep.subr.mxu0 0.0
    %1907 = vmatpush1.msra.mxu0 %v1781
    %1908 = vmatprep.subr.mxu0 0.0
    %1909 = vmatpush1.msra.mxu0 %v1784
    %1910 = vmatprep.subr.mxu0 0.0
    %1911 = vmatpush1.msra.mxu0 %v1787
    %1912 = vmatprep.subr.mxu0 0.0
    %1913 = vmatpush1.msra.mxu0 %v1790
    %1914 = vmatprep.subr.mxu0 0.0
    %1915 = vmatpush1.msra.mxu0 %v1793
    %1916 = vmatprep.subr.mxu0 0.0
    %1917 = vmatpush1.msra.mxu0 %v1796
    %1918 = vmatprep.subr.mxu0 0.0
    %1919 = vmatpush1.msra.mxu0 0.0
    %1920 = vmatprep.subr.mxu0 0.0
    %1921 = vmatpush1.msra.mxu0 0.0
    %1922 = vmatprep.subr.mxu0 0.0
    %1923 = vmatpush1.msra.mxu0 0.0
    %1924 = vmatprep.subr.mxu0 0.0
    %1925 = vmatpush1.msra.mxu0 0.0
    %1926 = vmatprep.subr.mxu0 0.0
    %1927 = vmatpush1.msra.mxu0 0.0
    %1928 = vmatprep.subr.mxu0 0.0
    %1929 = vmatpush1.msra.mxu0 0.0
    %1930 = vmatprep.subr.mxu0 0.0
    %1931 = vmatpush1.msra.mxu0 0.0
    %1932 = vmatprep.subr.mxu0 0.0
    %1933 = vmatpush1.msra.mxu0 0.0
    %1934 = vmatprep.subr.mxu0 0.0
    %1935 = vmatpush1.msra.mxu0 0.0
    %1936 = vmatprep.subr.mxu0 0.0
    %1937 = vmatpush1.msra.mxu0 0.0
    %1938 = vmatprep.subr.mxu0 0.0
    %1939 = vmatpush1.msra.mxu0 0.0
    %1940 = vmatprep.subr.mxu0 0.0
    %1941 = vmatpush1.msra.mxu0 0.0
    %1942 = vmatprep.subr.mxu0 0.0
    %1943 = vmatpush1.msra.mxu0 0.0
    %1944 = vmatprep.subr.mxu0 0.0
    %1945 = vmatpush1.msra.mxu0 0.0
    %1946 = vmatprep.subr.mxu0 0.0
    %1947 = vmatpush1.msra.mxu0 0.0
    %1948 = vmatprep.subr.mxu0 0.0
    %1949 = vmatpush1.msra.mxu0 0.0
    %1950 = vmatprep.mubr.f32.mxu0 0.0
    %1951 = vmatmul.mubr.f32.gmra.mrb[0].mxu0 %v1745
    %v1952 = vpop.f32.mrb[0].mxu0
    %v1953 = vadd.f32 %v1811, %v1952
    %v1954 = vpop.f32.mrb[0].mxu0
    %1955 = vdwg.mxu0
    %v1956 = vadd.f32 %v1882, %v1527
    %v1957 = vxor.u32 %v1956, 2147483648
    %v1958 = vmul.f32 %v1957, 1.442695
    %v1959 = vpow.pop %v1958
    %v1960 = vadd.f32 %v1959, 1.0
    %v1961 = vrcp.pop %v1960
    %v1962 = vmul.f32 1.0, %v1961
    %v1963 = vadd.f32 %v1884, %v1529
    %v1964 = vxor.u32 %v1963, 2147483648
    %v1965 = vmul.f32 %v1964, 1.442695
    %v1966 = vpow.pop %v1965
    %v1967 = vadd.f32 %v1966, 1.0
    %v1968 = vrcp.pop %v1967
    %v1969 = vmul.f32 1.0, %v1968
    %v1970 = vmul.f32 %v1962, %v1598
    %v1971 = vadd.f32 %v1953, %v1970
    %v1972 = vtanh.pop %v1971
    %v1973 = vsub.f32 1.0, %v1969
    %v1974 = vmul.f32 %v1973, %v1972
    %v1975 = vmul.f32 %v1969, %v1219
    %v1976 = vadd.f32 %v1974, %v1975
    %s1977 = scalar_lea.vmem [#allocation4], 896
    %v1978 = vld [vmem:[%s1977] sm:$0xff]
    %v1979 = vld [vmem:[%s1977 + $0x8] sm:$0xff]
    %v1980 = vld [vmem:[%s1977 + $0x10] sm:$0xff]
    %v1981 = vld [vmem:[%s1977 + $0x18] sm:$0xff]
    %v1982 = vld [vmem:[%s1977 + $0x20] sm:$0xff]
    %v1983 = vld [vmem:[%s1977 + $0x28] sm:$0xff]
    %v1984 = vld [vmem:[%s1977 + $0x30] sm:$0xff]
    %v1985 = vld [vmem:[%s1977 + $0x38] sm:$0xff]
    %v1986 = vld [vmem:[%s1977 + $0x40] sm:$0xff]
    %v1987 = vld [vmem:[%s1977 + $0x48] sm:$0xff]
    %v1988 = vld [vmem:[%s1977 + $0x50] sm:$0xff]
    %v1989 = vld [vmem:[%s1977 + $0x58] sm:$0xff]
    %v1990 = vld [vmem:[%s1977 + $0x60] sm:$0xff]
    %v1991 = vld [vmem:[%s1977 + $0x68] sm:$0xff]
    %v1992 = vld [vmem:[%s1977 + $0x70] sm:$0xff]
    %v1993 = vld [vmem:[%s1977 + $0x78] sm:$0xff]
    %v1994 = vld [vmem:[%s1977 + $0x80] sm:$0xff]
    %v1995 = vld [vmem:[%s1977 + $0x88] sm:$0xff]
    %v1996 = vld [vmem:[%s1977 + $0x90] sm:$0xff]
    %v1997 = vld [vmem:[%s1977 + $0x98] sm:$0xff]
    %v1998 = vld [vmem:[%s1977 + $0xa0] sm:$0xff]
    %v1999 = vld [vmem:[%s1977 + $0xa8] sm:$0xff]
    %v2000 = vld [vmem:[%s1977 + $0xb0] sm:$0xff]
    %v2001 = vld [vmem:[%s1977 + $0xb8] sm:$0xff]
    %v2002 = vld [vmem:[%s1977 + $0xc0] sm:$0xff]
    %v2003 = vld [vmem:[%s1977 + $0xc8] sm:$0xff]
    %v2004 = vld [vmem:[%s1977 + $0xd0] sm:$0xff]
    %v2005 = vld [vmem:[%s1977 + $0xd8] sm:$0xff]
    %v2006 = vld [vmem:[%s1977 + $0xe0] sm:$0xff]
    %v2007 = vld [vmem:[%s1977 + $0xe8] sm:$0xff]
    %v2008 = vld [vmem:[%s1977 + $0xf0] sm:$0xff]
    %v2009 = vld [vmem:[%s1977 + $0xf8] sm:$0xff]
    %v2010 = vld [vmem:[%s1977 + $0x100] sm:$0xff]
    %v2011 = vld [vmem:[%s1977 + $0x108] sm:$0xff]
    %v2012 = vld [vmem:[%s1977 + $0x110] sm:$0xff]
    %v2013 = vld [vmem:[%s1977 + $0x118] sm:$0xff]
    %v2014 = vld [vmem:[%s1977 + $0x120] sm:$0xff]
    %v2015 = vld [vmem:[%s1977 + $0x128] sm:$0xff]
    %v2016 = vld [vmem:[%s1977 + $0x130] sm:$0xff]
    %v2017 = vld [vmem:[%s1977 + $0x138] sm:$0xff]
    %v2018 = vld [vmem:[%s1977 + $0x140] sm:$0xff]
    %v2019 = vld [vmem:[%s1977 + $0x148] sm:$0xff]
    %v2020 = vld [vmem:[%s1977 + $0x150] sm:$0xff]
    %v2021 = vld [vmem:[%s1977 + $0x158] sm:$0xff]
    %v2022 = vld [vmem:[%s1977 + $0x160] sm:$0xff]
    %v2023 = vld [vmem:[%s1977 + $0x168] sm:$0xff]
    %v2024 = vld [vmem:[%s1977 + $0x170] sm:$0xff]
    %v2025 = vld [vmem:[%s1977 + $0x178] sm:$0xff]
    %v2026 = vld [vmem:[%s1977 + $0x180] sm:$0xff]
    %v2027 = vld [vmem:[%s1977 + $0x188] sm:$0xff]
    %v2028 = vld [vmem:[%s1977 + $0x190] sm:$0xff]
    %v2029 = vld [vmem:[%s1977 + $0x198] sm:$0xff]
    %v2030 = vld [vmem:[%s1977 + $0x1a0] sm:$0xff]
    %v2031 = vld [vmem:[%s1977 + $0x1a8] sm:$0xff]
    %v2032 = vld [vmem:[%s1977 + $0x1b0] sm:$0xff]
    %v2033 = vld [vmem:[%s1977 + $0x1b8] sm:$0xff]
    %s2034 = scalar_lea.vmem [#allocation6], 14
    %v2035 = vld [vmem:[%s2034] sm:$0xff]
    %v2037 = vlaneseq
    %v2038 = vshrl.u32 %v2037, 7
    %v2039 = vsub.s32 0, %v2038
    %v2040 = vrot.slane %v2035, %v2039
    %v2041 = vlaneseq
    %v2042 = vshrl.u32 %v2041, 7
    %v2043 = vsub.s32 1, %v2042
    %v2044 = vrot.slane %v2035, %v2043
    %v2045 = vlaneseq
    %v2046 = vshrl.u32 %v2045, 7
    %v2047 = vsub.s32 2, %v2046
    %v2048 = vrot.slane %v2035, %v2047
    %v2049 = vlaneseq
    %v2050 = vshrl.u32 %v2049, 7
    %v2051 = vsub.s32 3, %v2050
    %v2052 = vrot.slane %v2035, %v2051
    %v2053 = vlaneseq
    %v2054 = vshrl.u32 %v2053, 7
    %v2055 = vsub.s32 4, %v2054
    %v2056 = vrot.slane %v2035, %v2055
    %v2057 = vlaneseq
    %v2058 = vshrl.u32 %v2057, 7
    %v2059 = vsub.s32 5, %v2058
    %v2060 = vrot.slane %v2035, %v2059
    %v2061 = vlaneseq
    %v2062 = vshrl.u32 %v2061, 7
    %v2063 = vsub.s32 6, %v2062
    %v2064 = vrot.slane %v2035, %v2063
    %v2073 = vsel %vm548, %v1976, 0
    %2075 = vmatprep.subr.mxu0 %v1979
    %2076 = vmatpush1.msra.mxu0 %v1978
    %2077 = vmatprep.subr.mxu0 %v1986
    %2078 = vmatpush1.msra.mxu0 %v1985
    %2079 = vmatprep.subr.mxu0 %v1993
    %2080 = vmatpush1.msra.mxu0 %v1992
    %2081 = vmatprep.subr.mxu0 %v2000
    %2082 = vmatpush1.msra.mxu0 %v1999
    %2083 = vmatprep.subr.mxu0 %v2007
    %2084 = vmatpush1.msra.mxu0 %v2006
    %2085 = vmatprep.subr.mxu0 %v2014
    %2086 = vmatpush1.msra.mxu0 %v2013
    %2087 = vmatprep.subr.mxu0 %v2021
    %2088 = vmatpush1.msra.mxu0 %v2020
    %2089 = vmatprep.subr.mxu0 %v2028
    %2090 = vmatpush1.msra.mxu0 %v2027
    %2091 = vmatprep.subr.mxu0 0.0
    %2092 = vmatpush1.msra.mxu0 0.0
    %2093 = vmatprep.subr.mxu0 0.0
    %2094 = vmatpush1.msra.mxu0 0.0
    %2095 = vmatprep.subr.mxu0 0.0
    %2096 = vmatpush1.msra.mxu0 0.0
    %2097 = vmatprep.subr.mxu0 0.0
    %2098 = vmatpush1.msra.mxu0 0.0
    %2099 = vmatprep.subr.mxu0 0.0
    %2100 = vmatpush1.msra.mxu0 0.0
    %2101 = vmatprep.subr.mxu0 0.0
    %2102 = vmatpush1.msra.mxu0 0.0
    %2103 = vmatprep.subr.mxu0 0.0
    %2104 = vmatpush1.msra.mxu0 0.0
    %2105 = vmatprep.subr.mxu0 0.0
    %2106 = vmatpush1.msra.mxu0 0.0
    %2107 = vmatprep.subr.mxu0 0.0
    %2108 = vmatpush1.msra.mxu0 0.0
    %2109 = vmatprep.subr.mxu0 0.0
    %2110 = vmatpush1.msra.mxu0 0.0
    %2111 = vmatprep.subr.mxu0 0.0
    %2112 = vmatpush1.msra.mxu0 0.0
    %2113 = vmatprep.subr.mxu0 0.0
    %2114 = vmatpush1.msra.mxu0 0.0
    %2115 = vmatprep.subr.mxu0 0.0
    %2116 = vmatpush1.msra.mxu0 0.0
    %2117 = vmatprep.subr.mxu0 0.0
    %2118 = vmatpush1.msra.mxu0 0.0
    %2119 = vmatprep.subr.mxu0 0.0
    %2120 = vmatpush1.msra.mxu0 0.0
    %2121 = vmatprep.subr.mxu0 0.0
    %2122 = vmatpush1.msra.mxu0 0.0
    %2123 = vmatprep.subr.mxu0 0.0
    %2124 = vmatpush1.msra.mxu0 0.0
    %2125 = vmatprep.subr.mxu0 0.0
    %2126 = vmatpush1.msra.mxu0 0.0
    %2127 = vmatprep.subr.mxu0 0.0
    %2128 = vmatpush1.msra.mxu0 0.0
    %2129 = vmatprep.subr.mxu0 0.0
    %2130 = vmatpush1.msra.mxu0 0.0
    %2131 = vmatprep.subr.mxu0 0.0
    %2132 = vmatpush1.msra.mxu0 0.0
    %2133 = vmatprep.subr.mxu0 0.0
    %2134 = vmatpush1.msra.mxu0 0.0
    %2135 = vmatprep.subr.mxu0 0.0
    %2136 = vmatpush1.msra.mxu0 0.0
    %2137 = vmatprep.subr.mxu0 0.0
    %2138 = vmatpush1.msra.mxu0 0.0
    %2139 = vmatprep.mubr.f32.mxu0 0.0
    %2140 = vmatmul.mubr.f32.gmra.mrb[0].mxu0 %v2073
    %v2141 = vpop.f32.mrb[0].mxu0
    %v2142 = vadd.f32 %v2040, %v2141
    %v2143 = vpop.f32.mrb[0].mxu0
    %v2144 = vadd.f32 %v2044, %v2143
    %2145 = vdwg.mxu0
    %2146 = vmatprep.subr.mxu0 %v1981
    %2147 = vmatpush1.msra.mxu0 %v1980
    %2148 = vmatprep.subr.mxu0 %v1988
    %2149 = vmatpush1.msra.mxu0 %v1987
    %2150 = vmatprep.subr.mxu0 %v1995
    %2151 = vmatpush1.msra.mxu0 %v1994
    %2152 = vmatprep.subr.mxu0 %v2002
    %2153 = vmatpush1.msra.mxu0 %v2001
    %2154 = vmatprep.subr.mxu0 %v2009
    %2155 = vmatpush1.msra.mxu0 %v2008
    %2156 = vmatprep.subr.mxu0 %v2016
    %2157 = vmatpush1.msra.mxu0 %v2015
    %2158 = vmatprep.subr.mxu0 %v2023
    %2159 = vmatpush1.msra.mxu0 %v2022
    %2160 = vmatprep.subr.mxu0 %v2030
    %2161 = vmatpush1.msra.mxu0 %v2029
    %2162 = vmatprep.subr.mxu0 0.0
    %2163 = vmatpush1.msra.mxu0 0.0
    %2164 = vmatprep.subr.mxu0 0.0
    %2165 = vmatpush1.msra.mxu0 0.0
    %2166 = vmatprep.subr.mxu0 0.0
    %2167 = vmatpush1.msra.mxu0 0.0
    %2168 = vmatprep.subr.mxu0 0.0
    %2169 = vmatpush1.msra.mxu0 0.0
    %2170 = vmatprep.subr.mxu0 0.0
    %2171 = vmatpush1.msra.mxu0 0.0
    %2172 = vmatprep.subr.mxu0 0.0
    %2173 = vmatpush1.msra.mxu0 0.0
    %2174 = vmatprep.subr.mxu0 0.0
    %2175 = vmatpush1.msra.mxu0 0.0
    %2176 = vmatprep.subr.mxu0 0.0
    %2177 = vmatpush1.msra.mxu0 0.0
    %2178 = vmatprep.subr.mxu0 0.0
    %2179 = vmatpush1.msra.mxu0 0.0
    %2180 = vmatprep.subr.mxu0 0.0
    %2181 = vmatpush1.msra.mxu0 0.0
    %2182 = vmatprep.subr.mxu0 0.0
    %2183 = vmatpush1.msra.mxu0 0.0
    %2184 = vmatprep.subr.mxu0 0.0
    %2185 = vmatpush1.msra.mxu0 0.0
    %2186 = vmatprep.subr.mxu0 0.0
    %2187 = vmatpush1.msra.mxu0 0.0
    %2188 = vmatprep.subr.mxu0 0.0
    %2189 = vmatpush1.msra.mxu0 0.0
    %2190 = vmatprep.subr.mxu0 0.0
    %2191 = vmatpush1.msra.mxu0 0.0
    %2192 = vmatprep.subr.mxu0 0.0
    %2193 = vmatpush1.msra.mxu0 0.0
    %2194 = vmatprep.subr.mxu0 0.0
    %2195 = vmatpush1.msra.mxu0 0.0
    %2196 = vmatprep.subr.mxu0 0.0
    %2197 = vmatpush1.msra.mxu0 0.0
    %2198 = vmatprep.subr.mxu0 0.0
    %2199 = vmatpush1.msra.mxu0 0.0
    %2200 = vmatprep.subr.mxu0 0.0
    %2201 = vmatpush1.msra.mxu0 0.0
    %2202 = vmatprep.subr.mxu0 0.0
    %2203 = vmatpush1.msra.mxu0 0.0
    %2204 = vmatprep.subr.mxu0 0.0
    %2205 = vmatpush1.msra.mxu0 0.0
    %2206 = vmatprep.subr.mxu0 0.0
    %2207 = vmatpush1.msra.mxu0 0.0
    %2208 = vmatprep.subr.mxu0 0.0
    %2209 = vmatpush1.msra.mxu0 0.0
    %2210 = vmatprep.mubr.f32.mxu0 0.0
    %2211 = vmatmul.mubr.f32.gmra.mrb[0].mxu0 %v2073
    %v2212 = vpop.f32.mrb[0].mxu0
    %v2213 = vadd.f32 %v2048, %v2212
    %v2214 = vpop.f32.mrb[0].mxu0
    %v2215 = vadd.f32 %v2052, %v2214
    %2216 = vdwg.mxu0
    %2217 = vmatprep.subr.mxu0 %v1983
    %2218 = vmatpush1.msra.mxu0 %v1982
    %2219 = vmatprep.subr.mxu0 %v1990
    %2220 = vmatpush1.msra.mxu0 %v1989
    %2221 = vmatprep.subr.mxu0 %v1997
    %2222 = vmatpush1.msra.mxu0 %v1996
    %2223 = vmatprep.subr.mxu0 %v2004
    %2224 = vmatpush1.msra.mxu0 %v2003
    %2225 = vmatprep.subr.mxu0 %v2011
    %2226 = vmatpush1.msra.mxu0 %v2010
    %2227 = vmatprep.subr.mxu0 %v2018
    %2228 = vmatpush1.msra.mxu0 %v2017
    %2229 = vmatprep.subr.mxu0 %v2025
    %2230 = vmatpush1.msra.mxu0 %v2024
    %2231 = vmatprep.subr.mxu0 %v2032
    %2232 = vmatpush1.msra.mxu0 %v2031
    %2233 = vmatprep.subr.mxu0 0.0
    %2234 = vmatpush1.msra.mxu0 0.0
    %2235 = vmatprep.subr.mxu0 0.0
    %2236 = vmatpush1.msra.mxu0 0.0
    %2237 = vmatprep.subr.mxu0 0.0
    %2238 = vmatpush1.msra.mxu0 0.0
    %2239 = vmatprep.subr.mxu0 0.0
    %2240 = vmatpush1.msra.mxu0 0.0
    %2241 = vmatprep.subr.mxu0 0.0
    %2242 = vmatpush1.msra.mxu0 0.0
    %2243 = vmatprep.subr.mxu0 0.0
    %2244 = vmatpush1.msra.mxu0 0.0
    %2245 = vmatprep.subr.mxu0 0.0
    %2246 = vmatpush1.msra.mxu0 0.0
    %2247 = vmatprep.subr.mxu0 0.0
    %2248 = vmatpush1.msra.mxu0 0.0
    %2249 = vmatprep.subr.mxu0 0.0
    %2250 = vmatpush1.msra.mxu0 0.0
    %2251 = vmatprep.subr.mxu0 0.0
    %2252 = vmatpush1.msra.mxu0 0.0
    %2253 = vmatprep.subr.mxu0 0.0
    %2254 = vmatpush1.msra.mxu0 0.0
    %2255 = vmatprep.subr.mxu0 0.0
    %2256 = vmatpush1.msra.mxu0 0.0
    %2257 = vmatprep.subr.mxu0 0.0
    %2258 = vmatpush1.msra.mxu0 0.0
    %2259 = vmatprep.subr.mxu0 0.0
    %2260 = vmatpush1.msra.mxu0 0.0
    %2261 = vmatprep.subr.mxu0 0.0
    %2262 = vmatpush1.msra.mxu0 0.0
    %2263 = vmatprep.subr.mxu0 0.0
    %2264 = vmatpush1.msra.mxu0 0.0
    %2265 = vmatprep.subr.mxu0 0.0
    %2266 = vmatpush1.msra.mxu0 0.0
    %2267 = vmatprep.subr.mxu0 0.0
    %2268 = vmatpush1.msra.mxu0 0.0
    %2269 = vmatprep.subr.mxu0 0.0
    %2270 = vmatpush1.msra.mxu0 0.0
    %2271 = vmatprep.subr.mxu0 0.0
    %2272 = vmatpush1.msra.mxu0 0.0
    %2273 = vmatprep.subr.mxu0 0.0
    %2274 = vmatpush1.msra.mxu0 0.0
    %2275 = vmatprep.subr.mxu0 0.0
    %2276 = vmatpush1.msra.mxu0 0.0
    %2277 = vmatprep.subr.mxu0 0.0
    %2278 = vmatpush1.msra.mxu0 0.0
    %2279 = vmatprep.subr.mxu0 0.0
    %2280 = vmatpush1.msra.mxu0 0.0
    %2281 = vmatprep.mubr.f32.mxu0 0.0
    %2282 = vmatmul.mubr.f32.gmra.mrb[0].mxu0 %v2073
    %v2283 = vpop.f32.mrb[0].mxu0
    %v2284 = vadd.f32 %v2056, %v2283
    %v2285 = vpop.f32.mrb[0].mxu0
    %v2286 = vadd.f32 %v2060, %v2285
    %2287 = vdwg.mxu0
    %2288 = vmatprep.subr.mxu0 0.0
    %2289 = vmatpush1.msra.mxu0 %v1984
    %2290 = vmatprep.subr.mxu0 0.0
    %2291 = vmatpush1.msra.mxu0 %v1991
    %2292 = vmatprep.subr.mxu0 0.0
    %2293 = vmatpush1.msra.mxu0 %v1998
    %2294 = vmatprep.subr.mxu0 0.0
    %2295 = vmatpush1.msra.mxu0 %v2005
    %2296 = vmatprep.subr.mxu0 0.0
    %2297 = vmatpush1.msra.mxu0 %v2012
    %2298 = vmatprep.subr.mxu0 0.0
    %2299 = vmatpush1.msra.mxu0 %v2019
    %2300 = vmatprep.subr.mxu0 0.0
    %2301 = vmatpush1.msra.mxu0 %v2026
    %2302 = vmatprep.subr.mxu0 0.0
    %2303 = vmatpush1.msra.mxu0 %v2033
    %2304 = vmatprep.subr.mxu0 0.0
    %2305 = vmatpush1.msra.mxu0 0.0
    %2306 = vmatprep.subr.mxu0 0.0
    %2307 = vmatpush1.msra.mxu0 0.0
    %2308 = vmatprep.subr.mxu0 0.0
    %2309 = vmatpush1.msra.mxu0 0.0
    %2310 = vmatprep.subr.mxu0 0.0
    %2311 = vmatpush1.msra.mxu0 0.0
    %2312 = vmatprep.subr.mxu0 0.0
    %2313 = vmatpush1.msra.mxu0 0.0
    %2314 = vmatprep.subr.mxu0 0.0
    %2315 = vmatpush1.msra.mxu0 0.0
    %2316 = vmatprep.subr.mxu0 0.0
    %2317 = vmatpush1.msra.mxu0 0.0
    %2318 = vmatprep.subr.mxu0 0.0
    %2319 = vmatpush1.msra.mxu0 0.0
    %2320 = vmatprep.subr.mxu0 0.0
    %2321 = vmatpush1.msra.mxu0 0.0
    %2322 = vmatprep.subr.mxu0 0.0
    %2323 = vmatpush1.msra.mxu0 0.0
    %2324 = vmatprep.subr.mxu0 0.0
    %2325 = vmatpush1.msra.mxu0 0.0
    %2326 = vmatprep.subr.mxu0 0.0
    %2327 = vmatpush1.msra.mxu0 0.0
    %2328 = vmatprep.subr.mxu0 0.0
    %2329 = vmatpush1.msra.mxu0 0.0
    %2330 = vmatprep.subr.mxu0 0.0
    %2331 = vmatpush1.msra.mxu0 0.0
    %2332 = vmatprep.subr.mxu0 0.0
    %2333 = vmatpush1.msra.mxu0 0.0
    %2334 = vmatprep.subr.mxu0 0.0
    %2335 = vmatpush1.msra.mxu0 0.0
    %2336 = vmatprep.subr.mxu0 0.0
    %2337 = vmatpush1.msra.mxu0 0.0
    %2338 = vmatprep.subr.mxu0 0.0
    %2339 = vmatpush1.msra.mxu0 0.0
    %2340 = vmatprep.subr.mxu0 0.0
    %2341 = vmatpush1.msra.mxu0 0.0
    %2342 = vmatprep.subr.mxu0 0.0
    %2343 = vmatpush1.msra.mxu0 0.0
    %2344 = vmatprep.subr.mxu0 0.0
    %2345 = vmatpush1.msra.mxu0 0.0
    %2346 = vmatprep.subr.mxu0 0.0
    %2347 = vmatpush1.msra.mxu0 0.0
    %2348 = vmatprep.subr.mxu0 0.0
    %2349 = vmatpush1.msra.mxu0 0.0
    %2350 = vmatprep.subr.mxu0 0.0
    %2351 = vmatpush1.msra.mxu0 0.0
    %2352 = vmatprep.mubr.f32.mxu0 0.0
    %2353 = vmatmul.mubr.f32.gmra.mrb[0].mxu0 %v2073
    %v2354 = vpop.f32.mrb[0].mxu0
    %v2355 = vadd.f32 %v2064, %v2354
    %v2356 = vpop.f32.mrb[0].mxu0
    %2357 = vdwg.mxu0
    %2358 = vmatprep.subr.mxu0 %v2144
    %2359 = vmatpush1.msra.mxu0 %v2142
    %2360 = vmatprep.subr.mxu0 %v2215
    %2361 = vmatpush1.msra.mxu0 %v2213
    %2362 = vmatprep.subr.mxu0 0.0
    %2363 = vmatpush1.msra.mxu0 0.0
    %2364 = vmatprep.subr.mxu0 0.0
    %2365 = vmatpush1.msra.mxu0 0.0
    %2366 = vmatprep.subr.mxu0 0.0
    %2367 = vmatpush1.msra.mxu0 0.0
    %2368 = vmatprep.subr.mxu0 0.0
    %2369 = vmatpush1.msra.mxu0 0.0
    %2370 = vmatprep.subr.mxu0 0.0
    %2371 = vmatpush1.msra.mxu0 0.0
    %2372 = vmatprep.subr.mxu0 0.0
    %2373 = vmatpush1.msra.mxu0 0.0
    %2374 = vmatprep.subr.mxu0 0.0
    %2375 = vmatpush1.msra.mxu0 0.0
    %2376 = vmatprep.subr.mxu0 0.0
    %2377 = vmatpush1.msra.mxu0 0.0
    %2378 = vmatprep.subr.mxu0 0.0
    %2379 = vmatpush1.msra.mxu0 0.0
    %2380 = vmatprep.subr.mxu0 0.0
    %2381 = vmatpush1.msra.mxu0 0.0
    %2382 = vmatprep.subr.mxu0 0.0
    %2383 = vmatpush1.msra.mxu0 0.0
    %2384 = vmatprep.subr.mxu0 0.0
    %2385 = vmatpush1.msra.mxu0 0.0
    %2386 = vmatprep.subr.mxu0 0.0
    %2387 = vmatpush1.msra.mxu0 0.0
    %2388 = vmatprep.subr.mxu0 0.0
    %2389 = vmatpush1.msra.mxu0 0.0
    %2390 = vmatprep.subr.mxu0 0.0
    %2391 = vmatpush1.msra.mxu0 0.0
    %2392 = vmatprep.subr.mxu0 0.0
    %2393 = vmatpush1.msra.mxu0 0.0
    %2394 = vmatprep.subr.mxu0 0.0
    %2395 = vmatpush1.msra.mxu0 0.0
    %2396 = vmatprep.subr.mxu0 0.0
    %2397 = vmatpush1.msra.mxu0 0.0
    %2398 = vmatprep.subr.mxu0 0.0
    %2399 = vmatpush1.msra.mxu0 0.0
    %2400 = vmatprep.subr.mxu0 0.0
    %2401 = vmatpush1.msra.mxu0 0.0
    %2402 = vmatprep.subr.mxu0 0.0
    %2403 = vmatpush1.msra.mxu0 0.0
    %2404 = vmatprep.subr.mxu0 0.0
    %2405 = vmatpush1.msra.mxu0 0.0
    %2406 = vmatprep.subr.mxu0 0.0
    %2407 = vmatpush1.msra.mxu0 0.0
    %2408 = vmatprep.subr.mxu0 0.0
    %2409 = vmatpush1.msra.mxu0 0.0
    %2410 = vmatprep.subr.mxu0 0.0
    %2411 = vmatpush1.msra.mxu0 0.0
    %2412 = vmatprep.subr.mxu0 0.0
    %2413 = vmatpush1.msra.mxu0 0.0
    %2414 = vmatprep.subr.mxu0 0.0
    %2415 = vmatpush1.msra.mxu0 0.0
    %2416 = vmatprep.subr.mxu0 0.0
    %2417 = vmatpush1.msra.mxu0 0.0
    %2418 = vmatprep.subr.mxu0 0.0
    %2419 = vmatpush1.msra.mxu0 0.0
    %2420 = vmatprep.subr.mxu0 0.0
    %2421 = vmatpush1.msra.mxu0 0.0
    %2422 = vmatprep.mubr.f32.mxu0 0.0
    %2423 = vmatmul.mubr.f32.gmra.mrb[0].mxu0 %v837
    %v2424 = vpop.f32.mrb[0].mxu0
    %v2425 = vadd.f32 %v445, %v2424
    %v2426 = vpop.f32.mrb[0].mxu0
    %v2427 = vadd.f32 %v447, %v2426
    %2428 = vmatprep.mubr.f32.mxu0 0.0
    %2429 = vmatmul.mubr.f32.gmra.mrb[0].mxu0 %v840
    %v2430 = vpop.f32.mrb[0].mxu0
    %v2431 = vadd.f32 %v451, %v2430
    %v2432 = vpop.f32.mrb[0].mxu0
    %v2433 = vadd.f32 %v453, %v2432
    %2434 = vdwg.mxu0
    %2435 = vmatprep.subr.mxu0 0.0
    %2436 = vmatpush1.msra.mxu0 %v2425
    %2437 = vmatprep.subr.mxu0 0.0
    %2438 = vmatpush1.msra.mxu0 %v2431
    %2439 = vmatprep.subr.mxu0 0.0
    %2440 = vmatpush1.msra.mxu0 %v2427
    %2441 = vmatprep.subr.mxu0 0.0
    %2442 = vmatpush1.msra.mxu0 %v2433
    %2443 = vmatprep.subr.mxu0 0.0
    %2444 = vmatpush1.msra.mxu0 0.0
    %2445 = vmatprep.subr.mxu0 0.0
    %2446 = vmatpush1.msra.mxu0 0.0
    %2447 = vmatprep.subr.mxu0 0.0
    %2448 = vmatpush1.msra.mxu0 0.0
    %2449 = vmatprep.subr.mxu0 0.0
    %2450 = vmatpush1.msra.mxu0 0.0
    %2451 = vmatprep.subr.mxu0 0.0
    %2452 = vmatpush1.msra.mxu0 0.0
    %2453 = vmatprep.subr.mxu0 0.0
    %2454 = vmatpush1.msra.mxu0 0.0
    %2455 = vmatprep.subr.mxu0 0.0
    %2456 = vmatpush1.msra.mxu0 0.0
    %2457 = vmatprep.subr.mxu0 0.0
    %2458 = vmatpush1.msra.mxu0 0.0
    %2459 = vmatprep.subr.mxu0 0.0
    %2460 = vmatpush1.msra.mxu0 0.0
    %2461 = vmatprep.subr.mxu0 0.0
    %2462 = vmatpush1.msra.mxu0 0.0
    %2463 = vmatprep.subr.mxu0 0.0
    %2464 = vmatpush1.msra.mxu0 0.0
    %2465 = vmatprep.subr.mxu0 0.0
    %2466 = vmatpush1.msra.mxu0 0.0
    %2467 = vmatprep.subr.mxu0 0.0
    %2468 = vmatpush1.msra.mxu0 0.0
    %2469 = vmatprep.subr.mxu0 0.0
    %2470 = vmatpush1.msra.mxu0 0.0
    %2471 = vmatprep.subr.mxu0 0.0
    %2472 = vmatpush1.msra.mxu0 0.0
    %2473 = vmatprep.subr.mxu0 0.0
    %2474 = vmatpush1.msra.mxu0 0.0
    %2475 = vmatprep.subr.mxu0 0.0
    %2476 = vmatpush1.msra.mxu0 0.0
    %2477 = vmatprep.subr.mxu0 0.0
    %2478 = vmatpush1.msra.mxu0 0.0
    %2479 = vmatprep.subr.mxu0 0.0
    %2480 = vmatpush1.msra.mxu0 0.0
    %2481 = vmatprep.subr.mxu0 0.0
    %2482 = vmatpush1.msra.mxu0 0.0
    %2483 = vmatprep.subr.mxu0 0.0
    %2484 = vmatpush1.msra.mxu0 0.0
    %2485 = vmatprep.subr.mxu0 0.0
    %2486 = vmatpush1.msra.mxu0 0.0
    %2487 = vmatprep.subr.mxu0 0.0
    %2488 = vmatpush1.msra.mxu0 0.0
    %2489 = vmatprep.subr.mxu0 0.0
    %2490 = vmatpush1.msra.mxu0 0.0
    %2491 = vmatprep.subr.mxu0 0.0
    %2492 = vmatpush1.msra.mxu0 0.0
    %2493 = vmatprep.subr.mxu0 0.0
    %2494 = vmatpush1.msra.mxu0 0.0
    %2495 = vmatprep.subr.mxu0 0.0
    %2496 = vmatpush1.msra.mxu0 0.0
    %2497 = vmatprep.subr.mxu0 0.0
    %2498 = vmatpush1.msra.mxu0 0.0
    %2499 = vmatprep.mubr.f32.mxu0 0.0
    %2500 = vmatmul.mubr.f32.gmra.mrb[0].mxu0 %v921
    %v2501 = vpop.f32.mrb[0].mxu0
    %v2502 = vadd.f32 0.0, %v2501
    %v2503 = vpop.f32.mrb[0].mxu0
    %2504 = vdwg.mxu0
    %s2505 = scalar_lea.vmem [#allocation10], 768
    %v2506 = vld [vmem:[%s2505] sm:$0xff]
    %v2507 = vld [vmem:[%s2505 + $0x8] sm:$0xff]
    %v2508 = vld [vmem:[%s2505 + $0x10] sm:$0xff]
    %v2509 = vld [vmem:[%s2505 + $0x18] sm:$0xff]
    %v2510 = vld [vmem:[%s2505 + $0x20] sm:$0xff]
    %v2511 = vld [vmem:[%s2505 + $0x28] sm:$0xff]
    %v2512 = vld [vmem:[%s2505 + $0x30] sm:$0xff]
    %v2513 = vld [vmem:[%s2505 + $0x38] sm:$0xff]
    %v2514 = vld [vmem:[%s2505 + $0x40] sm:$0xff]
    %v2515 = vld [vmem:[%s2505 + $0x48] sm:$0xff]
    %v2516 = vld [vmem:[%s2505 + $0x50] sm:$0xff]
    %v2517 = vld [vmem:[%s2505 + $0x58] sm:$0xff]
    %v2518 = vld [vmem:[%s2505 + $0x60] sm:$0xff]
    %v2519 = vld [vmem:[%s2505 + $0x68] sm:$0xff]
    %v2520 = vld [vmem:[%s2505 + $0x70] sm:$0xff]
    %v2521 = vld [vmem:[%s2505 + $0x78] sm:$0xff]
    %v2522 = vld [vmem:[%s2505 + $0x80] sm:$0xff]
    %v2523 = vld [vmem:[%s2505 + $0x88] sm:$0xff]
    %v2524 = vld [vmem:[%s2505 + $0x90] sm:$0xff]
    %v2525 = vld [vmem:[%s2505 + $0x98] sm:$0xff]
    %v2526 = vld [vmem:[%s2505 + $0xa0] sm:$0xff]
    %v2527 = vld [vmem:[%s2505 + $0xa8] sm:$0xff]
    %v2528 = vld [vmem:[%s2505 + $0xb0] sm:$0xff]
    %v2529 = vld [vmem:[%s2505 + $0xb8] sm:$0xff]
    %v2530 = vld [vmem:[%s2505 + $0xc0] sm:$0xff]
    %v2531 = vld [vmem:[%s2505 + $0xc8] sm:$0xff]
    %v2532 = vld [vmem:[%s2505 + $0xd0] sm:$0xff]
    %v2533 = vld [vmem:[%s2505 + $0xd8] sm:$0xff]
    %v2534 = vld [vmem:[%s2505 + $0xe0] sm:$0xff]
    %v2535 = vld [vmem:[%s2505 + $0xe8] sm:$0xff]
    %v2536 = vld [vmem:[%s2505 + $0xf0] sm:$0xff]
    %v2537 = vld [vmem:[%s2505 + $0xf8] sm:$0xff]
    %v2538 = vld [vmem:[%s2505 + $0x100] sm:$0xff]
    %v2539 = vld [vmem:[%s2505 + $0x108] sm:$0xff]
    %v2540 = vld [vmem:[%s2505 + $0x110] sm:$0xff]
    %v2541 = vld [vmem:[%s2505 + $0x118] sm:$0xff]
    %v2542 = vld [vmem:[%s2505 + $0x120] sm:$0xff]
    %v2543 = vld [vmem:[%s2505 + $0x128] sm:$0xff]
    %v2544 = vld [vmem:[%s2505 + $0x130] sm:$0xff]
    %v2545 = vld [vmem:[%s2505 + $0x138] sm:$0xff]
    %v2546 = vld [vmem:[%s2505 + $0x140] sm:$0xff]
    %v2547 = vld [vmem:[%s2505 + $0x148] sm:$0xff]
    %v2548 = vld [vmem:[%s2505 + $0x150] sm:$0xff]
    %v2549 = vld [vmem:[%s2505 + $0x158] sm:$0xff]
    %v2550 = vld [vmem:[%s2505 + $0x160] sm:$0xff]
    %v2551 = vld [vmem:[%s2505 + $0x168] sm:$0xff]
    %v2552 = vld [vmem:[%s2505 + $0x170] sm:$0xff]
    %v2553 = vld [vmem:[%s2505 + $0x178] sm:$0xff]
    %s2554 = scalar_lea.vmem [#allocation12], 6
    %v2555 = vld [vmem:[%s2554] sm:$0x7]
    %v2557 = vlaneseq
    %v2558 = vshrl.u32 %v2557, 7
    %v2559 = vsub.s32 0, %v2558
    %v2560 = vrot.slane %v2555, %v2559
    %v2561 = vlaneseq
    %v2562 = vshrl.u32 %v2561, 7
    %v2563 = vsub.s32 1, %v2562
    %v2564 = vrot.slane %v2555, %v2563
    %v2565 = vlaneseq
    %v2566 = vshrl.u32 %v2565, 7
    %v2567 = vsub.s32 2, %v2566
    %v2568 = vrot.slane %v2555, %v2567
    %2572 = vmatprep.subr.mxu0 %v2507
    %2573 = vmatpush1.msra.mxu0 %v2506
    %2574 = vmatprep.subr.mxu0 %v2510
    %2575 = vmatpush1.msra.mxu0 %v2509
    %2576 = vmatprep.subr.mxu0 %v2513
    %2577 = vmatpush1.msra.mxu0 %v2512
    %2578 = vmatprep.subr.mxu0 %v2516
    %2579 = vmatpush1.msra.mxu0 %v2515
    %2580 = vmatprep.subr.mxu0 %v2519
    %2581 = vmatpush1.msra.mxu0 %v2518
    %2582 = vmatprep.subr.mxu0 %v2522
    %2583 = vmatpush1.msra.mxu0 %v2521
    %2584 = vmatprep.subr.mxu0 %v2525
    %2585 = vmatpush1.msra.mxu0 %v2524
    %2586 = vmatprep.subr.mxu0 %v2528
    %2587 = vmatpush1.msra.mxu0 %v2527
    %2588 = vmatprep.subr.mxu0 %v2531
    %2589 = vmatpush1.msra.mxu0 %v2530
    %2590 = vmatprep.subr.mxu0 %v2534
    %2591 = vmatpush1.msra.mxu0 %v2533
    %2592 = vmatprep.subr.mxu0 %v2537
    %2593 = vmatpush1.msra.mxu0 %v2536
    %2594 = vmatprep.subr.mxu0 %v2540
    %2595 = vmatpush1.msra.mxu0 %v2539
    %2596 = vmatprep.subr.mxu0 %v2543
    %2597 = vmatpush1.msra.mxu0 %v2542
    %2598 = vmatprep.subr.mxu0 %v2546
    %2599 = vmatpush1.msra.mxu0 %v2545
    %2600 = vmatprep.subr.mxu0 %v2549
    %2601 = vmatpush1.msra.mxu0 %v2548
    %2602 = vmatprep.subr.mxu0 %v2552
    %2603 = vmatpush1.msra.mxu0 %v2551
    %2604 = vmatprep.subr.mxu0 0.0
    %2605 = vmatpush1.msra.mxu0 0.0
    %2606 = vmatprep.subr.mxu0 0.0
    %2607 = vmatpush1.msra.mxu0 0.0
    %2608 = vmatprep.subr.mxu0 0.0
    %2609 = vmatpush1.msra.mxu0 0.0
    %2610 = vmatprep.subr.mxu0 0.0
    %2611 = vmatpush1.msra.mxu0 0.0
    %2612 = vmatprep.subr.mxu0 0.0
    %2613 = vmatpush1.msra.mxu0 0.0
    %2614 = vmatprep.subr.mxu0 0.0
    %2615 = vmatpush1.msra.mxu0 0.0
    %2616 = vmatprep.subr.mxu0 0.0
    %2617 = vmatpush1.msra.mxu0 0.0
    %2618 = vmatprep.subr.mxu0 0.0
    %2619 = vmatpush1.msra.mxu0 0.0
    %2620 = vmatprep.subr.mxu0 0.0
    %2621 = vmatpush1.msra.mxu0 0.0
    %2622 = vmatprep.subr.mxu0 0.0
    %2623 = vmatpush1.msra.mxu0 0.0
    %2624 = vmatprep.subr.mxu0 0.0
    %2625 = vmatpush1.msra.mxu0 0.0
    %2626 = vmatprep.subr.mxu0 0.0
    %2627 = vmatpush1.msra.mxu0 0.0
    %2628 = vmatprep.subr.mxu0 0.0
    %2629 = vmatpush1.msra.mxu0 0.0
    %2630 = vmatprep.subr.mxu0 0.0
    %2631 = vmatpush1.msra.mxu0 0.0
    %2632 = vmatprep.subr.mxu0 0.0
    %2633 = vmatpush1.msra.mxu0 0.0
    %2634 = vmatprep.subr.mxu0 0.0
    %2635 = vmatpush1.msra.mxu0 0.0
    %2636 = vmatprep.mubr.f32.mxu0 0.0
    %2637 = vmatmul.mubr.f32.gmra.mrb[0].mxu0 %v2502
    %v2638 = vpop.f32.mrb[0].mxu0
    %v2639 = vadd.f32 %v2560, %v2638
    %v2640 = vpop.f32.mrb[0].mxu0
    %v2641 = vadd.f32 %v2564, %v2640
    %2642 = vdwg.mxu0
    %2643 = vmatprep.subr.mxu0 0.0
    %2644 = vmatpush1.msra.mxu0 %v2508
    %2645 = vmatprep.subr.mxu0 0.0
    %2646 = vmatpush1.msra.mxu0 %v2511
    %2647 = vmatprep.subr.mxu0 0.0
    %2648 = vmatpush1.msra.mxu0 %v2514
    %2649 = vmatprep.subr.mxu0 0.0
    %2650 = vmatpush1.msra.mxu0 %v2517
    %2651 = vmatprep.subr.mxu0 0.0
    %2652 = vmatpush1.msra.mxu0 %v2520
    %2653 = vmatprep.subr.mxu0 0.0
    %2654 = vmatpush1.msra.mxu0 %v2523
    %2655 = vmatprep.subr.mxu0 0.0
    %2656 = vmatpush1.msra.mxu0 %v2526
    %2657 = vmatprep.subr.mxu0 0.0
    %2658 = vmatpush1.msra.mxu0 %v2529
    %2659 = vmatprep.subr.mxu0 0.0
    %2660 = vmatpush1.msra.mxu0 %v2532
    %2661 = vmatprep.subr.mxu0 0.0
    %2662 = vmatpush1.msra.mxu0 %v2535
    %2663 = vmatprep.subr.mxu0 0.0
    %2664 = vmatpush1.msra.mxu0 %v2538
    %2665 = vmatprep.subr.mxu0 0.0
    %2666 = vmatpush1.msra.mxu0 %v2541
    %2667 = vmatprep.subr.mxu0 0.0
    %2668 = vmatpush1.msra.mxu0 %v2544
    %2669 = vmatprep.subr.mxu0 0.0
    %2670 = vmatpush1.msra.mxu0 %v2547
    %2671 = vmatprep.subr.mxu0 0.0
    %2672 = vmatpush1.msra.mxu0 %v2550
    %2673 = vmatprep.subr.mxu0 0.0
    %2674 = vmatpush1.msra.mxu0 %v2553
    %2675 = vmatprep.subr.mxu0 0.0
    %2676 = vmatpush1.msra.mxu0 0.0
    %2677 = vmatprep.subr.mxu0 0.0
    %2678 = vmatpush1.msra.mxu0 0.0
    %2679 = vmatprep.subr.mxu0 0.0
    %2680 = vmatpush1.msra.mxu0 0.0
    %2681 = vmatprep.subr.mxu0 0.0
    %2682 = vmatpush1.msra.mxu0 0.0
    %2683 = vmatprep.subr.mxu0 0.0
    %2684 = vmatpush1.msra.mxu0 0.0
    %2685 = vmatprep.subr.mxu0 0.0
    %2686 = vmatpush1.msra.mxu0 0.0
    %2687 = vmatprep.subr.mxu0 0.0
    %2688 = vmatpush1.msra.mxu0 0.0
    %2689 = vmatprep.subr.mxu0 0.0
    %2690 = vmatpush1.msra.mxu0 0.0
    %2691 = vmatprep.subr.mxu0 0.0
    %2692 = vmatpush1.msra.mxu0 0.0
    %2693 = vmatprep.subr.mxu0 0.0
    %2694 = vmatpush1.msra.mxu0 0.0
    %2695 = vmatprep.subr.mxu0 0.0
    %2696 = vmatpush1.msra.mxu0 0.0
    %2697 = vmatprep.subr.mxu0 0.0
    %2698 = vmatpush1.msra.mxu0 0.0
    %2699 = vmatprep.subr.mxu0 0.0
    %2700 = vmatpush1.msra.mxu0 0.0
    %2701 = vmatprep.subr.mxu0 0.0
    %2702 = vmatpush1.msra.mxu0 0.0
    %2703 = vmatprep.subr.mxu0 0.0
    %2704 = vmatpush1.msra.mxu0 0.0
    %2705 = vmatprep.subr.mxu0 0.0
    %2706 = vmatpush1.msra.mxu0 0.0
    %2707 = vmatprep.mubr.f32.mxu0 0.0
    %2708 = vmatmul.mubr.f32.gmra.mrb[0].mxu0 %v2502
    %v2709 = vpop.f32.mrb[0].mxu0
    %v2710 = vadd.f32 %v2568, %v2709
    %v2711 = vpop.f32.mrb[0].mxu0
    %2712 = vdwg.mxu0
    %v2713 = vadd.f32 %v2639, %v2284
    %v2714 = vxor.u32 %v2713, 2147483648
    %v2715 = vmul.f32 %v2714, 1.442695
    %v2716 = vpow.pop %v2715
    %v2717 = vadd.f32 %v2716, 1.0
    %v2718 = vrcp.pop %v2717
    %v2719 = vmul.f32 1.0, %v2718
    %v2720 = vadd.f32 %v2641, %v2286
    %v2721 = vxor.u32 %v2720, 2147483648
    %v2722 = vmul.f32 %v2721, 1.442695
    %v2723 = vpow.pop %v2722
    %v2724 = vadd.f32 %v2723, 1.0
    %v2725 = vrcp.pop %v2724
    %v2726 = vmul.f32 1.0, %v2725
    %v2727 = vmul.f32 %v2719, %v2355
    %v2728 = vadd.f32 %v2710, %v2727
    %v2729 = vtanh.pop %v2728
    %v2730 = vsub.f32 1.0, %v2726
    %v2731 = vmul.f32 %v2730, %v2729
    %v2732 = vmul.f32 %v2726, %v1976
    %v2733 = vadd.f32 %v2731, %v2732
    %v2734 = vld [vmem:[#allocation13] sm:$0xff]
    %v2735 = vld [vmem:[#allocation13 + $0x8] sm:$0xff]
    %v2736 = vld [vmem:[#allocation13 + $0x10] sm:$0xff]
    %v2737 = vld [vmem:[#allocation13 + $0x18] sm:$0xff]
    %v2738 = vld [vmem:[#allocation13 + $0x20] sm:$0xff]
    %v2739 = vld [vmem:[#allocation13 + $0x28] sm:$0xff]
    %v2740 = vld [vmem:[#allocation13 + $0x30] sm:$0xff]
    %v2741 = vld [vmem:[#allocation13 + $0x38] sm:$0xff]
    %v2742 = vld [vmem:[#allocation13 + $0x40] sm:$0xff]
    %v2743 = vld [vmem:[#allocation13 + $0x48] sm:$0xff]
    %v2744 = vld [vmem:[#allocation13 + $0x50] sm:$0xff]
    %v2745 = vld [vmem:[#allocation13 + $0x58] sm:$0xff]
    %v2746 = vld [vmem:[#allocation13 + $0x60] sm:$0xff]
    %v2747 = vld [vmem:[#allocation13 + $0x68] sm:$0xff]
    %v2748 = vld [vmem:[#allocation13 + $0x70] sm:$0xff]
    %v2749 = vld [vmem:[#allocation13 + $0x78] sm:$0xff]
    %v2750 = vld [vmem:[#allocation15] sm:$0x3]
    %v2752 = vlaneseq
    %v2753 = vshrl.u32 %v2752, 7
    %v2754 = vsub.s32 0, %v2753
    %v2755 = vrot.slane %v2750, %v2754
    %v2756 = vlaneseq
    %v2757 = vshrl.u32 %v2756, 7
    %v2758 = vsub.s32 1, %v2757
    %v2759 = vrot.slane %v2750, %v2758
    %v2763 = vsel %vm548, %v2733, 0
    %2765 = vmatprep.subr.mxu0 %v2735
    %2766 = vmatpush1.msra.mxu0 %v2734
    %2767 = vmatprep.subr.mxu0 %v2737
    %2768 = vmatpush1.msra.mxu0 %v2736
    %2769 = vmatprep.subr.mxu0 %v2739
    %2770 = vmatpush1.msra.mxu0 %v2738
    %2771 = vmatprep.subr.mxu0 %v2741
    %2772 = vmatpush1.msra.mxu0 %v2740
    %2773 = vmatprep.subr.mxu0 %v2743
    %2774 = vmatpush1.msra.mxu0 %v2742
    %2775 = vmatprep.subr.mxu0 %v2745
    %2776 = vmatpush1.msra.mxu0 %v2744
    %2777 = vmatprep.subr.mxu0 %v2747
    %2778 = vmatpush1.msra.mxu0 %v2746
    %2779 = vmatprep.subr.mxu0 %v2749
    %2780 = vmatpush1.msra.mxu0 %v2748
    %2781 = vmatprep.subr.mxu0 0.0
    %2782 = vmatpush1.msra.mxu0 0.0
    %2783 = vmatprep.subr.mxu0 0.0
    %2784 = vmatpush1.msra.mxu0 0.0
    %2785 = vmatprep.subr.mxu0 0.0
    %2786 = vmatpush1.msra.mxu0 0.0
    %2787 = vmatprep.subr.mxu0 0.0
    %2788 = vmatpush1.msra.mxu0 0.0
    %2789 = vmatprep.subr.mxu0 0.0
    %2790 = vmatpush1.msra.mxu0 0.0
    %2791 = vmatprep.subr.mxu0 0.0
    %2792 = vmatpush1.msra.mxu0 0.0
    %2793 = vmatprep.subr.mxu0 0.0
    %2794 = vmatpush1.msra.mxu0 0.0
    %2795 = vmatprep.subr.mxu0 0.0
    %2796 = vmatpush1.msra.mxu0 0.0
    %2797 = vmatprep.subr.mxu0 0.0
    %2798 = vmatpush1.msra.mxu0 0.0
    %2799 = vmatprep.subr.mxu0 0.0
    %2800 = vmatpush1.msra.mxu0 0.0
    %2801 = vmatprep.subr.mxu0 0.0
    %2802 = vmatpush1.msra.mxu0 0.0
    %2803 = vmatprep.subr.mxu0 0.0
    %2804 = vmatpush1.msra.mxu0 0.0
    %2805 = vmatprep.subr.mxu0 0.0
    %2806 = vmatpush1.msra.mxu0 0.0
    %2807 = vmatprep.subr.mxu0 0.0
    %2808 = vmatpush1.msra.mxu0 0.0
    %2809 = vmatprep.subr.mxu0 0.0
    %2810 = vmatpush1.msra.mxu0 0.0
    %2811 = vmatprep.subr.mxu0 0.0
    %2812 = vmatpush1.msra.mxu0 0.0
    %2813 = vmatprep.subr.mxu0 0.0
    %2814 = vmatpush1.msra.mxu0 0.0
    %2815 = vmatprep.subr.mxu0 0.0
    %2816 = vmatpush1.msra.mxu0 0.0
    %2817 = vmatprep.subr.mxu0 0.0
    %2818 = vmatpush1.msra.mxu0 0.0
    %2819 = vmatprep.subr.mxu0 0.0
    %2820 = vmatpush1.msra.mxu0 0.0
    %2821 = vmatprep.subr.mxu0 0.0
    %2822 = vmatpush1.msra.mxu0 0.0
    %2823 = vmatprep.subr.mxu0 0.0
    %2824 = vmatpush1.msra.mxu0 0.0
    %2825 = vmatprep.subr.mxu0 0.0
    %2826 = vmatpush1.msra.mxu0 0.0
    %2827 = vmatprep.subr.mxu0 0.0
    %2828 = vmatpush1.msra.mxu0 0.0
    %2829 = vmatprep.mubr.f32.mxu0 0.0
    %2830 = vmatmul.mubr.f32.gmra.mrb[0].mxu0 %v2763
    %v2831 = vpop.f32.mrb[0].mxu0
    %v2832 = vadd.f32 %v2755, %v2831
    %v2833 = vpop.f32.mrb[0].mxu0
    %v2834 = vadd.f32 %v2759, %v2833
    %2835 = vdwg.mxu0
    %v2836 = vxor.u32 %v2834, 2147483648
    %v2837 = vmul.f32 %v2836, 1.442695
    %v2838 = vpow.pop %v2837
    %v2839 = vadd.f32 %v2838, 1.0
    %v2840 = vrcp.pop %v2839
    %v2841 = vmul.f32 1.0, %v2840
    %v2842 = vmul.f32 %v2832, %v2841
    %v2843 = vrot.slane %v2842, 4
    %v2844 = vadd.f32 %v2842, %v2843
    %v2845 = vrot.slane %v2844, 2
    %v2846 = vadd.f32 %v2844, %v2845
    %v2847 = vrot.slane %v2846, 1
    %v2848 = vadd.f32 %v2846, %v2847
    %v2849 = vld [vmem:[%s12] sm:$0xff]
    %v2850 = vld [vmem:[%s12 + $0x8] sm:$0xff]
    %v2851 = vld [vmem:[%s12 + $0x10] sm:$0xff]
    %v2852 = vld [vmem:[%s12 + $0x18] sm:$0xff]
    %v2853 = vld [vmem:[%s12 + $0x20] sm:$0xff]
    %v2854 = vld [vmem:[%s12 + $0x28] sm:$0xff]
    %v2855 = vld [vmem:[%s12 + $0x30] sm:$0xff]
    %v2856 = vld [vmem:[%s12 + $0x38] sm:$0xff]
    %v2857 = vld [vmem:[%s12 + $0x40] sm:$0xff]
    %v2858 = vld [vmem:[%s12 + $0x48] sm:$0xff]
    %v2859 = vld [vmem:[%s12 + $0x50] sm:$0xff]
    %v2860 = vld [vmem:[%s12 + $0x58] sm:$0xff]
    %v2861 = vld [vmem:[%s12 + $0x60] sm:$0xff]
    %v2862 = vld [vmem:[%s12 + $0x68] sm:$0xff]
    %v2863 = vld [vmem:[%s12 + $0x70] sm:$0xff]
    %v2864 = vld [vmem:[%s12 + $0x78] sm:$0xff]
    %v2865 = vld [vmem:[#allocation16] sm:$0x1]
    %2866 = vmatprep.subr.mxu0 0.0
    %2867 = vmatpush1.msra.mxu0 %v2849
    %2868 = vmatprep.subr.mxu0 0.0
    %2869 = vmatpush1.msra.mxu0 %v2850
    %2870 = vmatprep.subr.mxu0 0.0
    %2871 = vmatpush1.msra.mxu0 %v2851
    %2872 = vmatprep.subr.mxu0 0.0
    %2873 = vmatpush1.msra.mxu0 %v2852
    %2874 = vmatprep.subr.mxu0 0.0
    %2875 = vmatpush1.msra.mxu0 %v2853
    %2876 = vmatprep.subr.mxu0 0.0
    %2877 = vmatpush1.msra.mxu0 %v2854
    %2878 = vmatprep.subr.mxu0 0.0
    %2879 = vmatpush1.msra.mxu0 %v2855
    %2880 = vmatprep.subr.mxu0 0.0
    %2881 = vmatpush1.msra.mxu0 %v2856
    %2882 = vmatprep.subr.mxu0 0.0
    %2883 = vmatpush1.msra.mxu0 %v2857
    %2884 = vmatprep.subr.mxu0 0.0
    %2885 = vmatpush1.msra.mxu0 %v2858
    %2886 = vmatprep.subr.mxu0 0.0
    %2887 = vmatpush1.msra.mxu0 %v2859
    %2888 = vmatprep.subr.mxu0 0.0
    %2889 = vmatpush1.msra.mxu0 %v2860
    %2890 = vmatprep.subr.mxu0 0.0
    %2891 = vmatpush1.msra.mxu0 %v2861
    %2892 = vmatprep.subr.mxu0 0.0
    %2893 = vmatpush1.msra.mxu0 %v2862
    %2894 = vmatprep.subr.mxu0 0.0
    %2895 = vmatpush1.msra.mxu0 %v2863
    %2896 = vmatprep.subr.mxu0 0.0
    %2897 = vmatpush1.msra.mxu0 %v2864
    %2898 = vmatprep.subr.mxu0 0.0
    %2899 = vmatpush1.msra.mxu0 0.0
    %2900 = vmatprep.subr.mxu0 0.0
    %2901 = vmatpush1.msra.mxu0 0.0
    %2902 = vmatprep.subr.mxu0 0.0
    %2903 = vmatpush1.msra.mxu0 0.0
    %2904 = vmatprep.subr.mxu0 0.0
    %2905 = vmatpush1.msra.mxu0 0.0
    %2906 = vmatprep.subr.mxu0 0.0
    %2907 = vmatpush1.msra.mxu0 0.0
    %2908 = vmatprep.subr.mxu0 0.0
    %2909 = vmatpush1.msra.mxu0 0.0
    %2910 = vmatprep.subr.mxu0 0.0
    %2911 = vmatpush1.msra.mxu0 0.0
    %2912 = vmatprep.subr.mxu0 0.0
    %2913 = vmatpush1.msra.mxu0 0.0
    %2914 = vmatprep.subr.mxu0 0.0
    %2915 = vmatpush1.msra.mxu0 0.0
    %2916 = vmatprep.subr.mxu0 0.0
    %2917 = vmatpush1.msra.mxu0 0.0
    %2918 = vmatprep.subr.mxu0 0.0
    %2919 = vmatpush1.msra.mxu0 0.0
    %2920 = vmatprep.subr.mxu0 0.0
    %2921 = vmatpush1.msra.mxu0 0.0
    %2922 = vmatprep.subr.mxu0 0.0
    %2923 = vmatpush1.msra.mxu0 0.0
    %2924 = vmatprep.subr.mxu0 0.0
    %2925 = vmatpush1.msra.mxu0 0.0
    %2926 = vmatprep.subr.mxu0 0.0
    %2927 = vmatpush1.msra.mxu0 0.0
    %2928 = vmatprep.subr.mxu0 0.0
    %2929 = vmatpush1.msra.mxu0 0.0
    %2930 = vmatprep.mubr.f32.mxu0 0.0
    %2931 = vmatmul.mubr.f32.gmra.mrb[0].mxu0 %v2848
    %v2932 = vpop.f32.mrb[0].mxu0
    %v2933 = vadd.f32 %v2865, %v2932
    %v2934 = vpop.f32.mrb[0].mxu0
    %2935 = vdwg.mxu0
    %v2936 = vlaneseq
    %v2937 = vshrl.u32 %v2936, 7
    %v2938 = vsub.s32 0, %v2937
    %v2939 = vrot.slane %v2933, %v2938
    %2940 = vst [vmem:[%s14] sm:$0xff] %v2939
    // Predicated region
    $region98: #{interaction_type_forward.1} parent=1 // pred_check
      _
    $region99: #{interaction_type_forward.1} parent=1 // pred_check_branch
      %2942 = sbr.rel (0) target = $region101
    $region100: #{interaction_type_forward.1} parent=1 // pred_region
      _
    $region101: #{interaction_type_forward.1} parent=1 // pred_fallthru
      _
    // Predicated region
    $region102: #{interaction_type_forward.1} parent=1 // pred_check
      _
    $region103: #{interaction_type_forward.1} parent=1 // pred_check_branch
      %2944 = sbr.rel (0) target = $region105
    $region104: #{interaction_type_forward.1} parent=1 // pred_region
      _
    $region105: #{interaction_type_forward.1} parent=1 // pred_fallthru
      _
    %2945 = vsyncpa [#allocation3], 1
    %2946 = vsyncpa [#allocation5], 1
    %2947 = vsyncpa [#allocation8], 1
    %2948 = vsyncpa [#allocation11], 1
    %2949 = vsyncpa [#allocation14], 1
    %2950 = vsyncpa [#allocation17], 1

</llo_original>
